<compile_context>
chip_gen: v7x
topology: tpu7x:2x2x1
jax: 0.10.0
libtpu: 0.0.40
codegen_flags: <defaults>
</compile_context>

<pallas_src>
import math
from types import SimpleNamespace

import jax
import jax.numpy as jnp
from jax import lax
from jax.experimental import pallas as pl
from jax.experimental.pallas import tpu as pltpu

F32 = jnp.float32

# torch gate rows are (i, f, g, o); we place them in lane order (i, f, o, g)
# so that one sigmoid covers i/f/o and one tanh covers g.
_GATE_ORDER = (0, 1, 3, 2)


# ----------------------------- fused forward kernel -----------------------------

def _make_forward_kernel(S, B, H2, att_mode, metas):
    H8, H6, H4, D = 8 * H2, 6 * H2, 4 * H2, 2 * H2

    def getw(ref, i):
        off, r, c = metas[i]                     # static python ints
        return ref[off:off + r, 0:c]

    def bilstm(hmat, wxf, wxb, wh, bg, store):
        # hmat: (S*B, F), time-major rows (row = t*B + b).
        # Hoisted input->gate projections: one batched matmul per direction.
        gf = jnp.dot(hmat, wxf, preferred_element_type=F32)     # (S*B, 8*H2)
        gb = jnp.dot(hmat, wxb, preferred_element_type=F32)     # (S*B, 8*H2)
        h = jnp.zeros((B, D), F32)
        c = jnp.zeros((B, D), F32)
        for t in range(S):                                      # fully unrolled
            tb = S - 1 - t
            g = (gf[t * B:(t + 1) * B, :]
                 + gb[tb * B:(tb + 1) * B, :]
                 + jnp.dot(h, wh, preferred_element_type=F32)
                 + bg)                                          # (B, 8*H2)
            # gate lane order: [i_f i_b f_f f_b o_f o_b | g_f g_b]
            sg = jax.nn.sigmoid(g[:, 0:H6])                     # one sigmoid
            gg = jnp.tanh(g[:, H6:H8])                          # one tanh
            c = sg[:, D:H4] * c + sg[:, 0:D] * gg
            h = sg[:, H4:H6] * jnp.tanh(c)
            store(t, tb, h)                                     # write to scratch

    def kernel(x_ref, slab_ref, o_ref, scr_tm, scr_bm):
        w1, b1 = getw(slab_ref, 0), getw(slab_ref, 1)
        w2, b2 = getw(slab_ref, 2), getw(slab_ref, 3)
        wxf0, wxb0, wh0, bg0 = [getw(slab_ref, i) for i in range(4, 8)]
        wxf1, wxb1, wh1, bg1 = [getw(slab_ref, i) for i in range(8, 12)]
        w3, b3 = getw(slab_ref, 12), getw(slab_ref, 13)

        # fc1 + ReLU, fc2 + ReLU on the whole (S*B, In) time-major slab
        xin = x_ref[...]
        h = jnp.maximum(jnp.dot(xin, w1, preferred_element_type=F32) + b1, 0.0)
        h = jnp.maximum(jnp.dot(h, w2, preferred_element_type=F32) + b2, 0.0)

        # layer 0: time-major output scratch (feeds layer-1 hoisted projections)
        def store_tm(t, tb, hh):
            scr_tm[t * B:(t + 1) * B, 0:H2] = hh[:, 0:H2]
            scr_tm[tb * B:(tb + 1) * B, H2:D] = hh[:, H2:D]
        bilstm(h, wxf0, wxb0, wh0, bg0, store_tm)

        # layer 1: batch-major output scratch (feeds per-batch attention / fc3)
        def store_bm(t, tb, hh):
            for b in range(B):
                scr_bm[b * S + t:b * S + t + 1, 0:H2] = hh[b:b + 1, 0:H2]
                scr_bm[b * S + tb:b * S + tb + 1, H2:D] = hh[b:b + 1, H2:D]
        bilstm(scr_tm[...], wxf1, wxb1, wh1, bg1, store_bm)

        if att_mode == 'heads':
            wq, bq = getw(slab_ref, 14), getw(slab_ref, 15)
            wk, bk = getw(slab_ref, 16), getw(slab_ref, 17)
            wv, bv = getw(slab_ref, 18), getw(slab_ref, 19)
            wp, bp = getw(slab_ref, 20), getw(slab_ref, 21)

        scale = 1.0 / math.sqrt(D)
        for b in range(B):                                      # B=2, static
            ob = scr_bm[b * S:(b + 1) * S, :]                   # (S, 2*H2), contiguous
            if att_mode == 'heads':
                q = jnp.dot(ob, wq, preferred_element_type=F32) + bq
                k = jnp.dot(ob, wk, preferred_element_type=F32) + bk
                v = jnp.dot(ob, wv, preferred_element_type=F32) + bv
            else:
                q, k, v = ob, ob, ob
            if att_mode in ('only_self', 'heads'):
                # contracting dims ((1,),(1,)) -> no explicit k transpose
                s = lax.dot_general(q * scale, k, (((1,), (1,)), ((), ())),
                                    preferred_element_type=F32)  # (S, S)
                m = jnp.max(s, axis=-1, keepdims=True)
                p = jnp.exp(s - m)
                p = p / jnp.sum(p, axis=-1, keepdims=True)        # exact division
                att = jnp.dot(p, v, preferred_element_type=F32)   # (S, 2*H2)
                if att_mode == 'heads':
                    att = jnp.dot(att, wp, preferred_element_type=F32) + bp
            else:
                att = ob
            y = jnp.dot(att, w3, preferred_element_type=F32) + b3  # (S, C)
            o_ref[b] = y.astype(o_ref.dtype)

    return kernel


# ----------------------------- host-side weight packing (one time) -----------------------------

def _fuse_bidir(wf_ih, wf_hh, bf_ih, bf_hh, wb_ih, wb_hh, bb_ih, bb_hh, H):
    """Pack one bidirectional LSTM layer (torch layout) into fused matrices so
    that  gates = x_t @ Wxf + x_{S-1-t} @ Wxb + [h_f | h_b] @ Wh + bg
    yields lane layout [i_f i_b f_f f_b o_f o_b g_f g_b] (8*H lanes)."""
    In = wf_ih.shape[1]
    zx = jnp.zeros((In, H), F32)
    zh = jnp.zeros((H, H), F32)

    def gate(w_t, k):
        return w_t[:, k * H:(k + 1) * H]

    wf_x, wb_x = wf_ih.T, wb_ih.T          # (In, 4H)
    wf_h, wb_h = wf_hh.T, wb_hh.T          # (H, 4H)

    Wxf = jnp.concatenate([blk for k in _GATE_ORDER for blk in (gate(wf_x, k), zx)], axis=1)
    Wxb = jnp.concatenate([blk for k in _GATE_ORDER for blk in (zx, gate(wb_x, k))], axis=1)
    Wh = jnp.concatenate(
        [jnp.concatenate([blk for k in _GATE_ORDER for blk in (gate(wf_h, k), zh)], axis=1),
         jnp.concatenate([blk for k in _GATE_ORDER for blk in (zh, gate(wb_h, k))], axis=1)],
        axis=0)                            # (2H, 8H)

    bf = bf_ih + bf_hh
    bb = bb_ih + bb_hh
    bg = jnp.concatenate([blk for k in _GATE_ORDER
                          for blk in (bf[k * H:(k + 1) * H], bb[k * H:(k + 1) * H])])
    return Wxf, Wxb, Wh, bg.reshape(1, 8 * H)


def pack_params(params, args):
    """Flatten/fuse torch-layout params into the kernel operand list (done once)."""
    H2 = args.hidden_size_2
    ops = [params['fc1_w'].T, params['fc1_b'].reshape(1, -1),
           params['fc2_w'].T, params['fc2_b'].reshape(1, -1)]
    for layer in range(2):
        ops.extend(_fuse_bidir(*params[f'lstm_l{layer}_fwd'],
                               *params[f'lstm_l{layer}_bwd'], H2))
    ops.extend([params['fc3_w'].T, params['fc3_b'].reshape(1, -1)])
    if args.self_att == 'heads':
        for n in ('q', 'k', 'v', 'proj'):
            ops.extend([params[f'att_{n}_w'].T, params[f'att_{n}_b'].reshape(1, -1)])
    return ops


def pack_slab(ops, lanes=128):
    """Stack all 2-D operands into one lane-padded (R,128) slab -> one DMA."""
    blocks, metas, off = [], [], 0
    for a in ops:
        a = jnp.asarray(a, F32)
        r, c = a.shape
        rp = ((r + 7) // 8) * 8            # sublane-align each block
        blocks.append(jnp.zeros((rp, lanes), F32).at[:r, :c].set(a))
        metas.append((off, r, c))
        off += rp
    return jnp.concatenate(blocks, axis=0), tuple(metas)


# ----------------------------- forward wrapper -----------------------------

def modern_dblstm_forward(slab, metas, x, args):
    B, S, In = x.shape
    C = args.num_classes
    H2 = args.hidden_size_2
    kernel = _make_forward_kernel(S, B, H2, args.self_att, metas)
    # time-major rows (row = t*B + b) so per-step gate slices are contiguous
    x_tm = jnp.transpose(x, (1, 0, 2)).reshape(S * B, In)
    return pl.pallas_call(
        kernel,
        out_shape=jax.ShapeDtypeStruct((B, S, C), jnp.float32),
        scratch_shapes=[pltpu.VMEM((S * B, 2 * H2), F32),   # layer-0 out (time-major)
                        pltpu.VMEM((B * S, 2 * H2), F32)],  # layer-1 out (batch-major)
    )(x_tm, slab)


# ----------------------------- parameter init (deterministic, torch-like) -----------------------------

def _uniform(key, shape, bound):
    return jax.random.uniform(key, shape, F32, -bound, bound)


def init_params(key, args):
    p = {}
    keys = iter(jax.random.split(key, 64))

    def lin(in_f, out_f):
        b = 1.0 / math.sqrt(in_f)
        return _uniform(next(keys), (out_f, in_f), b), _uniform(next(keys), (out_f,), b)

    p['fc1_w'], p['fc1_b'] = lin(args.input_size, args.hidden_size)
    p['fc2_w'], p['fc2_b'] = lin(args.hidden_size, args.hidden_size)

    H2 = args.hidden_size_2
    bound = 1.0 / math.sqrt(H2)
    for layer in range(2):
        in_f = args.hidden_size if layer == 0 else 2 * H2
        for direc in ('fwd', 'bwd'):
            p[f'lstm_l{layer}_{direc}'] = (
                _uniform(next(keys), (4 * H2, in_f), bound),   # w_ih
                _uniform(next(keys), (4 * H2, H2), bound),     # w_hh
                _uniform(next(keys), (4 * H2,), bound),        # b_ih
                _uniform(next(keys), (4 * H2,), bound),        # b_hh
            )

    p['fc3_w'], p['fc3_b'] = lin(2 * H2, args.num_classes)

    if args.self_att == 'heads':
        d_model = 2 * H2   # n_heads = 1 -> d_feature == d_model
        p['att_q_w'], p['att_q_b'] = lin(d_model, d_model)
        p['att_k_w'], p['att_k_b'] = lin(d_model, d_model)
        p['att_v_w'], p['att_v_b'] = lin(d_model, d_model)
        p['att_proj_w'], p['att_proj_b'] = lin(d_model, d_model)
    return p


# ----------------------------- main -----------------------------

if __name__ == "__main__":
    args = SimpleNamespace(
        input_size=16,
        hidden_size=32,
        hidden_size_2=16,
        num_classes=8,
        self_att='only_self',
    )

    key = jax.random.PRNGKey(0)
    k_params, k_x = jax.random.split(key)
    params = init_params(k_params, args)
    slab, metas = pack_slab(pack_params(params, args))   # one-time weight fusion/packing

    B, S = 2, 8
    x = jax.random.normal(k_x, (B, S, args.input_size), F32)

    fwd = jax.jit(lambda slab_, x_: modern_dblstm_forward(slab_, metas, x_, args))
    out = jax.block_until_ready(fwd(slab, x))
    assert out.shape == (B, S, args.num_classes)
    assert bool(jnp.all(jnp.isfinite(out)))
    print("KERNEL_OK")
</pallas_src>

<mosaic_0001>
module attributes {stable_mosaic.version = 11 : i64} {
  func.func @kernel(%arg0: memref<16x16xf32, #tpu.memory_space<vmem>>, %arg1: memref<312x128xf32, #tpu.memory_space<vmem>>, %arg2: memref<2x8x8xf32, #tpu.memory_space<vmem>>, %arg3: memref<16x32xf32, #tpu.memory_space<vmem>>, %arg4: memref<16x32xf32, #tpu.memory_space<vmem>>) attributes {dimension_semantics = [], scalar_prefetch = 0 : i64, scratch_operands = 2 : i64, tpu.core_type = #tpu.core_type<tc>} {
    %c0 = arith.constant 0 : index
    %c0_0 = arith.constant 0 : index
    %0 = vector.load %arg1[%c0, %c0_0] : memref<312x128xf32, #tpu.memory_space<vmem>>, vector<16x32xf32>
    %c16 = arith.constant 16 : index
    %c0_1 = arith.constant 0 : index
    %1 = vector.load %arg1[%c16, %c0_1] : memref<312x128xf32, #tpu.memory_space<vmem>>, vector<1x32xf32>
    %c24 = arith.constant 24 : index
    %c0_2 = arith.constant 0 : index
    %2 = vector.load %arg1[%c24, %c0_2] : memref<312x128xf32, #tpu.memory_space<vmem>>, vector<32x32xf32>
    %c56 = arith.constant 56 : index
    %c0_3 = arith.constant 0 : index
    %3 = vector.load %arg1[%c56, %c0_3] : memref<312x128xf32, #tpu.memory_space<vmem>>, vector<1x32xf32>
    %c64 = arith.constant 64 : index
    %c0_4 = arith.constant 0 : index
    %4 = vector.load %arg1[%c64, %c0_4] : memref<312x128xf32, #tpu.memory_space<vmem>>, vector<32x128xf32>
    %c96 = arith.constant 96 : index
    %c0_5 = arith.constant 0 : index
    %5 = vector.load %arg1[%c96, %c0_5] : memref<312x128xf32, #tpu.memory_space<vmem>>, vector<32x128xf32>
    %c128 = arith.constant 128 : index
    %c0_6 = arith.constant 0 : index
    %6 = vector.load %arg1[%c128, %c0_6] : memref<312x128xf32, #tpu.memory_space<vmem>>, vector<32x128xf32>
    %c160 = arith.constant 160 : index
    %c0_7 = arith.constant 0 : index
    %7 = vector.load %arg1[%c160, %c0_7] : memref<312x128xf32, #tpu.memory_space<vmem>>, vector<1x128xf32>
    %c168 = arith.constant 168 : index
    %c0_8 = arith.constant 0 : index
    %8 = vector.load %arg1[%c168, %c0_8] : memref<312x128xf32, #tpu.memory_space<vmem>>, vector<32x128xf32>
    %c200 = arith.constant 200 : index
    %c0_9 = arith.constant 0 : index
    %9 = vector.load %arg1[%c200, %c0_9] : memref<312x128xf32, #tpu.memory_space<vmem>>, vector<32x128xf32>
    %c232 = arith.constant 232 : index
    %c0_10 = arith.constant 0 : index
    %10 = vector.load %arg1[%c232, %c0_10] : memref<312x128xf32, #tpu.memory_space<vmem>>, vector<32x128xf32>
    %c264 = arith.constant 264 : index
    %c0_11 = arith.constant 0 : index
    %11 = vector.load %arg1[%c264, %c0_11] : memref<312x128xf32, #tpu.memory_space<vmem>>, vector<1x128xf32>
    %c272 = arith.constant 272 : index
    %c0_12 = arith.constant 0 : index
    %12 = vector.load %arg1[%c272, %c0_12] : memref<312x128xf32, #tpu.memory_space<vmem>>, vector<32x8xf32>
    %c304 = arith.constant 304 : index
    %c0_13 = arith.constant 0 : index
    %13 = vector.load %arg1[%c304, %c0_13] : memref<312x128xf32, #tpu.memory_space<vmem>>, vector<1x8xf32>
    %c0_14 = arith.constant 0 : index
    %c0_15 = arith.constant 0 : index
    %14 = vector.load %arg0[%c0_14, %c0_15] : memref<16x16xf32, #tpu.memory_space<vmem>>, vector<16x16xf32>
    %cst = arith.constant dense<0.000000e+00> : vector<16x32xf32>
    %15 = tpu.matmul %14, %0, %cst {dimension_numbers = #tpu.dot_dimension_numbers<[1], [0], [0], [1], [0, 0, 1, 1], [], []>} : vector<16x16xf32>, vector<16x32xf32>, vector<16x32xf32> -> vector<16x32xf32>
    %16 = vector.broadcast %1 : vector<1x32xf32> to vector<16x32xf32>
    %17 = arith.addf %15, %16 : vector<16x32xf32>
    %cst_16 = arith.constant 0.000000e+00 : f32
    %18 = vector.broadcast %cst_16 : f32 to vector<16x32xf32>
    %19 = arith.maximumf %17, %18 : vector<16x32xf32>
    %cst_17 = arith.constant dense<0.000000e+00> : vector<16x32xf32>
    %20 = tpu.matmul %19, %2, %cst_17 {dimension_numbers = #tpu.dot_dimension_numbers<[1], [0], [0], [1], [0, 0, 1, 1], [], []>} : vector<16x32xf32>, vector<32x32xf32>, vector<16x32xf32> -> vector<16x32xf32>
    %21 = vector.broadcast %3 : vector<1x32xf32> to vector<16x32xf32>
    %22 = arith.addf %20, %21 : vector<16x32xf32>
    %cst_18 = arith.constant 0.000000e+00 : f32
    %23 = vector.broadcast %cst_18 : f32 to vector<16x32xf32>
    %24 = arith.maximumf %22, %23 : vector<16x32xf32>
    %cst_19 = arith.constant dense<0.000000e+00> : vector<16x128xf32>
    %25 = tpu.matmul %24, %4, %cst_19 {dimension_numbers = #tpu.dot_dimension_numbers<[1], [0], [0], [1], [0, 0, 1, 1], [], []>} : vector<16x32xf32>, vector<32x128xf32>, vector<16x128xf32> -> vector<16x128xf32>
    %cst_20 = arith.constant dense<0.000000e+00> : vector<16x128xf32>
    %26 = tpu.matmul %24, %5, %cst_20 {dimension_numbers = #tpu.dot_dimension_numbers<[1], [0], [0], [1], [0, 0, 1, 1], [], []>} : vector<16x32xf32>, vector<32x128xf32>, vector<16x128xf32> -> vector<16x128xf32>
    %cst_21 = arith.constant 0.000000e+00 : f32
    %27 = vector.broadcast %cst_21 : f32 to vector<2x32xf32>
    %cst_22 = arith.constant 0.000000e+00 : f32
    %28 = vector.broadcast %cst_22 : f32 to vector<2x32xf32>
    %29 = vector.extract_strided_slice %25 {offsets = [0, 0], sizes = [2, 128], strides = [1, 1]} : vector<16x128xf32> to vector<2x128xf32>
    %30 = vector.extract_strided_slice %26 {offsets = [14, 0], sizes = [2, 128], strides = [1, 1]} : vector<16x128xf32> to vector<2x128xf32>
    %31 = arith.addf %29, %30 : vector<2x128xf32>
    %cst_23 = arith.constant dense<0.000000e+00> : vector<2x128xf32>
    %32 = tpu.matmul %27, %6, %cst_23 {dimension_numbers = #tpu.dot_dimension_numbers<[1], [0], [0], [1], [0, 0, 1, 1], [], []>} : vector<2x32xf32>, vector<32x128xf32>, vector<2x128xf32> -> vector<2x128xf32>
    %33 = arith.addf %31, %32 : vector<2x128xf32>
    %34 = vector.broadcast %7 : vector<1x128xf32> to vector<2x128xf32>
    %35 = arith.addf %33, %34 : vector<2x128xf32>
    %36 = vector.extract_strided_slice %35 {offsets = [0, 0], sizes = [2, 96], strides = [1, 1]} : vector<2x128xf32> to vector<2x96xf32>
    %37 = arith.negf %36 : vector<2x96xf32>
    %38 = math.exp %37 : vector<2x96xf32>
    %cst_24 = arith.constant 1.000000e+00 : f32
    %39 = vector.broadcast %cst_24 : f32 to vector<2x96xf32>
    %40 = arith.addf %39, %38 : vector<2x96xf32>
    %41 = arith.divf %39, %40 : vector<2x96xf32>
    %42 = vector.extract_strided_slice %35 {offsets = [0, 96], sizes = [2, 32], strides = [1, 1]} : vector<2x128xf32> to vector<2x32xf32>
    %43 = math.tanh %42 : vector<2x32xf32>
    %44 = vector.extract_strided_slice %41 {offsets = [0, 32], sizes = [2, 32], strides = [1, 1]} : vector<2x96xf32> to vector<2x32xf32>
    %45 = arith.mulf %44, %28 : vector<2x32xf32>
    %46 = vector.extract_strided_slice %41 {offsets = [0, 0], sizes = [2, 32], strides = [1, 1]} : vector<2x96xf32> to vector<2x32xf32>
    %47 = arith.mulf %46, %43 : vector<2x32xf32>
    %48 = arith.addf %45, %47 : vector<2x32xf32>
    %49 = vector.extract_strided_slice %41 {offsets = [0, 64], sizes = [2, 32], strides = [1, 1]} : vector<2x96xf32> to vector<2x32xf32>
    %50 = math.tanh %48 : vector<2x32xf32>
    %51 = arith.mulf %49, %50 : vector<2x32xf32>
    %52 = vector.extract_strided_slice %51 {offsets = [0, 0], sizes = [2, 16], strides = [1, 1]} : vector<2x32xf32> to vector<2x16xf32>
    %c0_25 = arith.constant 0 : index
    %c0_26 = arith.constant 0 : index
    %53 = vector.load %arg3[%c0_25, %c0_26] : memref<16x32xf32, #tpu.memory_space<vmem>>, vector<2x16xf32>
    tpu.vector_store %arg3[%c0_25, %c0_26], %52 {strides = array<i32>} : memref<16x32xf32, #tpu.memory_space<vmem>>, vector<2x16xf32>,
    %54 = vector.extract_strided_slice %51 {offsets = [0, 16], sizes = [2, 16], strides = [1, 1]} : vector<2x32xf32> to vector<2x16xf32>
    %c14 = arith.constant 14 : index
    %c16_27 = arith.constant 16 : index
    %55 = vector.load %arg3[%c14, %c16_27] : memref<16x32xf32, #tpu.memory_space<vmem>>, vector<2x16xf32>
    tpu.vector_store %arg3[%c14, %c16_27], %54 {strides = array<i32>} : memref<16x32xf32, #tpu.memory_space<vmem>>, vector<2x16xf32>,
    %56 = vector.extract_strided_slice %25 {offsets = [2, 0], sizes = [2, 128], strides = [1, 1]} : vector<16x128xf32> to vector<2x128xf32>
    %57 = vector.extract_strided_slice %26 {offsets = [12, 0], sizes = [2, 128], strides = [1, 1]} : vector<16x128xf32> to vector<2x128xf32>
    %58 = arith.addf %56, %57 : vector<2x128xf32>
    %cst_28 = arith.constant dense<0.000000e+00> : vector<2x128xf32>
    %59 = tpu.matmul %51, %6, %cst_28 {dimension_numbers = #tpu.dot_dimension_numbers<[1], [0], [0], [1], [0, 0, 1, 1], [], []>} : vector<2x32xf32>, vector<32x128xf32>, vector<2x128xf32> -> vector<2x128xf32>
    %60 = arith.addf %58, %59 : vector<2x128xf32>
    %61 = vector.broadcast %7 : vector<1x128xf32> to vector<2x128xf32>
    %62 = arith.addf %60, %61 : vector<2x128xf32>
    %63 = vector.extract_strided_slice %62 {offsets = [0, 0], sizes = [2, 96], strides = [1, 1]} : vector<2x128xf32> to vector<2x96xf32>
    %64 = arith.negf %63 : vector<2x96xf32>
    %65 = math.exp %64 : vector<2x96xf32>
    %cst_29 = arith.constant 1.000000e+00 : f32
    %66 = vector.broadcast %cst_29 : f32 to vector<2x96xf32>
    %67 = arith.addf %66, %65 : vector<2x96xf32>
    %68 = arith.divf %66, %67 : vector<2x96xf32>
    %69 = vector.extract_strided_slice %62 {offsets = [0, 96], sizes = [2, 32], strides = [1, 1]} : vector<2x128xf32> to vector<2x32xf32>
    %70 = math.tanh %69 : vector<2x32xf32>
    %71 = vector.extract_strided_slice %68 {offsets = [0, 32], sizes = [2, 32], strides = [1, 1]} : vector<2x96xf32> to vector<2x32xf32>
    %72 = arith.mulf %71, %48 : vector<2x32xf32>
    %73 = vector.extract_strided_slice %68 {offsets = [0, 0], sizes = [2, 32], strides = [1, 1]} : vector<2x96xf32> to vector<2x32xf32>
    %74 = arith.mulf %73, %70 : vector<2x32xf32>
    %75 = arith.addf %72, %74 : vector<2x32xf32>
    %76 = vector.extract_strided_slice %68 {offsets = [0, 64], sizes = [2, 32], strides = [1, 1]} : vector<2x96xf32> to vector<2x32xf32>
    %77 = math.tanh %75 : vector<2x32xf32>
    %78 = arith.mulf %76, %77 : vector<2x32xf32>
    %79 = vector.extract_strided_slice %78 {offsets = [0, 0], sizes = [2, 16], strides = [1, 1]} : vector<2x32xf32> to vector<2x16xf32>
    %c2 = arith.constant 2 : index
    %c0_30 = arith.constant 0 : index
    %80 = vector.load %arg3[%c2, %c0_30] : memref<16x32xf32, #tpu.memory_space<vmem>>, vector<2x16xf32>
    tpu.vector_store %arg3[%c2, %c0_30], %79 {strides = array<i32>} : memref<16x32xf32, #tpu.memory_space<vmem>>, vector<2x16xf32>,
    %81 = vector.extract_strided_slice %78 {offsets = [0, 16], sizes = [2, 16], strides = [1, 1]} : vector<2x32xf32> to vector<2x16xf32>
    %c12 = arith.constant 12 : index
    %c16_31 = arith.constant 16 : index
    %82 = vector.load %arg3[%c12, %c16_31] : memref<16x32xf32, #tpu.memory_space<vmem>>, vector<2x16xf32>
    tpu.vector_store %arg3[%c12, %c16_31], %81 {strides = array<i32>} : memref<16x32xf32, #tpu.memory_space<vmem>>, vector<2x16xf32>,
    %83 = vector.extract_strided_slice %25 {offsets = [4, 0], sizes = [2, 128], strides = [1, 1]} : vector<16x128xf32> to vector<2x128xf32>
    %84 = vector.extract_strided_slice %26 {offsets = [10, 0], sizes = [2, 128], strides = [1, 1]} : vector<16x128xf32> to vector<2x128xf32>
    %85 = arith.addf %83, %84 : vector<2x128xf32>
    %cst_32 = arith.constant dense<0.000000e+00> : vector<2x128xf32>
    %86 = tpu.matmul %78, %6, %cst_32 {dimension_numbers = #tpu.dot_dimension_numbers<[1], [0], [0], [1], [0, 0, 1, 1], [], []>} : vector<2x32xf32>, vector<32x128xf32>, vector<2x128xf32> -> vector<2x128xf32>
    %87 = arith.addf %85, %86 : vector<2x128xf32>
    %88 = vector.broadcast %7 : vector<1x128xf32> to vector<2x128xf32>
    %89 = arith.addf %87, %88 : vector<2x128xf32>
    %90 = vector.extract_strided_slice %89 {offsets = [0, 0], sizes = [2, 96], strides = [1, 1]} : vector<2x128xf32> to vector<2x96xf32>
    %91 = arith.negf %90 : vector<2x96xf32>
    %92 = math.exp %91 : vector<2x96xf32>
    %cst_33 = arith.constant 1.000000e+00 : f32
    %93 = vector.broadcast %cst_33 : f32 to vector<2x96xf32>
    %94 = arith.addf %93, %92 : vector<2x96xf32>
    %95 = arith.divf %93, %94 : vector<2x96xf32>
    %96 = vector.extract_strided_slice %89 {offsets = [0, 96], sizes = [2, 32], strides = [1, 1]} : vector<2x128xf32> to vector<2x32xf32>
    %97 = math.tanh %96 : vector<2x32xf32>
    %98 = vector.extract_strided_slice %95 {offsets = [0, 32], sizes = [2, 32], strides = [1, 1]} : vector<2x96xf32> to vector<2x32xf32>
    %99 = arith.mulf %98, %75 : vector<2x32xf32>
    %100 = vector.extract_strided_slice %95 {offsets = [0, 0], sizes = [2, 32], strides = [1, 1]} : vector<2x96xf32> to vector<2x32xf32>
    %101 = arith.mulf %100, %97 : vector<2x32xf32>
    %102 = arith.addf %99, %101 : vector<2x32xf32>
    %103 = vector.extract_strided_slice %95 {offsets = [0, 64], sizes = [2, 32], strides = [1, 1]} : vector<2x96xf32> to vector<2x32xf32>
    %104 = math.tanh %102 : vector<2x32xf32>
    %105 = arith.mulf %103, %104 : vector<2x32xf32>
    %106 = vector.extract_strided_slice %105 {offsets = [0, 0], sizes = [2, 16], strides = [1, 1]} : vector<2x32xf32> to vector<2x16xf32>
    %c4 = arith.constant 4 : index
    %c0_34 = arith.constant 0 : index
    %107 = vector.load %arg3[%c4, %c0_34] : memref<16x32xf32, #tpu.memory_space<vmem>>, vector<2x16xf32>
    tpu.vector_store %arg3[%c4, %c0_34], %106 {strides = array<i32>} : memref<16x32xf32, #tpu.memory_space<vmem>>, vector<2x16xf32>,
    %108 = vector.extract_strided_slice %105 {offsets = [0, 16], sizes = [2, 16], strides = [1, 1]} : vector<2x32xf32> to vector<2x16xf32>
    %c10 = arith.constant 10 : index
    %c16_35 = arith.constant 16 : index
    %109 = vector.load %arg3[%c10, %c16_35] : memref<16x32xf32, #tpu.memory_space<vmem>>, vector<2x16xf32>
    tpu.vector_store %arg3[%c10, %c16_35], %108 {strides = array<i32>} : memref<16x32xf32, #tpu.memory_space<vmem>>, vector<2x16xf32>,
    %110 = vector.extract_strided_slice %25 {offsets = [6, 0], sizes = [2, 128], strides = [1, 1]} : vector<16x128xf32> to vector<2x128xf32>
    %111 = vector.extract_strided_slice %26 {offsets = [8, 0], sizes = [2, 128], strides = [1, 1]} : vector<16x128xf32> to vector<2x128xf32>
    %112 = arith.addf %110, %111 : vector<2x128xf32>
    %cst_36 = arith.constant dense<0.000000e+00> : vector<2x128xf32>
    %113 = tpu.matmul %105, %6, %cst_36 {dimension_numbers = #tpu.dot_dimension_numbers<[1], [0], [0], [1], [0, 0, 1, 1], [], []>} : vector<2x32xf32>, vector<32x128xf32>, vector<2x128xf32> -> vector<2x128xf32>
    %114 = arith.addf %112, %113 : vector<2x128xf32>
    %115 = vector.broadcast %7 : vector<1x128xf32> to vector<2x128xf32>
    %116 = arith.addf %114, %115 : vector<2x128xf32>
    %117 = vector.extract_strided_slice %116 {offsets = [0, 0], sizes = [2, 96], strides = [1, 1]} : vector<2x128xf32> to vector<2x96xf32>
    %118 = arith.negf %117 : vector<2x96xf32>
    %119 = math.exp %118 : vector<2x96xf32>
    %cst_37 = arith.constant 1.000000e+00 : f32
    %120 = vector.broadcast %cst_37 : f32 to vector<2x96xf32>
    %121 = arith.addf %120, %119 : vector<2x96xf32>
    %122 = arith.divf %120, %121 : vector<2x96xf32>
    %123 = vector.extract_strided_slice %116 {offsets = [0, 96], sizes = [2, 32], strides = [1, 1]} : vector<2x128xf32> to vector<2x32xf32>
    %124 = math.tanh %123 : vector<2x32xf32>
    %125 = vector.extract_strided_slice %122 {offsets = [0, 32], sizes = [2, 32], strides = [1, 1]} : vector<2x96xf32> to vector<2x32xf32>
    %126 = arith.mulf %125, %102 : vector<2x32xf32>
    %127 = vector.extract_strided_slice %122 {offsets = [0, 0], sizes = [2, 32], strides = [1, 1]} : vector<2x96xf32> to vector<2x32xf32>
    %128 = arith.mulf %127, %124 : vector<2x32xf32>
    %129 = arith.addf %126, %128 : vector<2x32xf32>
    %130 = vector.extract_strided_slice %122 {offsets = [0, 64], sizes = [2, 32], strides = [1, 1]} : vector<2x96xf32> to vector<2x32xf32>
    %131 = math.tanh %129 : vector<2x32xf32>
    %132 = arith.mulf %130, %131 : vector<2x32xf32>
    %133 = vector.extract_strided_slice %132 {offsets = [0, 0], sizes = [2, 16], strides = [1, 1]} : vector<2x32xf32> to vector<2x16xf32>
    %c6 = arith.constant 6 : index
    %c0_38 = arith.constant 0 : index
    %134 = vector.load %arg3[%c6, %c0_38] : memref<16x32xf32, #tpu.memory_space<vmem>>, vector<2x16xf32>
    tpu.vector_store %arg3[%c6, %c0_38], %133 {strides = array<i32>} : memref<16x32xf32, #tpu.memory_space<vmem>>, vector<2x16xf32>,
    %135 = vector.extract_strided_slice %132 {offsets = [0, 16], sizes = [2, 16], strides = [1, 1]} : vector<2x32xf32> to vector<2x16xf32>
    %c8 = arith.constant 8 : index
    %c16_39 = arith.constant 16 : index
    %136 = vector.load %arg3[%c8, %c16_39] : memref<16x32xf32, #tpu.memory_space<vmem>>, vector<2x16xf32>
    tpu.vector_store %arg3[%c8, %c16_39], %135 {strides = array<i32>} : memref<16x32xf32, #tpu.memory_space<vmem>>, vector<2x16xf32>,
    %137 = vector.extract_strided_slice %25 {offsets = [8, 0], sizes = [2, 128], strides = [1, 1]} : vector<16x128xf32> to vector<2x128xf32>
    %138 = vector.extract_strided_slice %26 {offsets = [6, 0], sizes = [2, 128], strides = [1, 1]} : vector<16x128xf32> to vector<2x128xf32>
    %139 = arith.addf %137, %138 : vector<2x128xf32>
    %cst_40 = arith.constant dense<0.000000e+00> : vector<2x128xf32>
    %140 = tpu.matmul %132, %6, %cst_40 {dimension_numbers = #tpu.dot_dimension_numbers<[1], [0], [0], [1], [0, 0, 1, 1], [], []>} : vector<2x32xf32>, vector<32x128xf32>, vector<2x128xf32> -> vector<2x128xf32>
    %141 = arith.addf %139, %140 : vector<2x128xf32>
    %142 = vector.broadcast %7 : vector<1x128xf32> to vector<2x128xf32>
    %143 = arith.addf %141, %142 : vector<2x128xf32>
    %144 = vector.extract_strided_slice %143 {offsets = [0, 0], sizes = [2, 96], strides = [1, 1]} : vector<2x128xf32> to vector<2x96xf32>
    %145 = arith.negf %144 : vector<2x96xf32>
    %146 = math.exp %145 : vector<2x96xf32>
    %cst_41 = arith.constant 1.000000e+00 : f32
    %147 = vector.broadcast %cst_41 : f32 to vector<2x96xf32>
    %148 = arith.addf %147, %146 : vector<2x96xf32>
    %149 = arith.divf %147, %148 : vector<2x96xf32>
    %150 = vector.extract_strided_slice %143 {offsets = [0, 96], sizes = [2, 32], strides = [1, 1]} : vector<2x128xf32> to vector<2x32xf32>
    %151 = math.tanh %150 : vector<2x32xf32>
    %152 = vector.extract_strided_slice %149 {offsets = [0, 32], sizes = [2, 32], strides = [1, 1]} : vector<2x96xf32> to vector<2x32xf32>
    %153 = arith.mulf %152, %129 : vector<2x32xf32>
    %154 = vector.extract_strided_slice %149 {offsets = [0, 0], sizes = [2, 32], strides = [1, 1]} : vector<2x96xf32> to vector<2x32xf32>
    %155 = arith.mulf %154, %151 : vector<2x32xf32>
    %156 = arith.addf %153, %155 : vector<2x32xf32>
    %157 = vector.extract_strided_slice %149 {offsets = [0, 64], sizes = [2, 32], strides = [1, 1]} : vector<2x96xf32> to vector<2x32xf32>
    %158 = math.tanh %156 : vector<2x32xf32>
    %159 = arith.mulf %157, %158 : vector<2x32xf32>
    %160 = vector.extract_strided_slice %159 {offsets = [0, 0], sizes = [2, 16], strides = [1, 1]} : vector<2x32xf32> to vector<2x16xf32>
    %c8_42 = arith.constant 8 : index
    %c0_43 = arith.constant 0 : index
    %161 = vector.load %arg3[%c8_42, %c0_43] : memref<16x32xf32, #tpu.memory_space<vmem>>, vector<2x16xf32>
    tpu.vector_store %arg3[%c8_42, %c0_43], %160 {strides = array<i32>} : memref<16x32xf32, #tpu.memory_space<vmem>>, vector<2x16xf32>,
    %162 = vector.extract_strided_slice %159 {offsets = [0, 16], sizes = [2, 16], strides = [1, 1]} : vector<2x32xf32> to vector<2x16xf32>
    %c6_44 = arith.constant 6 : index
    %c16_45 = arith.constant 16 : index
    %163 = vector.load %arg3[%c6_44, %c16_45] : memref<16x32xf32, #tpu.memory_space<vmem>>, vector<2x16xf32>
    tpu.vector_store %arg3[%c6_44, %c16_45], %162 {strides = array<i32>} : memref<16x32xf32, #tpu.memory_space<vmem>>, vector<2x16xf32>,
    %164 = vector.extract_strided_slice %25 {offsets = [10, 0], sizes = [2, 128], strides = [1, 1]} : vector<16x128xf32> to vector<2x128xf32>
    %165 = vector.extract_strided_slice %26 {offsets = [4, 0], sizes = [2, 128], strides = [1, 1]} : vector<16x128xf32> to vector<2x128xf32>
    %166 = arith.addf %164, %165 : vector<2x128xf32>
    %cst_46 = arith.constant dense<0.000000e+00> : vector<2x128xf32>
    %167 = tpu.matmul %159, %6, %cst_46 {dimension_numbers = #tpu.dot_dimension_numbers<[1], [0], [0], [1], [0, 0, 1, 1], [], []>} : vector<2x32xf32>, vector<32x128xf32>, vector<2x128xf32> -> vector<2x128xf32>
    %168 = arith.addf %166, %167 : vector<2x128xf32>
    %169 = vector.broadcast %7 : vector<1x128xf32> to vector<2x128xf32>
    %170 = arith.addf %168, %169 : vector<2x128xf32>
    %171 = vector.extract_strided_slice %170 {offsets = [0, 0], sizes = [2, 96], strides = [1, 1]} : vector<2x128xf32> to vector<2x96xf32>
    %172 = arith.negf %171 : vector<2x96xf32>
    %173 = math.exp %172 : vector<2x96xf32>
    %cst_47 = arith.constant 1.000000e+00 : f32
    %174 = vector.broadcast %cst_47 : f32 to vector<2x96xf32>
    %175 = arith.addf %174, %173 : vector<2x96xf32>
    %176 = arith.divf %174, %175 : vector<2x96xf32>
    %177 = vector.extract_strided_slice %170 {offsets = [0, 96], sizes = [2, 32], strides = [1, 1]} : vector<2x128xf32> to vector<2x32xf32>
    %178 = math.tanh %177 : vector<2x32xf32>
    %179 = vector.extract_strided_slice %176 {offsets = [0, 32], sizes = [2, 32], strides = [1, 1]} : vector<2x96xf32> to vector<2x32xf32>
    %180 = arith.mulf %179, %156 : vector<2x32xf32>
    %181 = vector.extract_strided_slice %176 {offsets = [0, 0], sizes = [2, 32], strides = [1, 1]} : vector<2x96xf32> to vector<2x32xf32>
    %182 = arith.mulf %181, %178 : vector<2x32xf32>
    %183 = arith.addf %180, %182 : vector<2x32xf32>
    %184 = vector.extract_strided_slice %176 {offsets = [0, 64], sizes = [2, 32], strides = [1, 1]} : vector<2x96xf32> to vector<2x32xf32>
    %185 = math.tanh %183 : vector<2x32xf32>
    %186 = arith.mulf %184, %185 : vector<2x32xf32>
    %187 = vector.extract_strided_slice %186 {offsets = [0, 0], sizes = [2, 16], strides = [1, 1]} : vector<2x32xf32> to vector<2x16xf32>
    %c10_48 = arith.constant 10 : index
    %c0_49 = arith.constant 0 : index
    %188 = vector.load %arg3[%c10_48, %c0_49] : memref<16x32xf32, #tpu.memory_space<vmem>>, vector<2x16xf32>
    tpu.vector_store %arg3[%c10_48, %c0_49], %187 {strides = array<i32>} : memref<16x32xf32, #tpu.memory_space<vmem>>, vector<2x16xf32>,
    %189 = vector.extract_strided_slice %186 {offsets = [0, 16], sizes = [2, 16], strides = [1, 1]} : vector<2x32xf32> to vector<2x16xf32>
    %c4_50 = arith.constant 4 : index
    %c16_51 = arith.constant 16 : index
    %190 = vector.load %arg3[%c4_50, %c16_51] : memref<16x32xf32, #tpu.memory_space<vmem>>, vector<2x16xf32>
    tpu.vector_store %arg3[%c4_50, %c16_51], %189 {strides = array<i32>} : memref<16x32xf32, #tpu.memory_space<vmem>>, vector<2x16xf32>,
    %191 = vector.extract_strided_slice %25 {offsets = [12, 0], sizes = [2, 128], strides = [1, 1]} : vector<16x128xf32> to vector<2x128xf32>
    %192 = vector.extract_strided_slice %26 {offsets = [2, 0], sizes = [2, 128], strides = [1, 1]} : vector<16x128xf32> to vector<2x128xf32>
    %193 = arith.addf %191, %192 : vector<2x128xf32>
    %cst_52 = arith.constant dense<0.000000e+00> : vector<2x128xf32>
    %194 = tpu.matmul %186, %6, %cst_52 {dimension_numbers = #tpu.dot_dimension_numbers<[1], [0], [0], [1], [0, 0, 1, 1], [], []>} : vector<2x32xf32>, vector<32x128xf32>, vector<2x128xf32> -> vector<2x128xf32>
    %195 = arith.addf %193, %194 : vector<2x128xf32>
    %196 = vector.broadcast %7 : vector<1x128xf32> to vector<2x128xf32>
    %197 = arith.addf %195, %196 : vector<2x128xf32>
    %198 = vector.extract_strided_slice %197 {offsets = [0, 0], sizes = [2, 96], strides = [1, 1]} : vector<2x128xf32> to vector<2x96xf32>
    %199 = arith.negf %198 : vector<2x96xf32>
    %200 = math.exp %199 : vector<2x96xf32>
    %cst_53 = arith.constant 1.000000e+00 : f32
    %201 = vector.broadcast %cst_53 : f32 to vector<2x96xf32>
    %202 = arith.addf %201, %200 : vector<2x96xf32>
    %203 = arith.divf %201, %202 : vector<2x96xf32>
    %204 = vector.extract_strided_slice %197 {offsets = [0, 96], sizes = [2, 32], strides = [1, 1]} : vector<2x128xf32> to vector<2x32xf32>
    %205 = math.tanh %204 : vector<2x32xf32>
    %206 = vector.extract_strided_slice %203 {offsets = [0, 32], sizes = [2, 32], strides = [1, 1]} : vector<2x96xf32> to vector<2x32xf32>
    %207 = arith.mulf %206, %183 : vector<2x32xf32>
    %208 = vector.extract_strided_slice %203 {offsets = [0, 0], sizes = [2, 32], strides = [1, 1]} : vector<2x96xf32> to vector<2x32xf32>
    %209 = arith.mulf %208, %205 : vector<2x32xf32>
    %210 = arith.addf %207, %209 : vector<2x32xf32>
    %211 = vector.extract_strided_slice %203 {offsets = [0, 64], sizes = [2, 32], strides = [1, 1]} : vector<2x96xf32> to vector<2x32xf32>
    %212 = math.tanh %210 : vector<2x32xf32>
    %213 = arith.mulf %211, %212 : vector<2x32xf32>
    %214 = vector.extract_strided_slice %213 {offsets = [0, 0], sizes = [2, 16], strides = [1, 1]} : vector<2x32xf32> to vector<2x16xf32>
    %c12_54 = arith.constant 12 : index
    %c0_55 = arith.constant 0 : index
    %215 = vector.load %arg3[%c12_54, %c0_55] : memref<16x32xf32, #tpu.memory_space<vmem>>, vector<2x16xf32>
    tpu.vector_store %arg3[%c12_54, %c0_55], %214 {strides = array<i32>} : memref<16x32xf32, #tpu.memory_space<vmem>>, vector<2x16xf32>,
    %216 = vector.extract_strided_slice %213 {offsets = [0, 16], sizes = [2, 16], strides = [1, 1]} : vector<2x32xf32> to vector<2x16xf32>
    %c2_56 = arith.constant 2 : index
    %c16_57 = arith.constant 16 : index
    %217 = vector.load %arg3[%c2_56, %c16_57] : memref<16x32xf32, #tpu.memory_space<vmem>>, vector<2x16xf32>
    tpu.vector_store %arg3[%c2_56, %c16_57], %216 {strides = array<i32>} : memref<16x32xf32, #tpu.memory_space<vmem>>, vector<2x16xf32>,
    %218 = vector.extract_strided_slice %25 {offsets = [14, 0], sizes = [2, 128], strides = [1, 1]} : vector<16x128xf32> to vector<2x128xf32>
    %219 = vector.extract_strided_slice %26 {offsets = [0, 0], sizes = [2, 128], strides = [1, 1]} : vector<16x128xf32> to vector<2x128xf32>
    %220 = arith.addf %218, %219 : vector<2x128xf32>
    %cst_58 = arith.constant dense<0.000000e+00> : vector<2x128xf32>
    %221 = tpu.matmul %213, %6, %cst_58 {dimension_numbers = #tpu.dot_dimension_numbers<[1], [0], [0], [1], [0, 0, 1, 1], [], []>} : vector<2x32xf32>, vector<32x128xf32>, vector<2x128xf32> -> vector<2x128xf32>
    %222 = arith.addf %220, %221 : vector<2x128xf32>
    %223 = vector.broadcast %7 : vector<1x128xf32> to vector<2x128xf32>
    %224 = arith.addf %222, %223 : vector<2x128xf32>
    %225 = vector.extract_strided_slice %224 {offsets = [0, 0], sizes = [2, 96], strides = [1, 1]} : vector<2x128xf32> to vector<2x96xf32>
    %226 = arith.negf %225 : vector<2x96xf32>
    %227 = math.exp %226 : vector<2x96xf32>
    %cst_59 = arith.constant 1.000000e+00 : f32
    %228 = vector.broadcast %cst_59 : f32 to vector<2x96xf32>
    %229 = arith.addf %228, %227 : vector<2x96xf32>
    %230 = arith.divf %228, %229 : vector<2x96xf32>
    %231 = vector.extract_strided_slice %224 {offsets = [0, 96], sizes = [2, 32], strides = [1, 1]} : vector<2x128xf32> to vector<2x32xf32>
    %232 = math.tanh %231 : vector<2x32xf32>
    %233 = vector.extract_strided_slice %230 {offsets = [0, 32], sizes = [2, 32], strides = [1, 1]} : vector<2x96xf32> to vector<2x32xf32>
    %234 = arith.mulf %233, %210 : vector<2x32xf32>
    %235 = vector.extract_strided_slice %230 {offsets = [0, 0], sizes = [2, 32], strides = [1, 1]} : vector<2x96xf32> to vector<2x32xf32>
    %236 = arith.mulf %235, %232 : vector<2x32xf32>
    %237 = arith.addf %234, %236 : vector<2x32xf32>
    %238 = vector.extract_strided_slice %230 {offsets = [0, 64], sizes = [2, 32], strides = [1, 1]} : vector<2x96xf32> to vector<2x32xf32>
    %239 = math.tanh %237 : vector<2x32xf32>
    %240 = arith.mulf %238, %239 : vector<2x32xf32>
    %241 = vector.extract_strided_slice %240 {offsets = [0, 0], sizes = [2, 16], strides = [1, 1]} : vector<2x32xf32> to vector<2x16xf32>
    %c14_60 = arith.constant 14 : index
    %c0_61 = arith.constant 0 : index
    %242 = vector.load %arg3[%c14_60, %c0_61] : memref<16x32xf32, #tpu.memory_space<vmem>>, vector<2x16xf32>
    tpu.vector_store %arg3[%c14_60, %c0_61], %241 {strides = array<i32>} : memref<16x32xf32, #tpu.memory_space<vmem>>, vector<2x16xf32>,
    %243 = vector.extract_strided_slice %240 {offsets = [0, 16], sizes = [2, 16], strides = [1, 1]} : vector<2x32xf32> to vector<2x16xf32>
    %c0_62 = arith.constant 0 : index
    %c16_63 = arith.constant 16 : index
    %244 = vector.load %arg3[%c0_62, %c16_63] : memref<16x32xf32, #tpu.memory_space<vmem>>, vector<2x16xf32>
    tpu.vector_store %arg3[%c0_62, %c16_63], %243 {strides = array<i32>} : memref<16x32xf32, #tpu.memory_space<vmem>>, vector<2x16xf32>,
    %c0_64 = arith.constant 0 : index
    %c0_65 = arith.constant 0 : index
    %245 = vector.load %arg3[%c0_64, %c0_65] : memref<16x32xf32, #tpu.memory_space<vmem>>, vector<16x32xf32>
    %cst_66 = arith.constant dense<0.000000e+00> : vector<16x128xf32>
    %246 = tpu.matmul %245, %8, %cst_66 {dimension_numbers = #tpu.dot_dimension_numbers<[1], [0], [0], [1], [0, 0, 1, 1], [], []>} : vector<16x32xf32>, vector<32x128xf32>, vector<16x128xf32> -> vector<16x128xf32>
    %cst_67 = arith.constant dense<0.000000e+00> : vector<16x128xf32>
    %247 = tpu.matmul %245, %9, %cst_67 {dimension_numbers = #tpu.dot_dimension_numbers<[1], [0], [0], [1], [0, 0, 1, 1], [], []>} : vector<16x32xf32>, vector<32x128xf32>, vector<16x128xf32> -> vector<16x128xf32>
    %cst_68 = arith.constant 0.000000e+00 : f32
    %248 = vector.broadcast %cst_68 : f32 to vector<2x32xf32>
    %cst_69 = arith.constant 0.000000e+00 : f32
    %249 = vector.broadcast %cst_69 : f32 to vector<2x32xf32>
    %250 = vector.extract_strided_slice %246 {offsets = [0, 0], sizes = [2, 128], strides = [1, 1]} : vector<16x128xf32> to vector<2x128xf32>
    %251 = vector.extract_strided_slice %247 {offsets = [14, 0], sizes = [2, 128], strides = [1, 1]} : vector<16x128xf32> to vector<2x128xf32>
    %252 = arith.addf %250, %251 : vector<2x128xf32>
    %cst_70 = arith.constant dense<0.000000e+00> : vector<2x128xf32>
    %253 = tpu.matmul %248, %10, %cst_70 {dimension_numbers = #tpu.dot_dimension_numbers<[1], [0], [0], [1], [0, 0, 1, 1], [], []>} : vector<2x32xf32>, vector<32x128xf32>, vector<2x128xf32> -> vector<2x128xf32>
    %254 = arith.addf %252, %253 : vector<2x128xf32>
    %255 = vector.broadcast %11 : vector<1x128xf32> to vector<2x128xf32>
    %256 = arith.addf %254, %255 : vector<2x128xf32>
    %257 = vector.extract_strided_slice %256 {offsets = [0, 0], sizes = [2, 96], strides = [1, 1]} : vector<2x128xf32> to vector<2x96xf32>
    %258 = arith.negf %257 : vector<2x96xf32>
    %259 = math.exp %258 : vector<2x96xf32>
    %cst_71 = arith.constant 1.000000e+00 : f32
    %260 = vector.broadcast %cst_71 : f32 to vector<2x96xf32>
    %261 = arith.addf %260, %259 : vector<2x96xf32>
    %262 = arith.divf %260, %261 : vector<2x96xf32>
    %263 = vector.extract_strided_slice %256 {offsets = [0, 96], sizes = [2, 32], strides = [1, 1]} : vector<2x128xf32> to vector<2x32xf32>
    %264 = math.tanh %263 : vector<2x32xf32>
    %265 = vector.extract_strided_slice %262 {offsets = [0, 32], sizes = [2, 32], strides = [1, 1]} : vector<2x96xf32> to vector<2x32xf32>
    %266 = arith.mulf %265, %249 : vector<2x32xf32>
    %267 = vector.extract_strided_slice %262 {offsets = [0, 0], sizes = [2, 32], strides = [1, 1]} : vector<2x96xf32> to vector<2x32xf32>
    %268 = arith.mulf %267, %264 : vector<2x32xf32>
    %269 = arith.addf %266, %268 : vector<2x32xf32>
    %270 = vector.extract_strided_slice %262 {offsets = [0, 64], sizes = [2, 32], strides = [1, 1]} : vector<2x96xf32> to vector<2x32xf32>
    %271 = math.tanh %269 : vector<2x32xf32>
    %272 = arith.mulf %270, %271 : vector<2x32xf32>
    %273 = vector.extract_strided_slice %272 {offsets = [0, 0], sizes = [1, 16], strides = [1, 1]} : vector<2x32xf32> to vector<1x16xf32>
    %c0_72 = arith.constant 0 : index
    %c0_73 = arith.constant 0 : index
    %274 = vector.load %arg4[%c0_72, %c0_73] : memref<16x32xf32, #tpu.memory_space<vmem>>, vector<1x16xf32>
    tpu.vector_store %arg4[%c0_72, %c0_73], %273 {strides = array<i32>} : memref<16x32xf32, #tpu.memory_space<vmem>>, vector<1x16xf32>,
    %275 = vector.extract_strided_slice %272 {offsets = [0, 16], sizes = [1, 16], strides = [1, 1]} : vector<2x32xf32> to vector<1x16xf32>
    %c7 = arith.constant 7 : index
    %c16_74 = arith.constant 16 : index
    %276 = vector.load %arg4[%c7, %c16_74] : memref<16x32xf32, #tpu.memory_space<vmem>>, vector<1x16xf32>
    tpu.vector_store %arg4[%c7, %c16_74], %275 {strides = array<i32>} : memref<16x32xf32, #tpu.memory_space<vmem>>, vector<1x16xf32>,
    %277 = vector.extract_strided_slice %272 {offsets = [1, 0], sizes = [1, 16], strides = [1, 1]} : vector<2x32xf32> to vector<1x16xf32>
    %c8_75 = arith.constant 8 : index
    %c0_76 = arith.constant 0 : index
    %278 = vector.load %arg4[%c8_75, %c0_76] : memref<16x32xf32, #tpu.memory_space<vmem>>, vector<1x16xf32>
    tpu.vector_store %arg4[%c8_75, %c0_76], %277 {strides = array<i32>} : memref<16x32xf32, #tpu.memory_space<vmem>>, vector<1x16xf32>,
    %279 = vector.extract_strided_slice %272 {offsets = [1, 16], sizes = [1, 16], strides = [1, 1]} : vector<2x32xf32> to vector<1x16xf32>
    %c15 = arith.constant 15 : index
    %c16_77 = arith.constant 16 : index
    %280 = vector.load %arg4[%c15, %c16_77] : memref<16x32xf32, #tpu.memory_space<vmem>>, vector<1x16xf32>
    tpu.vector_store %arg4[%c15, %c16_77], %279 {strides = array<i32>} : memref<16x32xf32, #tpu.memory_space<vmem>>, vector<1x16xf32>,
    %281 = vector.extract_strided_slice %246 {offsets = [2, 0], sizes = [2, 128], strides = [1, 1]} : vector<16x128xf32> to vector<2x128xf32>
    %282 = vector.extract_strided_slice %247 {offsets = [12, 0], sizes = [2, 128], strides = [1, 1]} : vector<16x128xf32> to vector<2x128xf32>
    %283 = arith.addf %281, %282 : vector<2x128xf32>
    %cst_78 = arith.constant dense<0.000000e+00> : vector<2x128xf32>
    %284 = tpu.matmul %272, %10, %cst_78 {dimension_numbers = #tpu.dot_dimension_numbers<[1], [0], [0], [1], [0, 0, 1, 1], [], []>} : vector<2x32xf32>, vector<32x128xf32>, vector<2x128xf32> -> vector<2x128xf32>
    %285 = arith.addf %283, %284 : vector<2x128xf32>
    %286 = vector.broadcast %11 : vector<1x128xf32> to vector<2x128xf32>
    %287 = arith.addf %285, %286 : vector<2x128xf32>
    %288 = vector.extract_strided_slice %287 {offsets = [0, 0], sizes = [2, 96], strides = [1, 1]} : vector<2x128xf32> to vector<2x96xf32>
    %289 = arith.negf %288 : vector<2x96xf32>
    %290 = math.exp %289 : vector<2x96xf32>
    %cst_79 = arith.constant 1.000000e+00 : f32
    %291 = vector.broadcast %cst_79 : f32 to vector<2x96xf32>
    %292 = arith.addf %291, %290 : vector<2x96xf32>
    %293 = arith.divf %291, %292 : vector<2x96xf32>
    %294 = vector.extract_strided_slice %287 {offsets = [0, 96], sizes = [2, 32], strides = [1, 1]} : vector<2x128xf32> to vector<2x32xf32>
    %295 = math.tanh %294 : vector<2x32xf32>
    %296 = vector.extract_strided_slice %293 {offsets = [0, 32], sizes = [2, 32], strides = [1, 1]} : vector<2x96xf32> to vector<2x32xf32>
    %297 = arith.mulf %296, %269 : vector<2x32xf32>
    %298 = vector.extract_strided_slice %293 {offsets = [0, 0], sizes = [2, 32], strides = [1, 1]} : vector<2x96xf32> to vector<2x32xf32>
    %299 = arith.mulf %298, %295 : vector<2x32xf32>
    %300 = arith.addf %297, %299 : vector<2x32xf32>
    %301 = vector.extract_strided_slice %293 {offsets = [0, 64], sizes = [2, 32], strides = [1, 1]} : vector<2x96xf32> to vector<2x32xf32>
    %302 = math.tanh %300 : vector<2x32xf32>
    %303 = arith.mulf %301, %302 : vector<2x32xf32>
    %304 = vector.extract_strided_slice %303 {offsets = [0, 0], sizes = [1, 16], strides = [1, 1]} : vector<2x32xf32> to vector<1x16xf32>
    %c1 = arith.constant 1 : index
    %c0_80 = arith.constant 0 : index
    %305 = vector.load %arg4[%c1, %c0_80] : memref<16x32xf32, #tpu.memory_space<vmem>>, vector<1x16xf32>
    tpu.vector_store %arg4[%c1, %c0_80], %304 {strides = array<i32>} : memref<16x32xf32, #tpu.memory_space<vmem>>, vector<1x16xf32>,
    %306 = vector.extract_strided_slice %303 {offsets = [0, 16], sizes = [1, 16], strides = [1, 1]} : vector<2x32xf32> to vector<1x16xf32>
    %c6_81 = arith.constant 6 : index
    %c16_82 = arith.constant 16 : index
    %307 = vector.load %arg4[%c6_81, %c16_82] : memref<16x32xf32, #tpu.memory_space<vmem>>, vector<1x16xf32>
    tpu.vector_store %arg4[%c6_81, %c16_82], %306 {strides = array<i32>} : memref<16x32xf32, #tpu.memory_space<vmem>>, vector<1x16xf32>,
    %308 = vector.extract_strided_slice %303 {offsets = [1, 0], sizes = [1, 16], strides = [1, 1]} : vector<2x32xf32> to vector<1x16xf32>
    %c9 = arith.constant 9 : index
    %c0_83 = arith.constant 0 : index
    %309 = vector.load %arg4[%c9, %c0_83] : memref<16x32xf32, #tpu.memory_space<vmem>>, vector<1x16xf32>
    tpu.vector_store %arg4[%c9, %c0_83], %308 {strides = array<i32>} : memref<16x32xf32, #tpu.memory_space<vmem>>, vector<1x16xf32>,
    %310 = vector.extract_strided_slice %303 {offsets = [1, 16], sizes = [1, 16], strides = [1, 1]} : vector<2x32xf32> to vector<1x16xf32>
    %c14_84 = arith.constant 14 : index
    %c16_85 = arith.constant 16 : index
    %311 = vector.load %arg4[%c14_84, %c16_85] : memref<16x32xf32, #tpu.memory_space<vmem>>, vector<1x16xf32>
    tpu.vector_store %arg4[%c14_84, %c16_85], %310 {strides = array<i32>} : memref<16x32xf32, #tpu.memory_space<vmem>>, vector<1x16xf32>,
    %312 = vector.extract_strided_slice %246 {offsets = [4, 0], sizes = [2, 128], strides = [1, 1]} : vector<16x128xf32> to vector<2x128xf32>
    %313 = vector.extract_strided_slice %247 {offsets = [10, 0], sizes = [2, 128], strides = [1, 1]} : vector<16x128xf32> to vector<2x128xf32>
    %314 = arith.addf %312, %313 : vector<2x128xf32>
    %cst_86 = arith.constant dense<0.000000e+00> : vector<2x128xf32>
    %315 = tpu.matmul %303, %10, %cst_86 {dimension_numbers = #tpu.dot_dimension_numbers<[1], [0], [0], [1], [0, 0, 1, 1], [], []>} : vector<2x32xf32>, vector<32x128xf32>, vector<2x128xf32> -> vector<2x128xf32>
    %316 = arith.addf %314, %315 : vector<2x128xf32>
    %317 = vector.broadcast %11 : vector<1x128xf32> to vector<2x128xf32>
    %318 = arith.addf %316, %317 : vector<2x128xf32>
    %319 = vector.extract_strided_slice %318 {offsets = [0, 0], sizes = [2, 96], strides = [1, 1]} : vector<2x128xf32> to vector<2x96xf32>
    %320 = arith.negf %319 : vector<2x96xf32>
    %321 = math.exp %320 : vector<2x96xf32>
    %cst_87 = arith.constant 1.000000e+00 : f32
    %322 = vector.broadcast %cst_87 : f32 to vector<2x96xf32>
    %323 = arith.addf %322, %321 : vector<2x96xf32>
    %324 = arith.divf %322, %323 : vector<2x96xf32>
    %325 = vector.extract_strided_slice %318 {offsets = [0, 96], sizes = [2, 32], strides = [1, 1]} : vector<2x128xf32> to vector<2x32xf32>
    %326 = math.tanh %325 : vector<2x32xf32>
    %327 = vector.extract_strided_slice %324 {offsets = [0, 32], sizes = [2, 32], strides = [1, 1]} : vector<2x96xf32> to vector<2x32xf32>
    %328 = arith.mulf %327, %300 : vector<2x32xf32>
    %329 = vector.extract_strided_slice %324 {offsets = [0, 0], sizes = [2, 32], strides = [1, 1]} : vector<2x96xf32> to vector<2x32xf32>
    %330 = arith.mulf %329, %326 : vector<2x32xf32>
    %331 = arith.addf %328, %330 : vector<2x32xf32>
    %332 = vector.extract_strided_slice %324 {offsets = [0, 64], sizes = [2, 32], strides = [1, 1]} : vector<2x96xf32> to vector<2x32xf32>
    %333 = math.tanh %331 : vector<2x32xf32>
    %334 = arith.mulf %332, %333 : vector<2x32xf32>
    %335 = vector.extract_strided_slice %334 {offsets = [0, 0], sizes = [1, 16], strides = [1, 1]} : vector<2x32xf32> to vector<1x16xf32>
    %c2_88 = arith.constant 2 : index
    %c0_89 = arith.constant 0 : index
    %336 = vector.load %arg4[%c2_88, %c0_89] : memref<16x32xf32, #tpu.memory_space<vmem>>, vector<1x16xf32>
    tpu.vector_store %arg4[%c2_88, %c0_89], %335 {strides = array<i32>} : memref<16x32xf32, #tpu.memory_space<vmem>>, vector<1x16xf32>,
    %337 = vector.extract_strided_slice %334 {offsets = [0, 16], sizes = [1, 16], strides = [1, 1]} : vector<2x32xf32> to vector<1x16xf32>
    %c5 = arith.constant 5 : index
    %c16_90 = arith.constant 16 : index
    %338 = vector.load %arg4[%c5, %c16_90] : memref<16x32xf32, #tpu.memory_space<vmem>>, vector<1x16xf32>
    tpu.vector_store %arg4[%c5, %c16_90], %337 {strides = array<i32>} : memref<16x32xf32, #tpu.memory_space<vmem>>, vector<1x16xf32>,
    %339 = vector.extract_strided_slice %334 {offsets = [1, 0], sizes = [1, 16], strides = [1, 1]} : vector<2x32xf32> to vector<1x16xf32>
    %c10_91 = arith.constant 10 : index
    %c0_92 = arith.constant 0 : index
    %340 = vector.load %arg4[%c10_91, %c0_92] : memref<16x32xf32, #tpu.memory_space<vmem>>, vector<1x16xf32>
    tpu.vector_store %arg4[%c10_91, %c0_92], %339 {strides = array<i32>} : memref<16x32xf32, #tpu.memory_space<vmem>>, vector<1x16xf32>,
    %341 = vector.extract_strided_slice %334 {offsets = [1, 16], sizes = [1, 16], strides = [1, 1]} : vector<2x32xf32> to vector<1x16xf32>
    %c13 = arith.constant 13 : index
    %c16_93 = arith.constant 16 : index
    %342 = vector.load %arg4[%c13, %c16_93] : memref<16x32xf32, #tpu.memory_space<vmem>>, vector<1x16xf32>
    tpu.vector_store %arg4[%c13, %c16_93], %341 {strides = array<i32>} : memref<16x32xf32, #tpu.memory_space<vmem>>, vector<1x16xf32>,
    %343 = vector.extract_strided_slice %246 {offsets = [6, 0], sizes = [2, 128], strides = [1, 1]} : vector<16x128xf32> to vector<2x128xf32>
    %344 = vector.extract_strided_slice %247 {offsets = [8, 0], sizes = [2, 128], strides = [1, 1]} : vector<16x128xf32> to vector<2x128xf32>
    %345 = arith.addf %343, %344 : vector<2x128xf32>
    %cst_94 = arith.constant dense<0.000000e+00> : vector<2x128xf32>
    %346 = tpu.matmul %334, %10, %cst_94 {dimension_numbers = #tpu.dot_dimension_numbers<[1], [0], [0], [1], [0, 0, 1, 1], [], []>} : vector<2x32xf32>, vector<32x128xf32>, vector<2x128xf32> -> vector<2x128xf32>
    %347 = arith.addf %345, %346 : vector<2x128xf32>
    %348 = vector.broadcast %11 : vector<1x128xf32> to vector<2x128xf32>
    %349 = arith.addf %347, %348 : vector<2x128xf32>
    %350 = vector.extract_strided_slice %349 {offsets = [0, 0], sizes = [2, 96], strides = [1, 1]} : vector<2x128xf32> to vector<2x96xf32>
    %351 = arith.negf %350 : vector<2x96xf32>
    %352 = math.exp %351 : vector<2x96xf32>
    %cst_95 = arith.constant 1.000000e+00 : f32
    %353 = vector.broadcast %cst_95 : f32 to vector<2x96xf32>
    %354 = arith.addf %353, %352 : vector<2x96xf32>
    %355 = arith.divf %353, %354 : vector<2x96xf32>
    %356 = vector.extract_strided_slice %349 {offsets = [0, 96], sizes = [2, 32], strides = [1, 1]} : vector<2x128xf32> to vector<2x32xf32>
    %357 = math.tanh %356 : vector<2x32xf32>
    %358 = vector.extract_strided_slice %355 {offsets = [0, 32], sizes = [2, 32], strides = [1, 1]} : vector<2x96xf32> to vector<2x32xf32>
    %359 = arith.mulf %358, %331 : vector<2x32xf32>
    %360 = vector.extract_strided_slice %355 {offsets = [0, 0], sizes = [2, 32], strides = [1, 1]} : vector<2x96xf32> to vector<2x32xf32>
    %361 = arith.mulf %360, %357 : vector<2x32xf32>
    %362 = arith.addf %359, %361 : vector<2x32xf32>
    %363 = vector.extract_strided_slice %355 {offsets = [0, 64], sizes = [2, 32], strides = [1, 1]} : vector<2x96xf32> to vector<2x32xf32>
    %364 = math.tanh %362 : vector<2x32xf32>
    %365 = arith.mulf %363, %364 : vector<2x32xf32>
    %366 = vector.extract_strided_slice %365 {offsets = [0, 0], sizes = [1, 16], strides = [1, 1]} : vector<2x32xf32> to vector<1x16xf32>
    %c3 = arith.constant 3 : index
    %c0_96 = arith.constant 0 : index
    %367 = vector.load %arg4[%c3, %c0_96] : memref<16x32xf32, #tpu.memory_space<vmem>>, vector<1x16xf32>
    tpu.vector_store %arg4[%c3, %c0_96], %366 {strides = array<i32>} : memref<16x32xf32, #tpu.memory_space<vmem>>, vector<1x16xf32>,
    %368 = vector.extract_strided_slice %365 {offsets = [0, 16], sizes = [1, 16], strides = [1, 1]} : vector<2x32xf32> to vector<1x16xf32>
    %c4_97 = arith.constant 4 : index
    %c16_98 = arith.constant 16 : index
    %369 = vector.load %arg4[%c4_97, %c16_98] : memref<16x32xf32, #tpu.memory_space<vmem>>, vector<1x16xf32>
    tpu.vector_store %arg4[%c4_97, %c16_98], %368 {strides = array<i32>} : memref<16x32xf32, #tpu.memory_space<vmem>>, vector<1x16xf32>,
    %370 = vector.extract_strided_slice %365 {offsets = [1, 0], sizes = [1, 16], strides = [1, 1]} : vector<2x32xf32> to vector<1x16xf32>
    %c11 = arith.constant 11 : index
    %c0_99 = arith.constant 0 : index
    %371 = vector.load %arg4[%c11, %c0_99] : memref<16x32xf32, #tpu.memory_space<vmem>>, vector<1x16xf32>
    tpu.vector_store %arg4[%c11, %c0_99], %370 {strides = array<i32>} : memref<16x32xf32, #tpu.memory_space<vmem>>, vector<1x16xf32>,
    %372 = vector.extract_strided_slice %365 {offsets = [1, 16], sizes = [1, 16], strides = [1, 1]} : vector<2x32xf32> to vector<1x16xf32>
    %c12_100 = arith.constant 12 : index
    %c16_101 = arith.constant 16 : index
    %373 = vector.load %arg4[%c12_100, %c16_101] : memref<16x32xf32, #tpu.memory_space<vmem>>, vector<1x16xf32>
    tpu.vector_store %arg4[%c12_100, %c16_101], %372 {strides = array<i32>} : memref<16x32xf32, #tpu.memory_space<vmem>>, vector<1x16xf32>,
    %374 = vector.extract_strided_slice %246 {offsets = [8, 0], sizes = [2, 128], strides = [1, 1]} : vector<16x128xf32> to vector<2x128xf32>
    %375 = vector.extract_strided_slice %247 {offsets = [6, 0], sizes = [2, 128], strides = [1, 1]} : vector<16x128xf32> to vector<2x128xf32>
    %376 = arith.addf %374, %375 : vector<2x128xf32>
    %cst_102 = arith.constant dense<0.000000e+00> : vector<2x128xf32>
    %377 = tpu.matmul %365, %10, %cst_102 {dimension_numbers = #tpu.dot_dimension_numbers<[1], [0], [0], [1], [0, 0, 1, 1], [], []>} : vector<2x32xf32>, vector<32x128xf32>, vector<2x128xf32> -> vector<2x128xf32>
    %378 = arith.addf %376, %377 : vector<2x128xf32>
    %379 = vector.broadcast %11 : vector<1x128xf32> to vector<2x128xf32>
    %380 = arith.addf %378, %379 : vector<2x128xf32>
    %381 = vector.extract_strided_slice %380 {offsets = [0, 0], sizes = [2, 96], strides = [1, 1]} : vector<2x128xf32> to vector<2x96xf32>
    %382 = arith.negf %381 : vector<2x96xf32>
    %383 = math.exp %382 : vector<2x96xf32>
    %cst_103 = arith.constant 1.000000e+00 : f32
    %384 = vector.broadcast %cst_103 : f32 to vector<2x96xf32>
    %385 = arith.addf %384, %383 : vector<2x96xf32>
    %386 = arith.divf %384, %385 : vector<2x96xf32>
    %387 = vector.extract_strided_slice %380 {offsets = [0, 96], sizes = [2, 32], strides = [1, 1]} : vector<2x128xf32> to vector<2x32xf32>
    %388 = math.tanh %387 : vector<2x32xf32>
    %389 = vector.extract_strided_slice %386 {offsets = [0, 32], sizes = [2, 32], strides = [1, 1]} : vector<2x96xf32> to vector<2x32xf32>
    %390 = arith.mulf %389, %362 : vector<2x32xf32>
    %391 = vector.extract_strided_slice %386 {offsets = [0, 0], sizes = [2, 32], strides = [1, 1]} : vector<2x96xf32> to vector<2x32xf32>
    %392 = arith.mulf %391, %388 : vector<2x32xf32>
    %393 = arith.addf %390, %392 : vector<2x32xf32>
    %394 = vector.extract_strided_slice %386 {offsets = [0, 64], sizes = [2, 32], strides = [1, 1]} : vector<2x96xf32> to vector<2x32xf32>
    %395 = math.tanh %393 : vector<2x32xf32>
    %396 = arith.mulf %394, %395 : vector<2x32xf32>
    %397 = vector.extract_strided_slice %396 {offsets = [0, 0], sizes = [1, 16], strides = [1, 1]} : vector<2x32xf32> to vector<1x16xf32>
    %c4_104 = arith.constant 4 : index
    %c0_105 = arith.constant 0 : index
    %398 = vector.load %arg4[%c4_104, %c0_105] : memref<16x32xf32, #tpu.memory_space<vmem>>, vector<1x16xf32>
    tpu.vector_store %arg4[%c4_104, %c0_105], %397 {strides = array<i32>} : memref<16x32xf32, #tpu.memory_space<vmem>>, vector<1x16xf32>,
    %399 = vector.extract_strided_slice %396 {offsets = [0, 16], sizes = [1, 16], strides = [1, 1]} : vector<2x32xf32> to vector<1x16xf32>
    %c3_106 = arith.constant 3 : index
    %c16_107 = arith.constant 16 : index
    %400 = vector.load %arg4[%c3_106, %c16_107] : memref<16x32xf32, #tpu.memory_space<vmem>>, vector<1x16xf32>
    tpu.vector_store %arg4[%c3_106, %c16_107], %399 {strides = array<i32>} : memref<16x32xf32, #tpu.memory_space<vmem>>, vector<1x16xf32>,
    %401 = vector.extract_strided_slice %396 {offsets = [1, 0], sizes = [1, 16], strides = [1, 1]} : vector<2x32xf32> to vector<1x16xf32>
    %c12_108 = arith.constant 12 : index
    %c0_109 = arith.constant 0 : index
    %402 = vector.load %arg4[%c12_108, %c0_109] : memref<16x32xf32, #tpu.memory_space<vmem>>, vector<1x16xf32>
    tpu.vector_store %arg4[%c12_108, %c0_109], %401 {strides = array<i32>} : memref<16x32xf32, #tpu.memory_space<vmem>>, vector<1x16xf32>,
    %403 = vector.extract_strided_slice %396 {offsets = [1, 16], sizes = [1, 16], strides = [1, 1]} : vector<2x32xf32> to vector<1x16xf32>
    %c11_110 = arith.constant 11 : index
    %c16_111 = arith.constant 16 : index
    %404 = vector.load %arg4[%c11_110, %c16_111] : memref<16x32xf32, #tpu.memory_space<vmem>>, vector<1x16xf32>
    tpu.vector_store %arg4[%c11_110, %c16_111], %403 {strides = array<i32>} : memref<16x32xf32, #tpu.memory_space<vmem>>, vector<1x16xf32>,
    %405 = vector.extract_strided_slice %246 {offsets = [10, 0], sizes = [2, 128], strides = [1, 1]} : vector<16x128xf32> to vector<2x128xf32>
    %406 = vector.extract_strided_slice %247 {offsets = [4, 0], sizes = [2, 128], strides = [1, 1]} : vector<16x128xf32> to vector<2x128xf32>
    %407 = arith.addf %405, %406 : vector<2x128xf32>
    %cst_112 = arith.constant dense<0.000000e+00> : vector<2x128xf32>
    %408 = tpu.matmul %396, %10, %cst_112 {dimension_numbers = #tpu.dot_dimension_numbers<[1], [0], [0], [1], [0, 0, 1, 1], [], []>} : vector<2x32xf32>, vector<32x128xf32>, vector<2x128xf32> -> vector<2x128xf32>
    %409 = arith.addf %407, %408 : vector<2x128xf32>
    %410 = vector.broadcast %11 : vector<1x128xf32> to vector<2x128xf32>
    %411 = arith.addf %409, %410 : vector<2x128xf32>
    %412 = vector.extract_strided_slice %411 {offsets = [0, 0], sizes = [2, 96], strides = [1, 1]} : vector<2x128xf32> to vector<2x96xf32>
    %413 = arith.negf %412 : vector<2x96xf32>
    %414 = math.exp %413 : vector<2x96xf32>
    %cst_113 = arith.constant 1.000000e+00 : f32
    %415 = vector.broadcast %cst_113 : f32 to vector<2x96xf32>
    %416 = arith.addf %415, %414 : vector<2x96xf32>
    %417 = arith.divf %415, %416 : vector<2x96xf32>
    %418 = vector.extract_strided_slice %411 {offsets = [0, 96], sizes = [2, 32], strides = [1, 1]} : vector<2x128xf32> to vector<2x32xf32>
    %419 = math.tanh %418 : vector<2x32xf32>
    %420 = vector.extract_strided_slice %417 {offsets = [0, 32], sizes = [2, 32], strides = [1, 1]} : vector<2x96xf32> to vector<2x32xf32>
    %421 = arith.mulf %420, %393 : vector<2x32xf32>
    %422 = vector.extract_strided_slice %417 {offsets = [0, 0], sizes = [2, 32], strides = [1, 1]} : vector<2x96xf32> to vector<2x32xf32>
    %423 = arith.mulf %422, %419 : vector<2x32xf32>
    %424 = arith.addf %421, %423 : vector<2x32xf32>
    %425 = vector.extract_strided_slice %417 {offsets = [0, 64], sizes = [2, 32], strides = [1, 1]} : vector<2x96xf32> to vector<2x32xf32>
    %426 = math.tanh %424 : vector<2x32xf32>
    %427 = arith.mulf %425, %426 : vector<2x32xf32>
    %428 = vector.extract_strided_slice %427 {offsets = [0, 0], sizes = [1, 16], strides = [1, 1]} : vector<2x32xf32> to vector<1x16xf32>
    %c5_114 = arith.constant 5 : index
    %c0_115 = arith.constant 0 : index
    %429 = vector.load %arg4[%c5_114, %c0_115] : memref<16x32xf32, #tpu.memory_space<vmem>>, vector<1x16xf32>
    tpu.vector_store %arg4[%c5_114, %c0_115], %428 {strides = array<i32>} : memref<16x32xf32, #tpu.memory_space<vmem>>, vector<1x16xf32>,
    %430 = vector.extract_strided_slice %427 {offsets = [0, 16], sizes = [1, 16], strides = [1, 1]} : vector<2x32xf32> to vector<1x16xf32>
    %c2_116 = arith.constant 2 : index
    %c16_117 = arith.constant 16 : index
    %431 = vector.load %arg4[%c2_116, %c16_117] : memref<16x32xf32, #tpu.memory_space<vmem>>, vector<1x16xf32>
    tpu.vector_store %arg4[%c2_116, %c16_117], %430 {strides = array<i32>} : memref<16x32xf32, #tpu.memory_space<vmem>>, vector<1x16xf32>,
    %432 = vector.extract_strided_slice %427 {offsets = [1, 0], sizes = [1, 16], strides = [1, 1]} : vector<2x32xf32> to vector<1x16xf32>
    %c13_118 = arith.constant 13 : index
    %c0_119 = arith.constant 0 : index
    %433 = vector.load %arg4[%c13_118, %c0_119] : memref<16x32xf32, #tpu.memory_space<vmem>>, vector<1x16xf32>
    tpu.vector_store %arg4[%c13_118, %c0_119], %432 {strides = array<i32>} : memref<16x32xf32, #tpu.memory_space<vmem>>, vector<1x16xf32>,
    %434 = vector.extract_strided_slice %427 {offsets = [1, 16], sizes = [1, 16], strides = [1, 1]} : vector<2x32xf32> to vector<1x16xf32>
    %c10_120 = arith.constant 10 : index
    %c16_121 = arith.constant 16 : index
    %435 = vector.load %arg4[%c10_120, %c16_121] : memref<16x32xf32, #tpu.memory_space<vmem>>, vector<1x16xf32>
    tpu.vector_store %arg4[%c10_120, %c16_121], %434 {strides = array<i32>} : memref<16x32xf32, #tpu.memory_space<vmem>>, vector<1x16xf32>,
    %436 = vector.extract_strided_slice %246 {offsets = [12, 0], sizes = [2, 128], strides = [1, 1]} : vector<16x128xf32> to vector<2x128xf32>
    %437 = vector.extract_strided_slice %247 {offsets = [2, 0], sizes = [2, 128], strides = [1, 1]} : vector<16x128xf32> to vector<2x128xf32>
    %438 = arith.addf %436, %437 : vector<2x128xf32>
    %cst_122 = arith.constant dense<0.000000e+00> : vector<2x128xf32>
    %439 = tpu.matmul %427, %10, %cst_122 {dimension_numbers = #tpu.dot_dimension_numbers<[1], [0], [0], [1], [0, 0, 1, 1], [], []>} : vector<2x32xf32>, vector<32x128xf32>, vector<2x128xf32> -> vector<2x128xf32>
    %440 = arith.addf %438, %439 : vector<2x128xf32>
    %441 = vector.broadcast %11 : vector<1x128xf32> to vector<2x128xf32>
    %442 = arith.addf %440, %441 : vector<2x128xf32>
    %443 = vector.extract_strided_slice %442 {offsets = [0, 0], sizes = [2, 96], strides = [1, 1]} : vector<2x128xf32> to vector<2x96xf32>
    %444 = arith.negf %443 : vector<2x96xf32>
    %445 = math.exp %444 : vector<2x96xf32>
    %cst_123 = arith.constant 1.000000e+00 : f32
    %446 = vector.broadcast %cst_123 : f32 to vector<2x96xf32>
    %447 = arith.addf %446, %445 : vector<2x96xf32>
    %448 = arith.divf %446, %447 : vector<2x96xf32>
    %449 = vector.extract_strided_slice %442 {offsets = [0, 96], sizes = [2, 32], strides = [1, 1]} : vector<2x128xf32> to vector<2x32xf32>
    %450 = math.tanh %449 : vector<2x32xf32>
    %451 = vector.extract_strided_slice %448 {offsets = [0, 32], sizes = [2, 32], strides = [1, 1]} : vector<2x96xf32> to vector<2x32xf32>
    %452 = arith.mulf %451, %424 : vector<2x32xf32>
    %453 = vector.extract_strided_slice %448 {offsets = [0, 0], sizes = [2, 32], strides = [1, 1]} : vector<2x96xf32> to vector<2x32xf32>
    %454 = arith.mulf %453, %450 : vector<2x32xf32>
    %455 = arith.addf %452, %454 : vector<2x32xf32>
    %456 = vector.extract_strided_slice %448 {offsets = [0, 64], sizes = [2, 32], strides = [1, 1]} : vector<2x96xf32> to vector<2x32xf32>
    %457 = math.tanh %455 : vector<2x32xf32>
    %458 = arith.mulf %456, %457 : vector<2x32xf32>
    %459 = vector.extract_strided_slice %458 {offsets = [0, 0], sizes = [1, 16], strides = [1, 1]} : vector<2x32xf32> to vector<1x16xf32>
    %c6_124 = arith.constant 6 : index
    %c0_125 = arith.constant 0 : index
    %460 = vector.load %arg4[%c6_124, %c0_125] : memref<16x32xf32, #tpu.memory_space<vmem>>, vector<1x16xf32>
    tpu.vector_store %arg4[%c6_124, %c0_125], %459 {strides = array<i32>} : memref<16x32xf32, #tpu.memory_space<vmem>>, vector<1x16xf32>,
    %461 = vector.extract_strided_slice %458 {offsets = [0, 16], sizes = [1, 16], strides = [1, 1]} : vector<2x32xf32> to vector<1x16xf32>
    %c1_126 = arith.constant 1 : index
    %c16_127 = arith.constant 16 : index
    %462 = vector.load %arg4[%c1_126, %c16_127] : memref<16x32xf32, #tpu.memory_space<vmem>>, vector<1x16xf32>
    tpu.vector_store %arg4[%c1_126, %c16_127], %461 {strides = array<i32>} : memref<16x32xf32, #tpu.memory_space<vmem>>, vector<1x16xf32>,
    %463 = vector.extract_strided_slice %458 {offsets = [1, 0], sizes = [1, 16], strides = [1, 1]} : vector<2x32xf32> to vector<1x16xf32>
    %c14_128 = arith.constant 14 : index
    %c0_129 = arith.constant 0 : index
    %464 = vector.load %arg4[%c14_128, %c0_129] : memref<16x32xf32, #tpu.memory_space<vmem>>, vector<1x16xf32>
    tpu.vector_store %arg4[%c14_128, %c0_129], %463 {strides = array<i32>} : memref<16x32xf32, #tpu.memory_space<vmem>>, vector<1x16xf32>,
    %465 = vector.extract_strided_slice %458 {offsets = [1, 16], sizes = [1, 16], strides = [1, 1]} : vector<2x32xf32> to vector<1x16xf32>
    %c9_130 = arith.constant 9 : index
    %c16_131 = arith.constant 16 : index
    %466 = vector.load %arg4[%c9_130, %c16_131] : memref<16x32xf32, #tpu.memory_space<vmem>>, vector<1x16xf32>
    tpu.vector_store %arg4[%c9_130, %c16_131], %465 {strides = array<i32>} : memref<16x32xf32, #tpu.memory_space<vmem>>, vector<1x16xf32>,
    %467 = vector.extract_strided_slice %246 {offsets = [14, 0], sizes = [2, 128], strides = [1, 1]} : vector<16x128xf32> to vector<2x128xf32>
    %468 = vector.extract_strided_slice %247 {offsets = [0, 0], sizes = [2, 128], strides = [1, 1]} : vector<16x128xf32> to vector<2x128xf32>
    %469 = arith.addf %467, %468 : vector<2x128xf32>
    %cst_132 = arith.constant dense<0.000000e+00> : vector<2x128xf32>
    %470 = tpu.matmul %458, %10, %cst_132 {dimension_numbers = #tpu.dot_dimension_numbers<[1], [0], [0], [1], [0, 0, 1, 1], [], []>} : vector<2x32xf32>, vector<32x128xf32>, vector<2x128xf32> -> vector<2x128xf32>
    %471 = arith.addf %469, %470 : vector<2x128xf32>
    %472 = vector.broadcast %11 : vector<1x128xf32> to vector<2x128xf32>
    %473 = arith.addf %471, %472 : vector<2x128xf32>
    %474 = vector.extract_strided_slice %473 {offsets = [0, 0], sizes = [2, 96], strides = [1, 1]} : vector<2x128xf32> to vector<2x96xf32>
    %475 = arith.negf %474 : vector<2x96xf32>
    %476 = math.exp %475 : vector<2x96xf32>
    %cst_133 = arith.constant 1.000000e+00 : f32
    %477 = vector.broadcast %cst_133 : f32 to vector<2x96xf32>
    %478 = arith.addf %477, %476 : vector<2x96xf32>
    %479 = arith.divf %477, %478 : vector<2x96xf32>
    %480 = vector.extract_strided_slice %473 {offsets = [0, 96], sizes = [2, 32], strides = [1, 1]} : vector<2x128xf32> to vector<2x32xf32>
    %481 = math.tanh %480 : vector<2x32xf32>
    %482 = vector.extract_strided_slice %479 {offsets = [0, 32], sizes = [2, 32], strides = [1, 1]} : vector<2x96xf32> to vector<2x32xf32>
    %483 = arith.mulf %482, %455 : vector<2x32xf32>
    %484 = vector.extract_strided_slice %479 {offsets = [0, 0], sizes = [2, 32], strides = [1, 1]} : vector<2x96xf32> to vector<2x32xf32>
    %485 = arith.mulf %484, %481 : vector<2x32xf32>
    %486 = arith.addf %483, %485 : vector<2x32xf32>
    %487 = vector.extract_strided_slice %479 {offsets = [0, 64], sizes = [2, 32], strides = [1, 1]} : vector<2x96xf32> to vector<2x32xf32>
    %488 = math.tanh %486 : vector<2x32xf32>
    %489 = arith.mulf %487, %488 : vector<2x32xf32>
    %490 = vector.extract_strided_slice %489 {offsets = [0, 0], sizes = [1, 16], strides = [1, 1]} : vector<2x32xf32> to vector<1x16xf32>
    %c7_134 = arith.constant 7 : index
    %c0_135 = arith.constant 0 : index
    %491 = vector.load %arg4[%c7_134, %c0_135] : memref<16x32xf32, #tpu.memory_space<vmem>>, vector<1x16xf32>
    tpu.vector_store %arg4[%c7_134, %c0_135], %490 {strides = array<i32>} : memref<16x32xf32, #tpu.memory_space<vmem>>, vector<1x16xf32>,
    %492 = vector.extract_strided_slice %489 {offsets = [0, 16], sizes = [1, 16], strides = [1, 1]} : vector<2x32xf32> to vector<1x16xf32>
    %c0_136 = arith.constant 0 : index
    %c16_137 = arith.constant 16 : index
    %493 = vector.load %arg4[%c0_136, %c16_137] : memref<16x32xf32, #tpu.memory_space<vmem>>, vector<1x16xf32>
    tpu.vector_store %arg4[%c0_136, %c16_137], %492 {strides = array<i32>} : memref<16x32xf32, #tpu.memory_space<vmem>>, vector<1x16xf32>,
    %494 = vector.extract_strided_slice %489 {offsets = [1, 0], sizes = [1, 16], strides = [1, 1]} : vector<2x32xf32> to vector<1x16xf32>
    %c15_138 = arith.constant 15 : index
    %c0_139 = arith.constant 0 : index
    %495 = vector.load %arg4[%c15_138, %c0_139] : memref<16x32xf32, #tpu.memory_space<vmem>>, vector<1x16xf32>
    tpu.vector_store %arg4[%c15_138, %c0_139], %494 {strides = array<i32>} : memref<16x32xf32, #tpu.memory_space<vmem>>, vector<1x16xf32>,
    %496 = vector.extract_strided_slice %489 {offsets = [1, 16], sizes = [1, 16], strides = [1, 1]} : vector<2x32xf32> to vector<1x16xf32>
    %c8_140 = arith.constant 8 : index
    %c16_141 = arith.constant 16 : index
    %497 = vector.load %arg4[%c8_140, %c16_141] : memref<16x32xf32, #tpu.memory_space<vmem>>, vector<1x16xf32>
    tpu.vector_store %arg4[%c8_140, %c16_141], %496 {strides = array<i32>} : memref<16x32xf32, #tpu.memory_space<vmem>>, vector<1x16xf32>,
    %c0_142 = arith.constant 0 : index
    %c0_143 = arith.constant 0 : index
    %498 = vector.load %arg4[%c0_142, %c0_143] : memref<16x32xf32, #tpu.memory_space<vmem>>, vector<8x32xf32>
    %cst_144 = arith.constant 0.176776692 : f32
    %499 = vector.broadcast %cst_144 : f32 to vector<8x32xf32>
    %500 = arith.mulf %498, %499 : vector<8x32xf32>
    %cst_145 = arith.constant dense<0.000000e+00> : vector<8x8xf32>
    %501 = tpu.matmul %500, %498, %cst_145 {dimension_numbers = #tpu.dot_dimension_numbers<[1], [1], [0], [0], [0, 0, 1, 0], [], []>} : vector<8x32xf32>, vector<8x32xf32>, vector<8x8xf32> -> vector<8x8xf32>
    %cst_146 = arith.constant dense<0xFF800000> : vector<8xf32>
    %502 = vector.multi_reduction <maximumf>, %501, %cst_146 [1] : vector<8x8xf32> to vector<8xf32>
    %503 = vector.shape_cast %502 : vector<8xf32> to vector<8x1xf32>
    %504 = vector.broadcast %503 : vector<8x1xf32> to vector<8x8xf32>
    %505 = arith.subf %501, %504 : vector<8x8xf32>
    %506 = math.exp %505 : vector<8x8xf32>
    %cst_147 = arith.constant dense<0.000000e+00> : vector<8xf32>
    %507 = vector.multi_reduction <add>, %506, %cst_147 [1] : vector<8x8xf32> to vector<8xf32>
    %508 = vector.shape_cast %507 : vector<8xf32> to vector<8x1xf32>
    %509 = vector.broadcast %508 : vector<8x1xf32> to vector<8x8xf32>
    %510 = arith.divf %506, %509 : vector<8x8xf32>
    %cst_148 = arith.constant dense<0.000000e+00> : vector<8x32xf32>
    %511 = tpu.matmul %510, %498, %cst_148 {dimension_numbers = #tpu.dot_dimension_numbers<[1], [0], [0], [1], [0, 0, 1, 1], [], []>} : vector<8x8xf32>, vector<8x32xf32>, vector<8x32xf32> -> vector<8x32xf32>
    %cst_149 = arith.constant dense<0.000000e+00> : vector<8x8xf32>
    %512 = tpu.matmul %511, %12, %cst_149 {dimension_numbers = #tpu.dot_dimension_numbers<[1], [0], [0], [1], [0, 0, 1, 1], [], []>} : vector<8x32xf32>, vector<32x8xf32>, vector<8x8xf32> -> vector<8x8xf32>
    %513 = vector.broadcast %13 : vector<1x8xf32> to vector<8x8xf32>
    %514 = arith.addf %512, %513 : vector<8x8xf32>
    %c0_150 = arith.constant 0 : index
    %c0_151 = arith.constant 0 : index
    %c0_152 = arith.constant 0 : index
    %515 = vector.load %arg2[%c0_150, %c0_151, %c0_152] : memref<2x8x8xf32, #tpu.memory_space<vmem>>, vector<1x8x8xf32>
    %516 = vector.shape_cast %515 : vector<1x8x8xf32> to vector<8x8xf32>
    %517 = vector.shape_cast %514 : vector<8x8xf32> to vector<1x8x8xf32>
    tpu.vector_store %arg2[%c0_150, %c0_151, %c0_152], %517 {strides = array<i32>} : memref<2x8x8xf32, #tpu.memory_space<vmem>>, vector<1x8x8xf32>,
    %c8_153 = arith.constant 8 : index
    %c0_154 = arith.constant 0 : index
    %518 = vector.load %arg4[%c8_153, %c0_154] : memref<16x32xf32, #tpu.memory_space<vmem>>, vector<8x32xf32>
    %cst_155 = arith.constant 0.176776692 : f32
    %519 = vector.broadcast %cst_155 : f32 to vector<8x32xf32>
    %520 = arith.mulf %518, %519 : vector<8x32xf32>
    %cst_156 = arith.constant dense<0.000000e+00> : vector<8x8xf32>
    %521 = tpu.matmul %520, %518, %cst_156 {dimension_numbers = #tpu.dot_dimension_numbers<[1], [1], [0], [0], [0, 0, 1, 0], [], []>} : vector<8x32xf32>, vector<8x32xf32>, vector<8x8xf32> -> vector<8x8xf32>
    %cst_157 = arith.constant dense<0xFF800000> : vector<8xf32>
    %522 = vector.multi_reduction <maximumf>, %521, %cst_157 [1] : vector<8x8xf32> to vector<8xf32>
    %523 = vector.shape_cast %522 : vector<8xf32> to vector<8x1xf32>
    %524 = vector.broadcast %523 : vector<8x1xf32> to vector<8x8xf32>
    %525 = arith.subf %521, %524 : vector<8x8xf32>
    %526 = math.exp %525 : vector<8x8xf32>
    %cst_158 = arith.constant dense<0.000000e+00> : vector<8xf32>
    %527 = vector.multi_reduction <add>, %526, %cst_158 [1] : vector<8x8xf32> to vector<8xf32>
    %528 = vector.shape_cast %527 : vector<8xf32> to vector<8x1xf32>
    %529 = vector.broadcast %528 : vector<8x1xf32> to vector<8x8xf32>
    %530 = arith.divf %526, %529 : vector<8x8xf32>
    %cst_159 = arith.constant dense<0.000000e+00> : vector<8x32xf32>
    %531 = tpu.matmul %530, %518, %cst_159 {dimension_numbers = #tpu.dot_dimension_numbers<[1], [0], [0], [1], [0, 0, 1, 1], [], []>} : vector<8x8xf32>, vector<8x32xf32>, vector<8x32xf32> -> vector<8x32xf32>
    %cst_160 = arith.constant dense<0.000000e+00> : vector<8x8xf32>
    %532 = tpu.matmul %531, %12, %cst_160 {dimension_numbers = #tpu.dot_dimension_numbers<[1], [0], [0], [1], [0, 0, 1, 1], [], []>} : vector<8x32xf32>, vector<32x8xf32>, vector<8x8xf32> -> vector<8x8xf32>
    %533 = vector.broadcast %13 : vector<1x8xf32> to vector<8x8xf32>
    %534 = arith.addf %532, %533 : vector<8x8xf32>
    %c1_161 = arith.constant 1 : index
    %c0_162 = arith.constant 0 : index
    %c0_163 = arith.constant 0 : index
    %535 = vector.load %arg2[%c1_161, %c0_162, %c0_163] : memref<2x8x8xf32, #tpu.memory_space<vmem>>, vector<1x8x8xf32>
    %536 = vector.shape_cast %535 : vector<1x8x8xf32> to vector<8x8xf32>
    %537 = vector.shape_cast %534 : vector<8x8xf32> to vector<1x8x8xf32>
    tpu.vector_store %arg2[%c1_161, %c0_162, %c0_163], %537 {strides = array<i32>} : memref<2x8x8xf32, #tpu.memory_space<vmem>>, vector<1x8x8xf32>,
    return
  }
}

</mosaic_0001>

<llo_original>
// kernel: _lambda_.1
$region0: #{_lambda_.1}
  #allocation0 [shape = 'u32[]', space=smem, size = 0x4, offset = 0x4, fixed_abs, tag = 'smem constant byte address 0x4 - core index']
  #allocation1 [shape = 'u32[144,128]{1,0:T(1,128)}', space=vmem, size = 0x12000, scoped, tag = 'internal scratch']
  #allocation2 [shape = 'f32[16,32]{1,0:T(8,128)}', space=vmem, size = 0x2000, scoped, tag = 'scratch operand']
  #allocation3 [shape = 'f32[16,32]{1,0:T(8,128)}', space=vmem, size = 0x2000, scoped, tag = 'scratch operand']
  %s0 = inlined_call_operand.vmem [shape: f32[16,16], index: 0, kind: input, shape index: {}]
  %s1 = inlined_call_operand.hbm [shape: f32[312,128], index: 1, kind: input, shape index: {}]
  %s2 = inlined_call_operand.hbm [shape: f32[2,8,8], index: 2, kind: output, shape index: {}]
  %s3 = sld [smem:[#allocation0]]
  $region22: #{_lambda_.1} parent=0
    _
  %s5 = ssub.s32 1, %s3
  %s6 = scalar_select 0, %s5, %s3
  $region1: #{_lambda_.1} parent=0
    #allocation4 [shape = 'u8[159744]{0}', space=vmem, size = 0x27000, scoped, tag = 'input window, operand 1, single buffered']
    #allocation5 [shape = 's32[1]{0}', space=sflag, size = 0x4, scoped, tag = 'scoped memory for _lambda_.1']
    #allocation6 [shape = 's32[1]{0}', space=sflag, size = 0x4, scoped, tag = 'scoped memory for _lambda_.1']
    #allocation7 [shape = 'u8[8192]{0}', space=vmem, size = 0x2000, scoped, tag = 'output window, operand 0, single buffered']
    %7 = vsyncpa [#allocation5], 0
    %8 = vsyncpa [#allocation6], 0
    // Predicated region
    $region2: #{_lambda_.1} parent=1 // pred_check
      _
    $region3: #{_lambda_.1} parent=1 // pred_check_branch
      %10 = sbr.rel (0) target = $region5
    $region4: #{_lambda_.1} parent=1 // pred_region
      _
    $region5: #{_lambda_.1} parent=1 // pred_fallthru
      _
    // Predicated region
    $region6: #{_lambda_.1} parent=1 // pred_check
      _
    $region7: #{_lambda_.1} parent=1 // pred_check_branch
      %12 = sbr.rel (0) target = $region9
    $region8: #{_lambda_.1} parent=1 // pred_region
      %s14 = ssub.s32 4992, 4992
      %15 = vsyncadd [#allocation5], %s14
      %s16 = sshll.u32 [#allocation4], 4
      %s17 = int_to_ptr.vmem [resolvable:$true] %s16
      %22 = dma.hbm_to_vmem [thread:$0]  %s1, 4992, %s17, [#allocation5], 128, 128, 8
    $region9: #{_lambda_.1} parent=1 // pred_fallthru
      _
    // Predicated region
    $region10: #{_lambda_.1} parent=1 // pred_check
      _
    $region11: #{_lambda_.1} parent=1 // pred_check_branch
      %24 = sbr.rel (0) target = $region13
    $region12: #{_lambda_.1} parent=1 // pred_region
      %25 = dma.done [#allocation5], 4992
    $region13: #{_lambda_.1} parent=1 // pred_fallthru
      _
    %v26 = vld [vmem:[#allocation4] sm:$0xff]
    %v27 = vld [vmem:[#allocation4 + $0x8] sm:$0xff]
    %v28 = vld [vmem:[#allocation4 + $0x10] sm:$0x1]
    %v29 = vld [vmem:[#allocation4 + $0x18] sm:$0xff]
    %v30 = vld [vmem:[#allocation4 + $0x20] sm:$0xff]
    %v31 = vld [vmem:[#allocation4 + $0x28] sm:$0xff]
    %v32 = vld [vmem:[#allocation4 + $0x30] sm:$0xff]
    %v33 = vld [vmem:[#allocation4 + $0x38] sm:$0x1]
    %v34 = vld [vmem:[#allocation4 + $0x40] sm:$0xff]
    %v35 = vld [vmem:[#allocation4 + $0x48] sm:$0xff]
    %v36 = vld [vmem:[#allocation4 + $0x50] sm:$0xff]
    %v37 = vld [vmem:[#allocation4 + $0x58] sm:$0xff]
    %v38 = vld [vmem:[#allocation4 + $0x60] sm:$0xff]
    %v39 = vld [vmem:[#allocation4 + $0x68] sm:$0xff]
    %v40 = vld [vmem:[#allocation4 + $0x70] sm:$0xff]
    %v41 = vld [vmem:[#allocation4 + $0x78] sm:$0xff]
    %v42 = vld [vmem:[#allocation4 + $0x80] sm:$0xff]
    %v43 = vld [vmem:[#allocation4 + $0x88] sm:$0xff]
    %v44 = vld [vmem:[#allocation4 + $0x90] sm:$0xff]
    %v45 = vld [vmem:[#allocation4 + $0x98] sm:$0xff]
    %v46 = vld [vmem:[#allocation4 + $0xa0] sm:$0x1]
    %v47 = vld [vmem:[#allocation4 + $0xa8] sm:$0xff]
    %v48 = vld [vmem:[#allocation4 + $0xb0] sm:$0xff]
    %v49 = vld [vmem:[#allocation4 + $0xb8] sm:$0xff]
    %v50 = vld [vmem:[#allocation4 + $0xc0] sm:$0xff]
    %v51 = vld [vmem:[#allocation4 + $0xc8] sm:$0xff]
    %v52 = vld [vmem:[#allocation4 + $0xd0] sm:$0xff]
    %v53 = vld [vmem:[#allocation4 + $0xd8] sm:$0xff]
    %v54 = vld [vmem:[#allocation4 + $0xe0] sm:$0xff]
    %v55 = vld [vmem:[#allocation4 + $0xe8] sm:$0xff]
    %v56 = vld [vmem:[#allocation4 + $0xf0] sm:$0xff]
    %v57 = vld [vmem:[#allocation4 + $0xf8] sm:$0xff]
    %v58 = vld [vmem:[#allocation4 + $0x100] sm:$0xff]
    %v59 = vld [vmem:[#allocation4 + $0x108] sm:$0x1]
    %v60 = vld [vmem:[#allocation4 + $0x110] sm:$0xff]
    %v61 = vld [vmem:[#allocation4 + $0x118] sm:$0xff]
    %v62 = vld [vmem:[#allocation4 + $0x120] sm:$0xff]
    %v63 = vld [vmem:[#allocation4 + $0x128] sm:$0xff]
    %v64 = vld [vmem:[#allocation4 + $0x130] sm:$0x1]
    %v65 = vld [vmem:[%s0] sm:$0xff]
    %v66 = vld [vmem:[%s0 + $0x8] sm:$0xff]
    %v67 = vlaneseq
    %v68 = vshrl.u32 %v67, 7
    %v69 = vsub.s32 0, %v68
    %v70 = vrot.slane %v28, %v69
    %vm71 = vcmask 130048
    %v73 = vsel %vm71, %v65, 0
    %v76 = vsel %vm71, %v66, 0
    %78 = vmatprep.subr.mxu0 0.0
    %79 = vmatpush1.msra.mxu0 %v26
    %80 = vmatprep.subr.mxu0 0.0
    %81 = vmatpush1.msra.mxu0 %v27
    %82 = vmatprep.subr.mxu0 0.0
    %83 = vmatpush1.msra.mxu0 0.0
    %84 = vmatprep.subr.mxu0 0.0
    %85 = vmatpush1.msra.mxu0 0.0
    %86 = vmatprep.subr.mxu0 0.0
    %87 = vmatpush1.msra.mxu0 0.0
    %88 = vmatprep.subr.mxu0 0.0
    %89 = vmatpush1.msra.mxu0 0.0
    %90 = vmatprep.subr.mxu0 0.0
    %91 = vmatpush1.msra.mxu0 0.0
    %92 = vmatprep.subr.mxu0 0.0
    %93 = vmatpush1.msra.mxu0 0.0
    %94 = vmatprep.subr.mxu0 0.0
    %95 = vmatpush1.msra.mxu0 0.0
    %96 = vmatprep.subr.mxu0 0.0
    %97 = vmatpush1.msra.mxu0 0.0
    %98 = vmatprep.subr.mxu0 0.0
    %99 = vmatpush1.msra.mxu0 0.0
    %100 = vmatprep.subr.mxu0 0.0
    %101 = vmatpush1.msra.mxu0 0.0
    %102 = vmatprep.subr.mxu0 0.0
    %103 = vmatpush1.msra.mxu0 0.0
    %104 = vmatprep.subr.mxu0 0.0
    %105 = vmatpush1.msra.mxu0 0.0
    %106 = vmatprep.subr.mxu0 0.0
    %107 = vmatpush1.msra.mxu0 0.0
    %108 = vmatprep.subr.mxu0 0.0
    %109 = vmatpush1.msra.mxu0 0.0
    %110 = vmatprep.subr.mxu0 0.0
    %111 = vmatpush1.msra.mxu0 0.0
    %112 = vmatprep.subr.mxu0 0.0
    %113 = vmatpush1.msra.mxu0 0.0
    %114 = vmatprep.subr.mxu0 0.0
    %115 = vmatpush1.msra.mxu0 0.0
    %116 = vmatprep.subr.mxu0 0.0
    %117 = vmatpush1.msra.mxu0 0.0
    %118 = vmatprep.subr.mxu0 0.0
    %119 = vmatpush1.msra.mxu0 0.0
    %120 = vmatprep.subr.mxu0 0.0
    %121 = vmatpush1.msra.mxu0 0.0
    %122 = vmatprep.subr.mxu0 0.0
    %123 = vmatpush1.msra.mxu0 0.0
    %124 = vmatprep.subr.mxu0 0.0
    %125 = vmatpush1.msra.mxu0 0.0
    %126 = vmatprep.subr.mxu0 0.0
    %127 = vmatpush1.msra.mxu0 0.0
    %128 = vmatprep.subr.mxu0 0.0
    %129 = vmatpush1.msra.mxu0 0.0
    %130 = vmatprep.subr.mxu0 0.0
    %131 = vmatpush1.msra.mxu0 0.0
    %132 = vmatprep.subr.mxu0 0.0
    %133 = vmatpush1.msra.mxu0 0.0
    %134 = vmatprep.subr.mxu0 0.0
    %135 = vmatpush1.msra.mxu0 0.0
    %136 = vmatprep.subr.mxu0 0.0
    %137 = vmatpush1.msra.mxu0 0.0
    %138 = vmatprep.subr.mxu0 0.0
    %139 = vmatpush1.msra.mxu0 0.0
    %140 = vmatprep.subr.mxu0 0.0
    %141 = vmatpush1.msra.mxu0 0.0
    %142 = vmatprep.mubr.f32.mxu0 0.0
    %143 = vmatmul.mubr.f32.gmra.mrb[0].mxu0 %v73
    %v144 = vpop.f32.mrb[0].mxu0
    %v145 = vadd.f32 %v70, %v144
    %v146 = vpop.f32.mrb[0].mxu0
    %147 = vmatprep.mubr.f32.mxu0 0.0
    %148 = vmatmul.mubr.f32.gmra.mrb[0].mxu0 %v76
    %v149 = vpop.f32.mrb[0].mxu0
    %v150 = vadd.f32 %v70, %v149
    %v151 = vpop.f32.mrb[0].mxu0
    %152 = vdwg.mxu0
    %v153 = vmax.f32 %v145, 0.0
    %v154 = vmax.f32 %v150, 0.0
    %v155 = vlaneseq
    %v156 = vshrl.u32 %v155, 7
    %v157 = vsub.s32 0, %v156
    %v158 = vrot.slane %v33, %v157
    %vm159 = vcmask 261120
    %v161 = vsel %vm159, %v153, 0
    %v164 = vsel %vm159, %v154, 0
    %166 = vmatprep.subr.mxu0 0.0
    %167 = vmatpush1.msra.mxu0 %v29
    %168 = vmatprep.subr.mxu0 0.0
    %169 = vmatpush1.msra.mxu0 %v30
    %170 = vmatprep.subr.mxu0 0.0
    %171 = vmatpush1.msra.mxu0 %v31
    %172 = vmatprep.subr.mxu0 0.0
    %173 = vmatpush1.msra.mxu0 %v32
    %174 = vmatprep.subr.mxu0 0.0
    %175 = vmatpush1.msra.mxu0 0.0
    %176 = vmatprep.subr.mxu0 0.0
    %177 = vmatpush1.msra.mxu0 0.0
    %178 = vmatprep.subr.mxu0 0.0
    %179 = vmatpush1.msra.mxu0 0.0
    %180 = vmatprep.subr.mxu0 0.0
    %181 = vmatpush1.msra.mxu0 0.0
    %182 = vmatprep.subr.mxu0 0.0
    %183 = vmatpush1.msra.mxu0 0.0
    %184 = vmatprep.subr.mxu0 0.0
    %185 = vmatpush1.msra.mxu0 0.0
    %186 = vmatprep.subr.mxu0 0.0
    %187 = vmatpush1.msra.mxu0 0.0
    %188 = vmatprep.subr.mxu0 0.0
    %189 = vmatpush1.msra.mxu0 0.0
    %190 = vmatprep.subr.mxu0 0.0
    %191 = vmatpush1.msra.mxu0 0.0
    %192 = vmatprep.subr.mxu0 0.0
    %193 = vmatpush1.msra.mxu0 0.0
    %194 = vmatprep.subr.mxu0 0.0
    %195 = vmatpush1.msra.mxu0 0.0
    %196 = vmatprep.subr.mxu0 0.0
    %197 = vmatpush1.msra.mxu0 0.0
    %198 = vmatprep.subr.mxu0 0.0
    %199 = vmatpush1.msra.mxu0 0.0
    %200 = vmatprep.subr.mxu0 0.0
    %201 = vmatpush1.msra.mxu0 0.0
    %202 = vmatprep.subr.mxu0 0.0
    %203 = vmatpush1.msra.mxu0 0.0
    %204 = vmatprep.subr.mxu0 0.0
    %205 = vmatpush1.msra.mxu0 0.0
    %206 = vmatprep.subr.mxu0 0.0
    %207 = vmatpush1.msra.mxu0 0.0
    %208 = vmatprep.subr.mxu0 0.0
    %209 = vmatpush1.msra.mxu0 0.0
    %210 = vmatprep.subr.mxu0 0.0
    %211 = vmatpush1.msra.mxu0 0.0
    %212 = vmatprep.subr.mxu0 0.0
    %213 = vmatpush1.msra.mxu0 0.0
    %214 = vmatprep.subr.mxu0 0.0
    %215 = vmatpush1.msra.mxu0 0.0
    %216 = vmatprep.subr.mxu0 0.0
    %217 = vmatpush1.msra.mxu0 0.0
    %218 = vmatprep.subr.mxu0 0.0
    %219 = vmatpush1.msra.mxu0 0.0
    %220 = vmatprep.subr.mxu0 0.0
    %221 = vmatpush1.msra.mxu0 0.0
    %222 = vmatprep.subr.mxu0 0.0
    %223 = vmatpush1.msra.mxu0 0.0
    %224 = vmatprep.subr.mxu0 0.0
    %225 = vmatpush1.msra.mxu0 0.0
    %226 = vmatprep.subr.mxu0 0.0
    %227 = vmatpush1.msra.mxu0 0.0
    %228 = vmatprep.subr.mxu0 0.0
    %229 = vmatpush1.msra.mxu0 0.0
    %230 = vmatprep.mubr.f32.mxu0 0.0
    %231 = vmatmul.mubr.f32.gmra.mrb[0].mxu0 %v161
    %v232 = vpop.f32.mrb[0].mxu0
    %v233 = vadd.f32 %v158, %v232
    %v234 = vpop.f32.mrb[0].mxu0
    %235 = vmatprep.mubr.f32.mxu0 0.0
    %236 = vmatmul.mubr.f32.gmra.mrb[0].mxu0 %v164
    %v237 = vpop.f32.mrb[0].mxu0
    %v238 = vadd.f32 %v158, %v237
    %v239 = vpop.f32.mrb[0].mxu0
    %240 = vdwg.mxu0
    %v241 = vmax.f32 %v233, 0.0
    %v242 = vmax.f32 %v238, 0.0
    %v244 = vsel %vm159, %v241, 0
    %v247 = vsel %vm159, %v242, 0
    %249 = vmatprep.subr.mxu0 0.0
    %250 = vmatpush1.msra.mxu0 %v34
    %251 = vmatprep.subr.mxu0 0.0
    %252 = vmatpush1.msra.mxu0 %v35
    %253 = vmatprep.subr.mxu0 0.0
    %254 = vmatpush1.msra.mxu0 %v36
    %255 = vmatprep.subr.mxu0 0.0
    %256 = vmatpush1.msra.mxu0 %v37
    %257 = vmatprep.subr.mxu0 0.0
    %258 = vmatpush1.msra.mxu0 0.0
    %259 = vmatprep.subr.mxu0 0.0
    %260 = vmatpush1.msra.mxu0 0.0
    %261 = vmatprep.subr.mxu0 0.0
    %262 = vmatpush1.msra.mxu0 0.0
    %263 = vmatprep.subr.mxu0 0.0
    %264 = vmatpush1.msra.mxu0 0.0
    %265 = vmatprep.subr.mxu0 0.0
    %266 = vmatpush1.msra.mxu0 0.0
    %267 = vmatprep.subr.mxu0 0.0
    %268 = vmatpush1.msra.mxu0 0.0
    %269 = vmatprep.subr.mxu0 0.0
    %270 = vmatpush1.msra.mxu0 0.0
    %271 = vmatprep.subr.mxu0 0.0
    %272 = vmatpush1.msra.mxu0 0.0
    %273 = vmatprep.subr.mxu0 0.0
    %274 = vmatpush1.msra.mxu0 0.0
    %275 = vmatprep.subr.mxu0 0.0
    %276 = vmatpush1.msra.mxu0 0.0
    %277 = vmatprep.subr.mxu0 0.0
    %278 = vmatpush1.msra.mxu0 0.0
    %279 = vmatprep.subr.mxu0 0.0
    %280 = vmatpush1.msra.mxu0 0.0
    %281 = vmatprep.subr.mxu0 0.0
    %282 = vmatpush1.msra.mxu0 0.0
    %283 = vmatprep.subr.mxu0 0.0
    %284 = vmatpush1.msra.mxu0 0.0
    %285 = vmatprep.subr.mxu0 0.0
    %286 = vmatpush1.msra.mxu0 0.0
    %287 = vmatprep.subr.mxu0 0.0
    %288 = vmatpush1.msra.mxu0 0.0
    %289 = vmatprep.subr.mxu0 0.0
    %290 = vmatpush1.msra.mxu0 0.0
    %291 = vmatprep.subr.mxu0 0.0
    %292 = vmatpush1.msra.mxu0 0.0
    %293 = vmatprep.subr.mxu0 0.0
    %294 = vmatpush1.msra.mxu0 0.0
    %295 = vmatprep.subr.mxu0 0.0
    %296 = vmatpush1.msra.mxu0 0.0
    %297 = vmatprep.subr.mxu0 0.0
    %298 = vmatpush1.msra.mxu0 0.0
    %299 = vmatprep.subr.mxu0 0.0
    %300 = vmatpush1.msra.mxu0 0.0
    %301 = vmatprep.subr.mxu0 0.0
    %302 = vmatpush1.msra.mxu0 0.0
    %303 = vmatprep.subr.mxu0 0.0
    %304 = vmatpush1.msra.mxu0 0.0
    %305 = vmatprep.subr.mxu0 0.0
    %306 = vmatpush1.msra.mxu0 0.0
    %307 = vmatprep.subr.mxu0 0.0
    %308 = vmatpush1.msra.mxu0 0.0
    %309 = vmatprep.subr.mxu0 0.0
    %310 = vmatpush1.msra.mxu0 0.0
    %311 = vmatprep.subr.mxu0 0.0
    %312 = vmatpush1.msra.mxu0 0.0
    %313 = vmatprep.mubr.f32.mxu0 0.0
    %314 = vmatmul.mubr.f32.gmra.mrb[0].mxu0 %v244
    %v315 = vpop.f32.mrb[0].mxu0
    %v316 = vadd.f32 0.0, %v315
    %v317 = vpop.f32.mrb[0].mxu0
    %318 = vmatprep.mubr.f32.mxu0 0.0
    %319 = vmatmul.mubr.f32.gmra.mrb[0].mxu0 %v247
    %v320 = vpop.f32.mrb[0].mxu0
    %v321 = vadd.f32 0.0, %v320
    %v322 = vpop.f32.mrb[0].mxu0
    %323 = vdwg.mxu0
    %324 = vmatprep.subr.mxu0 0.0
    %325 = vmatpush1.msra.mxu0 %v38
    %326 = vmatprep.subr.mxu0 0.0
    %327 = vmatpush1.msra.mxu0 %v39
    %328 = vmatprep.subr.mxu0 0.0
    %329 = vmatpush1.msra.mxu0 %v40
    %330 = vmatprep.subr.mxu0 0.0
    %331 = vmatpush1.msra.mxu0 %v41
    %332 = vmatprep.subr.mxu0 0.0
    %333 = vmatpush1.msra.mxu0 0.0
    %334 = vmatprep.subr.mxu0 0.0
    %335 = vmatpush1.msra.mxu0 0.0
    %336 = vmatprep.subr.mxu0 0.0
    %337 = vmatpush1.msra.mxu0 0.0
    %338 = vmatprep.subr.mxu0 0.0
    %339 = vmatpush1.msra.mxu0 0.0
    %340 = vmatprep.subr.mxu0 0.0
    %341 = vmatpush1.msra.mxu0 0.0
    %342 = vmatprep.subr.mxu0 0.0
    %343 = vmatpush1.msra.mxu0 0.0
    %344 = vmatprep.subr.mxu0 0.0
    %345 = vmatpush1.msra.mxu0 0.0
    %346 = vmatprep.subr.mxu0 0.0
    %347 = vmatpush1.msra.mxu0 0.0
    %348 = vmatprep.subr.mxu0 0.0
    %349 = vmatpush1.msra.mxu0 0.0
    %350 = vmatprep.subr.mxu0 0.0
    %351 = vmatpush1.msra.mxu0 0.0
    %352 = vmatprep.subr.mxu0 0.0
    %353 = vmatpush1.msra.mxu0 0.0
    %354 = vmatprep.subr.mxu0 0.0
    %355 = vmatpush1.msra.mxu0 0.0
    %356 = vmatprep.subr.mxu0 0.0
    %357 = vmatpush1.msra.mxu0 0.0
    %358 = vmatprep.subr.mxu0 0.0
    %359 = vmatpush1.msra.mxu0 0.0
    %360 = vmatprep.subr.mxu0 0.0
    %361 = vmatpush1.msra.mxu0 0.0
    %362 = vmatprep.subr.mxu0 0.0
    %363 = vmatpush1.msra.mxu0 0.0
    %364 = vmatprep.subr.mxu0 0.0
    %365 = vmatpush1.msra.mxu0 0.0
    %366 = vmatprep.subr.mxu0 0.0
    %367 = vmatpush1.msra.mxu0 0.0
    %368 = vmatprep.subr.mxu0 0.0
    %369 = vmatpush1.msra.mxu0 0.0
    %370 = vmatprep.subr.mxu0 0.0
    %371 = vmatpush1.msra.mxu0 0.0
    %372 = vmatprep.subr.mxu0 0.0
    %373 = vmatpush1.msra.mxu0 0.0
    %374 = vmatprep.subr.mxu0 0.0
    %375 = vmatpush1.msra.mxu0 0.0
    %376 = vmatprep.subr.mxu0 0.0
    %377 = vmatpush1.msra.mxu0 0.0
    %378 = vmatprep.subr.mxu0 0.0
    %379 = vmatpush1.msra.mxu0 0.0
    %380 = vmatprep.subr.mxu0 0.0
    %381 = vmatpush1.msra.mxu0 0.0
    %382 = vmatprep.subr.mxu0 0.0
    %383 = vmatpush1.msra.mxu0 0.0
    %384 = vmatprep.subr.mxu0 0.0
    %385 = vmatpush1.msra.mxu0 0.0
    %386 = vmatprep.subr.mxu0 0.0
    %387 = vmatpush1.msra.mxu0 0.0
    %388 = vmatprep.mubr.f32.mxu0 0.0
    %389 = vmatmul.mubr.f32.gmra.mrb[0].mxu0 %v244
    %v390 = vpop.f32.mrb[0].mxu0
    %v391 = vadd.f32 0.0, %v390
    %v392 = vpop.f32.mrb[0].mxu0
    %393 = vmatprep.mubr.f32.mxu0 0.0
    %394 = vmatmul.mubr.f32.gmra.mrb[0].mxu0 %v247
    %v395 = vpop.f32.mrb[0].mxu0
    %v396 = vadd.f32 0.0, %v395
    %v397 = vpop.f32.mrb[0].mxu0
    %398 = vdwg.mxu0
    %v400 = vrot.slane %v396, 6
    %v402 = vadd.f32 %v316, %v400
    %v404 = vsel %vm159, 0.0, 0
    %406 = vmatprep.subr.mxu0 0.0
    %407 = vmatpush1.msra.mxu0 %v42
    %408 = vmatprep.subr.mxu0 0.0
    %409 = vmatpush1.msra.mxu0 %v43
    %410 = vmatprep.subr.mxu0 0.0
    %411 = vmatpush1.msra.mxu0 %v44
    %412 = vmatprep.subr.mxu0 0.0
    %413 = vmatpush1.msra.mxu0 %v45
    %414 = vmatprep.subr.mxu0 0.0
    %415 = vmatpush1.msra.mxu0 0.0
    %416 = vmatprep.subr.mxu0 0.0
    %417 = vmatpush1.msra.mxu0 0.0
    %418 = vmatprep.subr.mxu0 0.0
    %419 = vmatpush1.msra.mxu0 0.0
    %420 = vmatprep.subr.mxu0 0.0
    %421 = vmatpush1.msra.mxu0 0.0
    %422 = vmatprep.subr.mxu0 0.0
    %423 = vmatpush1.msra.mxu0 0.0
    %424 = vmatprep.subr.mxu0 0.0
    %425 = vmatpush1.msra.mxu0 0.0
    %426 = vmatprep.subr.mxu0 0.0
    %427 = vmatpush1.msra.mxu0 0.0
    %428 = vmatprep.subr.mxu0 0.0
    %429 = vmatpush1.msra.mxu0 0.0
    %430 = vmatprep.subr.mxu0 0.0
    %431 = vmatpush1.msra.mxu0 0.0
    %432 = vmatprep.subr.mxu0 0.0
    %433 = vmatpush1.msra.mxu0 0.0
    %434 = vmatprep.subr.mxu0 0.0
    %435 = vmatpush1.msra.mxu0 0.0
    %436 = vmatprep.subr.mxu0 0.0
    %437 = vmatpush1.msra.mxu0 0.0
    %438 = vmatprep.subr.mxu0 0.0
    %439 = vmatpush1.msra.mxu0 0.0
    %440 = vmatprep.subr.mxu0 0.0
    %441 = vmatpush1.msra.mxu0 0.0
    %442 = vmatprep.subr.mxu0 0.0
    %443 = vmatpush1.msra.mxu0 0.0
    %444 = vmatprep.subr.mxu0 0.0
    %445 = vmatpush1.msra.mxu0 0.0
    %446 = vmatprep.subr.mxu0 0.0
    %447 = vmatpush1.msra.mxu0 0.0
    %448 = vmatprep.subr.mxu0 0.0
    %449 = vmatpush1.msra.mxu0 0.0
    %450 = vmatprep.subr.mxu0 0.0
    %451 = vmatpush1.msra.mxu0 0.0
    %452 = vmatprep.subr.mxu0 0.0
    %453 = vmatpush1.msra.mxu0 0.0
    %454 = vmatprep.subr.mxu0 0.0
    %455 = vmatpush1.msra.mxu0 0.0
    %456 = vmatprep.subr.mxu0 0.0
    %457 = vmatpush1.msra.mxu0 0.0
    %458 = vmatprep.subr.mxu0 0.0
    %459 = vmatpush1.msra.mxu0 0.0
    %460 = vmatprep.subr.mxu0 0.0
    %461 = vmatpush1.msra.mxu0 0.0
    %462 = vmatprep.subr.mxu0 0.0
    %463 = vmatpush1.msra.mxu0 0.0
    %464 = vmatprep.subr.mxu0 0.0
    %465 = vmatpush1.msra.mxu0 0.0
    %466 = vmatprep.subr.mxu0 0.0
    %467 = vmatpush1.msra.mxu0 0.0
    %468 = vmatprep.subr.mxu0 0.0
    %469 = vmatpush1.msra.mxu0 0.0
    %470 = vmatprep.mubr.f32.mxu0 0.0
    %471 = vmatmul.mubr.f32.gmra.mrb[0].mxu0 %v404
    %v472 = vpop.f32.mrb[0].mxu0
    %v473 = vadd.f32 0.0, %v472
    %v474 = vpop.f32.mrb[0].mxu0
    %475 = vdwg.mxu0
    %v476 = vadd.f32 %v402, %v473
    %v477 = vlaneseq
    %v478 = vshrl.u32 %v477, 7
    %v479 = vsub.s32 0, %v478
    %v480 = vrot.slane %v46, %v479
    %v481 = vadd.f32 %v476, %v480
    %v482 = vxor.u32 %v481, 2147483648
    %v483 = vmul.f32 %v482, 1.442695
    %v484 = vpow.pop %v483
    %v485 = vadd.f32 %v484, 1.0
    %v486 = vrcp.pop %v485
    %v487 = vmul.f32 1.0, %v486
    %v488 = vtanh.pop %v481
    %v489 = vmul.f32 %v487, 0.0
    %491 = vrot.lane.b32.xlu0 %v488, 32
    %v492 = vpop.permute.xlu0 %491
    %v494 = vmul.f32 %v487, %v492
    %496 = vrot.lane.b32.xlu0 %v494, 32
    %v497 = vpop.permute.xlu0 %496
    %v499 = vadd.f32 %v489, %v497
    %v500 = vtanh.pop %v499
    %502 = vrot.lane.b32.xlu0 %v500, 32
    %v503 = vpop.permute.xlu0 %502
    %v505 = vmul.f32 %v487, %v503
    %507 = vrot.lane.b32.xlu0 %v505, 64
    %v508 = vpop.permute.xlu0 %507
    %vm510 = vcmask 123904
    %511 = vst.msk [vmem:[#allocation2] sm:$0x3] %vm510, %v508
    %vm512 = vcmask 255104
    %513 = vst.msk [vmem:[#allocation2 + $0xe] sm:$0x3] %vm512, %v508
    %v514 = vrot.slane %v396, 2
    %v516 = vadd.f32 %v316, %v514
    %v517 = vsel %vm159, %v508, 0
    %519 = vmatprep.subr.mxu0 0.0
    %520 = vmatpush1.msra.mxu0 %v42
    %521 = vmatprep.subr.mxu0 0.0
    %522 = vmatpush1.msra.mxu0 %v43
    %523 = vmatprep.subr.mxu0 0.0
    %524 = vmatpush1.msra.mxu0 %v44
    %525 = vmatprep.subr.mxu0 0.0
    %526 = vmatpush1.msra.mxu0 %v45
    %527 = vmatprep.subr.mxu0 0.0
    %528 = vmatpush1.msra.mxu0 0.0
    %529 = vmatprep.subr.mxu0 0.0
    %530 = vmatpush1.msra.mxu0 0.0
    %531 = vmatprep.subr.mxu0 0.0
    %532 = vmatpush1.msra.mxu0 0.0
    %533 = vmatprep.subr.mxu0 0.0
    %534 = vmatpush1.msra.mxu0 0.0
    %535 = vmatprep.subr.mxu0 0.0
    %536 = vmatpush1.msra.mxu0 0.0
    %537 = vmatprep.subr.mxu0 0.0
    %538 = vmatpush1.msra.mxu0 0.0
    %539 = vmatprep.subr.mxu0 0.0
    %540 = vmatpush1.msra.mxu0 0.0
    %541 = vmatprep.subr.mxu0 0.0
    %542 = vmatpush1.msra.mxu0 0.0
    %543 = vmatprep.subr.mxu0 0.0
    %544 = vmatpush1.msra.mxu0 0.0
    %545 = vmatprep.subr.mxu0 0.0
    %546 = vmatpush1.msra.mxu0 0.0
    %547 = vmatprep.subr.mxu0 0.0
    %548 = vmatpush1.msra.mxu0 0.0
    %549 = vmatprep.subr.mxu0 0.0
    %550 = vmatpush1.msra.mxu0 0.0
    %551 = vmatprep.subr.mxu0 0.0
    %552 = vmatpush1.msra.mxu0 0.0
    %553 = vmatprep.subr.mxu0 0.0
    %554 = vmatpush1.msra.mxu0 0.0
    %555 = vmatprep.subr.mxu0 0.0
    %556 = vmatpush1.msra.mxu0 0.0
    %557 = vmatprep.subr.mxu0 0.0
    %558 = vmatpush1.msra.mxu0 0.0
    %559 = vmatprep.subr.mxu0 0.0
    %560 = vmatpush1.msra.mxu0 0.0
    %561 = vmatprep.subr.mxu0 0.0
    %562 = vmatpush1.msra.mxu0 0.0
    %563 = vmatprep.subr.mxu0 0.0
    %564 = vmatpush1.msra.mxu0 0.0
    %565 = vmatprep.subr.mxu0 0.0
    %566 = vmatpush1.msra.mxu0 0.0
    %567 = vmatprep.subr.mxu0 0.0
    %568 = vmatpush1.msra.mxu0 0.0
    %569 = vmatprep.subr.mxu0 0.0
    %570 = vmatpush1.msra.mxu0 0.0
    %571 = vmatprep.subr.mxu0 0.0
    %572 = vmatpush1.msra.mxu0 0.0
    %573 = vmatprep.subr.mxu0 0.0
    %574 = vmatpush1.msra.mxu0 0.0
    %575 = vmatprep.subr.mxu0 0.0
    %576 = vmatpush1.msra.mxu0 0.0
    %577 = vmatprep.subr.mxu0 0.0
    %578 = vmatpush1.msra.mxu0 0.0
    %579 = vmatprep.subr.mxu0 0.0
    %580 = vmatpush1.msra.mxu0 0.0
    %581 = vmatprep.subr.mxu0 0.0
    %582 = vmatpush1.msra.mxu0 0.0
    %583 = vmatprep.mubr.f32.mxu0 0.0
    %584 = vmatmul.mubr.f32.gmra.mrb[0].mxu0 %v517
    %v585 = vpop.f32.mrb[0].mxu0
    %v586 = vadd.f32 0.0, %v585
    %v587 = vpop.f32.mrb[0].mxu0
    %588 = vdwg.mxu0
    %v590 = vrot.slane %v586, 6
    %v592 = vadd.f32 %v516, %v590
    %v593 = vadd.f32 %v592, %v480
    %v594 = vxor.u32 %v593, 2147483648
    %v595 = vmul.f32 %v594, 1.442695
    %v596 = vpow.pop %v595
    %v597 = vadd.f32 %v596, 1.0
    %v598 = vrcp.pop %v597
    %v599 = vmul.f32 1.0, %v598
    %v600 = vtanh.pop %v593
    %v602 = vrot.slane %v499, 6
    %v604 = vmul.f32 %v599, %v602
    %606 = vrot.lane.b32.xlu0 %v600, 32
    %v607 = vpop.permute.xlu0 %606
    %v609 = vmul.f32 %v599, %v607
    %611 = vrot.lane.b32.xlu0 %v609, 32
    %v612 = vpop.permute.xlu0 %611
    %v614 = vadd.f32 %v604, %v612
    %v615 = vtanh.pop %v614
    %617 = vrot.lane.b32.xlu0 %v615, 32
    %v618 = vpop.permute.xlu0 %617
    %v620 = vmul.f32 %v599, %v618
    %622 = vrot.lane.b32.xlu0 %v620, 64
    %v623 = vpop.permute.xlu0 %622
    %vm625 = vcmask 125954
    %626 = vst.msk [vmem:[#allocation2] sm:$0xc] %vm625, %v623
    %vm627 = vcmask 257154
    %628 = vst.msk [vmem:[#allocation2 + $0xa] sm:$0xc] %vm627, %v623
    %v629 = vrot.slane %v620, 2
    %630 = vrot.lane.b32.xlu0 %v629, 64
    %v631 = vpop.permute.xlu0 %630
    %v632 = vsel %vm159, %v631, 0
    %634 = vmatprep.subr.mxu0 0.0
    %635 = vmatpush1.msra.mxu0 %v42
    %636 = vmatprep.subr.mxu0 0.0
    %637 = vmatpush1.msra.mxu0 %v43
    %638 = vmatprep.subr.mxu0 0.0
    %639 = vmatpush1.msra.mxu0 %v44
    %640 = vmatprep.subr.mxu0 0.0
    %641 = vmatpush1.msra.mxu0 %v45
    %642 = vmatprep.subr.mxu0 0.0
    %643 = vmatpush1.msra.mxu0 0.0
    %644 = vmatprep.subr.mxu0 0.0
    %645 = vmatpush1.msra.mxu0 0.0
    %646 = vmatprep.subr.mxu0 0.0
    %647 = vmatpush1.msra.mxu0 0.0
    %648 = vmatprep.subr.mxu0 0.0
    %649 = vmatpush1.msra.mxu0 0.0
    %650 = vmatprep.subr.mxu0 0.0
    %651 = vmatpush1.msra.mxu0 0.0
    %652 = vmatprep.subr.mxu0 0.0
    %653 = vmatpush1.msra.mxu0 0.0
    %654 = vmatprep.subr.mxu0 0.0
    %655 = vmatpush1.msra.mxu0 0.0
    %656 = vmatprep.subr.mxu0 0.0
    %657 = vmatpush1.msra.mxu0 0.0
    %658 = vmatprep.subr.mxu0 0.0
    %659 = vmatpush1.msra.mxu0 0.0
    %660 = vmatprep.subr.mxu0 0.0
    %661 = vmatpush1.msra.mxu0 0.0
    %662 = vmatprep.subr.mxu0 0.0
    %663 = vmatpush1.msra.mxu0 0.0
    %664 = vmatprep.subr.mxu0 0.0
    %665 = vmatpush1.msra.mxu0 0.0
    %666 = vmatprep.subr.mxu0 0.0
    %667 = vmatpush1.msra.mxu0 0.0
    %668 = vmatprep.subr.mxu0 0.0
    %669 = vmatpush1.msra.mxu0 0.0
    %670 = vmatprep.subr.mxu0 0.0
    %671 = vmatpush1.msra.mxu0 0.0
    %672 = vmatprep.subr.mxu0 0.0
    %673 = vmatpush1.msra.mxu0 0.0
    %674 = vmatprep.subr.mxu0 0.0
    %675 = vmatpush1.msra.mxu0 0.0
    %676 = vmatprep.subr.mxu0 0.0
    %677 = vmatpush1.msra.mxu0 0.0
    %678 = vmatprep.subr.mxu0 0.0
    %679 = vmatpush1.msra.mxu0 0.0
    %680 = vmatprep.subr.mxu0 0.0
    %681 = vmatpush1.msra.mxu0 0.0
    %682 = vmatprep.subr.mxu0 0.0
    %683 = vmatpush1.msra.mxu0 0.0
    %684 = vmatprep.subr.mxu0 0.0
    %685 = vmatpush1.msra.mxu0 0.0
    %686 = vmatprep.subr.mxu0 0.0
    %687 = vmatpush1.msra.mxu0 0.0
    %688 = vmatprep.subr.mxu0 0.0
    %689 = vmatpush1.msra.mxu0 0.0
    %690 = vmatprep.subr.mxu0 0.0
    %691 = vmatpush1.msra.mxu0 0.0
    %692 = vmatprep.subr.mxu0 0.0
    %693 = vmatpush1.msra.mxu0 0.0
    %694 = vmatprep.subr.mxu0 0.0
    %695 = vmatpush1.msra.mxu0 0.0
    %696 = vmatprep.subr.mxu0 0.0
    %697 = vmatpush1.msra.mxu0 0.0
    %698 = vmatprep.mubr.f32.mxu0 0.0
    %699 = vmatmul.mubr.f32.gmra.mrb[0].mxu0 %v632
    %v700 = vpop.f32.mrb[0].mxu0
    %v701 = vadd.f32 0.0, %v700
    %v702 = vpop.f32.mrb[0].mxu0
    %703 = vdwg.mxu0
    %v705 = vrot.slane %v701, 4
    %v707 = vadd.f32 %v402, %v705
    %v708 = vadd.f32 %v707, %v480
    %v709 = vxor.u32 %v708, 2147483648
    %v710 = vmul.f32 %v709, 1.442695
    %v711 = vpow.pop %v710
    %v712 = vadd.f32 %v711, 1.0
    %v713 = vrcp.pop %v712
    %v714 = vmul.f32 1.0, %v713
    %v715 = vtanh.pop %v708
    %v717 = vrot.slane %v614, 6
    %v719 = vmul.f32 %v714, %v717
    %721 = vrot.lane.b32.xlu0 %v715, 32
    %v722 = vpop.permute.xlu0 %721
    %v724 = vmul.f32 %v714, %v722
    %726 = vrot.lane.b32.xlu0 %v724, 32
    %v727 = vpop.permute.xlu0 %726
    %v729 = vadd.f32 %v719, %v727
    %v730 = vtanh.pop %v729
    %732 = vrot.lane.b32.xlu0 %v730, 32
    %v733 = vpop.permute.xlu0 %732
    %v735 = vmul.f32 %v714, %v733
    %737 = vrot.lane.b32.xlu0 %v735, 64
    %v738 = vpop.permute.xlu0 %737
    %vm740 = vcmask 128004
    %741 = vst.msk [vmem:[#allocation2] sm:$0x30] %vm740, %v738
    %vm742 = vcmask 259204
    %743 = vst.msk [vmem:[#allocation2 + $0x6] sm:$0x30] %vm742, %v738
    %v744 = vrot.slane %v735, 4
    %745 = vrot.lane.b32.xlu0 %v744, 64
    %v746 = vpop.permute.xlu0 %745
    %v747 = vsel %vm159, %v746, 0
    %749 = vmatprep.subr.mxu0 0.0
    %750 = vmatpush1.msra.mxu0 %v42
    %751 = vmatprep.subr.mxu0 0.0
    %752 = vmatpush1.msra.mxu0 %v43
    %753 = vmatprep.subr.mxu0 0.0
    %754 = vmatpush1.msra.mxu0 %v44
    %755 = vmatprep.subr.mxu0 0.0
    %756 = vmatpush1.msra.mxu0 %v45
    %757 = vmatprep.subr.mxu0 0.0
    %758 = vmatpush1.msra.mxu0 0.0
    %759 = vmatprep.subr.mxu0 0.0
    %760 = vmatpush1.msra.mxu0 0.0
    %761 = vmatprep.subr.mxu0 0.0
    %762 = vmatpush1.msra.mxu0 0.0
    %763 = vmatprep.subr.mxu0 0.0
    %764 = vmatpush1.msra.mxu0 0.0
    %765 = vmatprep.subr.mxu0 0.0
    %766 = vmatpush1.msra.mxu0 0.0
    %767 = vmatprep.subr.mxu0 0.0
    %768 = vmatpush1.msra.mxu0 0.0
    %769 = vmatprep.subr.mxu0 0.0
    %770 = vmatpush1.msra.mxu0 0.0
    %771 = vmatprep.subr.mxu0 0.0
    %772 = vmatpush1.msra.mxu0 0.0
    %773 = vmatprep.subr.mxu0 0.0
    %774 = vmatpush1.msra.mxu0 0.0
    %775 = vmatprep.subr.mxu0 0.0
    %776 = vmatpush1.msra.mxu0 0.0
    %777 = vmatprep.subr.mxu0 0.0
    %778 = vmatpush1.msra.mxu0 0.0
    %779 = vmatprep.subr.mxu0 0.0
    %780 = vmatpush1.msra.mxu0 0.0
    %781 = vmatprep.subr.mxu0 0.0
    %782 = vmatpush1.msra.mxu0 0.0
    %783 = vmatprep.subr.mxu0 0.0
    %784 = vmatpush1.msra.mxu0 0.0
    %785 = vmatprep.subr.mxu0 0.0
    %786 = vmatpush1.msra.mxu0 0.0
    %787 = vmatprep.subr.mxu0 0.0
    %788 = vmatpush1.msra.mxu0 0.0
    %789 = vmatprep.subr.mxu0 0.0
    %790 = vmatpush1.msra.mxu0 0.0
    %791 = vmatprep.subr.mxu0 0.0
    %792 = vmatpush1.msra.mxu0 0.0
    %793 = vmatprep.subr.mxu0 0.0
    %794 = vmatpush1.msra.mxu0 0.0
    %795 = vmatprep.subr.mxu0 0.0
    %796 = vmatpush1.msra.mxu0 0.0
    %797 = vmatprep.subr.mxu0 0.0
    %798 = vmatpush1.msra.mxu0 0.0
    %799 = vmatprep.subr.mxu0 0.0
    %800 = vmatpush1.msra.mxu0 0.0
    %801 = vmatprep.subr.mxu0 0.0
    %802 = vmatpush1.msra.mxu0 0.0
    %803 = vmatprep.subr.mxu0 0.0
    %804 = vmatpush1.msra.mxu0 0.0
    %805 = vmatprep.subr.mxu0 0.0
    %806 = vmatpush1.msra.mxu0 0.0
    %807 = vmatprep.subr.mxu0 0.0
    %808 = vmatpush1.msra.mxu0 0.0
    %809 = vmatprep.subr.mxu0 0.0
    %810 = vmatpush1.msra.mxu0 0.0
    %811 = vmatprep.subr.mxu0 0.0
    %812 = vmatpush1.msra.mxu0 0.0
    %813 = vmatprep.mubr.f32.mxu0 0.0
    %814 = vmatmul.mubr.f32.gmra.mrb[0].mxu0 %v747
    %v815 = vpop.f32.mrb[0].mxu0
    %v816 = vadd.f32 0.0, %v815
    %v817 = vpop.f32.mrb[0].mxu0
    %818 = vdwg.mxu0
    %v820 = vrot.slane %v816, 2
    %v822 = vadd.f32 %v516, %v820
    %v823 = vadd.f32 %v822, %v480
    %v824 = vxor.u32 %v823, 2147483648
    %v825 = vmul.f32 %v824, 1.442695
    %v826 = vpow.pop %v825
    %v827 = vadd.f32 %v826, 1.0
    %v828 = vrcp.pop %v827
    %v829 = vmul.f32 1.0, %v828
    %v830 = vtanh.pop %v823
    %v832 = vrot.slane %v729, 6
    %v834 = vmul.f32 %v829, %v832
    %836 = vrot.lane.b32.xlu0 %v830, 32
    %v837 = vpop.permute.xlu0 %836
    %v839 = vmul.f32 %v829, %v837
    %841 = vrot.lane.b32.xlu0 %v839, 32
    %v842 = vpop.permute.xlu0 %841
    %v844 = vadd.f32 %v834, %v842
    %v845 = vtanh.pop %v844
    %847 = vrot.lane.b32.xlu0 %v845, 32
    %v848 = vpop.permute.xlu0 %847
    %v850 = vmul.f32 %v829, %v848
    %852 = vrot.lane.b32.xlu0 %v850, 64
    %v853 = vpop.permute.xlu0 %852
    %vm855 = vcmask 130054
    %856 = vst.msk [vmem:[#allocation2] sm:$0xc0] %vm855, %v853
    %vm857 = vcmask 261254
    %858 = vst.msk [vmem:[#allocation2 + $0x2] sm:$0xc0] %vm857, %v853
    %v860 = vrot.slane %v391, 6
    %v862 = vadd.f32 %v321, %v860
    %v863 = vrot.slane %v850, 6
    %864 = vrot.lane.b32.xlu0 %v863, 64
    %v865 = vpop.permute.xlu0 %864
    %v866 = vsel %vm159, %v865, 0
    %868 = vmatprep.subr.mxu0 0.0
    %869 = vmatpush1.msra.mxu0 %v42
    %870 = vmatprep.subr.mxu0 0.0
    %871 = vmatpush1.msra.mxu0 %v43
    %872 = vmatprep.subr.mxu0 0.0
    %873 = vmatpush1.msra.mxu0 %v44
    %874 = vmatprep.subr.mxu0 0.0
    %875 = vmatpush1.msra.mxu0 %v45
    %876 = vmatprep.subr.mxu0 0.0
    %877 = vmatpush1.msra.mxu0 0.0
    %878 = vmatprep.subr.mxu0 0.0
    %879 = vmatpush1.msra.mxu0 0.0
    %880 = vmatprep.subr.mxu0 0.0
    %881 = vmatpush1.msra.mxu0 0.0
    %882 = vmatprep.subr.mxu0 0.0
    %883 = vmatpush1.msra.mxu0 0.0
    %884 = vmatprep.subr.mxu0 0.0
    %885 = vmatpush1.msra.mxu0 0.0
    %886 = vmatprep.subr.mxu0 0.0
    %887 = vmatpush1.msra.mxu0 0.0
    %888 = vmatprep.subr.mxu0 0.0
    %889 = vmatpush1.msra.mxu0 0.0
    %890 = vmatprep.subr.mxu0 0.0
    %891 = vmatpush1.msra.mxu0 0.0
    %892 = vmatprep.subr.mxu0 0.0
    %893 = vmatpush1.msra.mxu0 0.0
    %894 = vmatprep.subr.mxu0 0.0
    %895 = vmatpush1.msra.mxu0 0.0
    %896 = vmatprep.subr.mxu0 0.0
    %897 = vmatpush1.msra.mxu0 0.0
    %898 = vmatprep.subr.mxu0 0.0
    %899 = vmatpush1.msra.mxu0 0.0
    %900 = vmatprep.subr.mxu0 0.0
    %901 = vmatpush1.msra.mxu0 0.0
    %902 = vmatprep.subr.mxu0 0.0
    %903 = vmatpush1.msra.mxu0 0.0
    %904 = vmatprep.subr.mxu0 0.0
    %905 = vmatpush1.msra.mxu0 0.0
    %906 = vmatprep.subr.mxu0 0.0
    %907 = vmatpush1.msra.mxu0 0.0
    %908 = vmatprep.subr.mxu0 0.0
    %909 = vmatpush1.msra.mxu0 0.0
    %910 = vmatprep.subr.mxu0 0.0
    %911 = vmatpush1.msra.mxu0 0.0
    %912 = vmatprep.subr.mxu0 0.0
    %913 = vmatpush1.msra.mxu0 0.0
    %914 = vmatprep.subr.mxu0 0.0
    %915 = vmatpush1.msra.mxu0 0.0
    %916 = vmatprep.subr.mxu0 0.0
    %917 = vmatpush1.msra.mxu0 0.0
    %918 = vmatprep.subr.mxu0 0.0
    %919 = vmatpush1.msra.mxu0 0.0
    %920 = vmatprep.subr.mxu0 0.0
    %921 = vmatpush1.msra.mxu0 0.0
    %922 = vmatprep.subr.mxu0 0.0
    %923 = vmatpush1.msra.mxu0 0.0
    %924 = vmatprep.subr.mxu0 0.0
    %925 = vmatpush1.msra.mxu0 0.0
    %926 = vmatprep.subr.mxu0 0.0
    %927 = vmatpush1.msra.mxu0 0.0
    %928 = vmatprep.subr.mxu0 0.0
    %929 = vmatpush1.msra.mxu0 0.0
    %930 = vmatprep.subr.mxu0 0.0
    %931 = vmatpush1.msra.mxu0 0.0
    %932 = vmatprep.mubr.f32.mxu0 0.0
    %933 = vmatmul.mubr.f32.gmra.mrb[0].mxu0 %v866
    %v934 = vpop.f32.mrb[0].mxu0
    %v935 = vadd.f32 0.0, %v934
    %v936 = vpop.f32.mrb[0].mxu0
    %937 = vdwg.mxu0
    %v938 = vadd.f32 %v862, %v935
    %v939 = vadd.f32 %v938, %v480
    %v940 = vxor.u32 %v939, 2147483648
    %v941 = vmul.f32 %v940, 1.442695
    %v942 = vpow.pop %v941
    %v943 = vadd.f32 %v942, 1.0
    %v944 = vrcp.pop %v943
    %v945 = vmul.f32 1.0, %v944
    %v946 = vtanh.pop %v939
    %v948 = vrot.slane %v844, 6
    %v950 = vmul.f32 %v945, %v948
    %952 = vrot.lane.b32.xlu0 %v946, 32
    %v953 = vpop.permute.xlu0 %952
    %v955 = vmul.f32 %v945, %v953
    %957 = vrot.lane.b32.xlu0 %v955, 32
    %v958 = vpop.permute.xlu0 %957
    %v960 = vadd.f32 %v950, %v958
    %v961 = vtanh.pop %v960
    %963 = vrot.lane.b32.xlu0 %v961, 32
    %v964 = vpop.permute.xlu0 %963
    %v966 = vmul.f32 %v945, %v964
    %968 = vrot.lane.b32.xlu0 %v966, 64
    %v969 = vpop.permute.xlu0 %968
    %971 = vst.msk [vmem:[#allocation2 + $0x8] sm:$0x3] %vm510, %v969
    %972 = vst.msk [vmem:[#allocation2 + $0x6] sm:$0x3] %vm512, %v969
    %v973 = vrot.slane %v391, 2
    %v975 = vadd.f32 %v321, %v973
    %v976 = vsel %vm159, %v969, 0
    %978 = vmatprep.subr.mxu0 0.0
    %979 = vmatpush1.msra.mxu0 %v42
    %980 = vmatprep.subr.mxu0 0.0
    %981 = vmatpush1.msra.mxu0 %v43
    %982 = vmatprep.subr.mxu0 0.0
    %983 = vmatpush1.msra.mxu0 %v44
    %984 = vmatprep.subr.mxu0 0.0
    %985 = vmatpush1.msra.mxu0 %v45
    %986 = vmatprep.subr.mxu0 0.0
    %987 = vmatpush1.msra.mxu0 0.0
    %988 = vmatprep.subr.mxu0 0.0
    %989 = vmatpush1.msra.mxu0 0.0
    %990 = vmatprep.subr.mxu0 0.0
    %991 = vmatpush1.msra.mxu0 0.0
    %992 = vmatprep.subr.mxu0 0.0
    %993 = vmatpush1.msra.mxu0 0.0
    %994 = vmatprep.subr.mxu0 0.0
    %995 = vmatpush1.msra.mxu0 0.0
    %996 = vmatprep.subr.mxu0 0.0
    %997 = vmatpush1.msra.mxu0 0.0
    %998 = vmatprep.subr.mxu0 0.0
    %999 = vmatpush1.msra.mxu0 0.0
    %1000 = vmatprep.subr.mxu0 0.0
    %1001 = vmatpush1.msra.mxu0 0.0
    %1002 = vmatprep.subr.mxu0 0.0
    %1003 = vmatpush1.msra.mxu0 0.0
    %1004 = vmatprep.subr.mxu0 0.0
    %1005 = vmatpush1.msra.mxu0 0.0
    %1006 = vmatprep.subr.mxu0 0.0
    %1007 = vmatpush1.msra.mxu0 0.0
    %1008 = vmatprep.subr.mxu0 0.0
    %1009 = vmatpush1.msra.mxu0 0.0
    %1010 = vmatprep.subr.mxu0 0.0
    %1011 = vmatpush1.msra.mxu0 0.0
    %1012 = vmatprep.subr.mxu0 0.0
    %1013 = vmatpush1.msra.mxu0 0.0
    %1014 = vmatprep.subr.mxu0 0.0
    %1015 = vmatpush1.msra.mxu0 0.0
    %1016 = vmatprep.subr.mxu0 0.0
    %1017 = vmatpush1.msra.mxu0 0.0
    %1018 = vmatprep.subr.mxu0 0.0
    %1019 = vmatpush1.msra.mxu0 0.0
    %1020 = vmatprep.subr.mxu0 0.0
    %1021 = vmatpush1.msra.mxu0 0.0
    %1022 = vmatprep.subr.mxu0 0.0
    %1023 = vmatpush1.msra.mxu0 0.0
    %1024 = vmatprep.subr.mxu0 0.0
    %1025 = vmatpush1.msra.mxu0 0.0
    %1026 = vmatprep.subr.mxu0 0.0
    %1027 = vmatpush1.msra.mxu0 0.0
    %1028 = vmatprep.subr.mxu0 0.0
    %1029 = vmatpush1.msra.mxu0 0.0
    %1030 = vmatprep.subr.mxu0 0.0
    %1031 = vmatpush1.msra.mxu0 0.0
    %1032 = vmatprep.subr.mxu0 0.0
    %1033 = vmatpush1.msra.mxu0 0.0
    %1034 = vmatprep.subr.mxu0 0.0
    %1035 = vmatpush1.msra.mxu0 0.0
    %1036 = vmatprep.subr.mxu0 0.0
    %1037 = vmatpush1.msra.mxu0 0.0
    %1038 = vmatprep.subr.mxu0 0.0
    %1039 = vmatpush1.msra.mxu0 0.0
    %1040 = vmatprep.subr.mxu0 0.0
    %1041 = vmatpush1.msra.mxu0 0.0
    %1042 = vmatprep.mubr.f32.mxu0 0.0
    %1043 = vmatmul.mubr.f32.gmra.mrb[0].mxu0 %v976
    %v1044 = vpop.f32.mrb[0].mxu0
    %v1045 = vadd.f32 0.0, %v1044
    %v1046 = vpop.f32.mrb[0].mxu0
    %1047 = vdwg.mxu0
    %v1049 = vrot.slane %v1045, 6
    %v1051 = vadd.f32 %v975, %v1049
    %v1052 = vadd.f32 %v1051, %v480
    %v1053 = vxor.u32 %v1052, 2147483648
    %v1054 = vmul.f32 %v1053, 1.442695
    %v1055 = vpow.pop %v1054
    %v1056 = vadd.f32 %v1055, 1.0
    %v1057 = vrcp.pop %v1056
    %v1058 = vmul.f32 1.0, %v1057
    %v1059 = vtanh.pop %v1052
    %v1061 = vrot.slane %v960, 6
    %v1063 = vmul.f32 %v1058, %v1061
    %1065 = vrot.lane.b32.xlu0 %v1059, 32
    %v1066 = vpop.permute.xlu0 %1065
    %v1068 = vmul.f32 %v1058, %v1066
    %1070 = vrot.lane.b32.xlu0 %v1068, 32
    %v1071 = vpop.permute.xlu0 %1070
    %v1073 = vadd.f32 %v1063, %v1071
    %v1074 = vtanh.pop %v1073
    %1076 = vrot.lane.b32.xlu0 %v1074, 32
    %v1077 = vpop.permute.xlu0 %1076
    %v1079 = vmul.f32 %v1058, %v1077
    %1081 = vrot.lane.b32.xlu0 %v1079, 64
    %v1082 = vpop.permute.xlu0 %1081
    %1084 = vst.msk [vmem:[#allocation2 + $0x8] sm:$0xc] %vm625, %v1082
    %1085 = vst.msk [vmem:[#allocation2 + $0x2] sm:$0xc] %vm627, %v1082
    %v1086 = vrot.slane %v1079, 2
    %1087 = vrot.lane.b32.xlu0 %v1086, 64
    %v1088 = vpop.permute.xlu0 %1087
    %v1089 = vsel %vm159, %v1088, 0
    %1091 = vmatprep.subr.mxu0 0.0
    %1092 = vmatpush1.msra.mxu0 %v42
    %1093 = vmatprep.subr.mxu0 0.0
    %1094 = vmatpush1.msra.mxu0 %v43
    %1095 = vmatprep.subr.mxu0 0.0
    %1096 = vmatpush1.msra.mxu0 %v44
    %1097 = vmatprep.subr.mxu0 0.0
    %1098 = vmatpush1.msra.mxu0 %v45
    %1099 = vmatprep.subr.mxu0 0.0
    %1100 = vmatpush1.msra.mxu0 0.0
    %1101 = vmatprep.subr.mxu0 0.0
    %1102 = vmatpush1.msra.mxu0 0.0
    %1103 = vmatprep.subr.mxu0 0.0
    %1104 = vmatpush1.msra.mxu0 0.0
    %1105 = vmatprep.subr.mxu0 0.0
    %1106 = vmatpush1.msra.mxu0 0.0
    %1107 = vmatprep.subr.mxu0 0.0
    %1108 = vmatpush1.msra.mxu0 0.0
    %1109 = vmatprep.subr.mxu0 0.0
    %1110 = vmatpush1.msra.mxu0 0.0
    %1111 = vmatprep.subr.mxu0 0.0
    %1112 = vmatpush1.msra.mxu0 0.0
    %1113 = vmatprep.subr.mxu0 0.0
    %1114 = vmatpush1.msra.mxu0 0.0
    %1115 = vmatprep.subr.mxu0 0.0
    %1116 = vmatpush1.msra.mxu0 0.0
    %1117 = vmatprep.subr.mxu0 0.0
    %1118 = vmatpush1.msra.mxu0 0.0
    %1119 = vmatprep.subr.mxu0 0.0
    %1120 = vmatpush1.msra.mxu0 0.0
    %1121 = vmatprep.subr.mxu0 0.0
    %1122 = vmatpush1.msra.mxu0 0.0
    %1123 = vmatprep.subr.mxu0 0.0
    %1124 = vmatpush1.msra.mxu0 0.0
    %1125 = vmatprep.subr.mxu0 0.0
    %1126 = vmatpush1.msra.mxu0 0.0
    %1127 = vmatprep.subr.mxu0 0.0
    %1128 = vmatpush1.msra.mxu0 0.0
    %1129 = vmatprep.subr.mxu0 0.0
    %1130 = vmatpush1.msra.mxu0 0.0
    %1131 = vmatprep.subr.mxu0 0.0
    %1132 = vmatpush1.msra.mxu0 0.0
    %1133 = vmatprep.subr.mxu0 0.0
    %1134 = vmatpush1.msra.mxu0 0.0
    %1135 = vmatprep.subr.mxu0 0.0
    %1136 = vmatpush1.msra.mxu0 0.0
    %1137 = vmatprep.subr.mxu0 0.0
    %1138 = vmatpush1.msra.mxu0 0.0
    %1139 = vmatprep.subr.mxu0 0.0
    %1140 = vmatpush1.msra.mxu0 0.0
    %1141 = vmatprep.subr.mxu0 0.0
    %1142 = vmatpush1.msra.mxu0 0.0
    %1143 = vmatprep.subr.mxu0 0.0
    %1144 = vmatpush1.msra.mxu0 0.0
    %1145 = vmatprep.subr.mxu0 0.0
    %1146 = vmatpush1.msra.mxu0 0.0
    %1147 = vmatprep.subr.mxu0 0.0
    %1148 = vmatpush1.msra.mxu0 0.0
    %1149 = vmatprep.subr.mxu0 0.0
    %1150 = vmatpush1.msra.mxu0 0.0
    %1151 = vmatprep.subr.mxu0 0.0
    %1152 = vmatpush1.msra.mxu0 0.0
    %1153 = vmatprep.subr.mxu0 0.0
    %1154 = vmatpush1.msra.mxu0 0.0
    %1155 = vmatprep.mubr.f32.mxu0 0.0
    %1156 = vmatmul.mubr.f32.gmra.mrb[0].mxu0 %v1089
    %v1157 = vpop.f32.mrb[0].mxu0
    %v1158 = vadd.f32 0.0, %v1157
    %v1159 = vpop.f32.mrb[0].mxu0
    %1160 = vdwg.mxu0
    %v1162 = vrot.slane %v1158, 4
    %v1164 = vadd.f32 %v862, %v1162
    %v1165 = vadd.f32 %v1164, %v480
    %v1166 = vxor.u32 %v1165, 2147483648
    %v1167 = vmul.f32 %v1166, 1.442695
    %v1168 = vpow.pop %v1167
    %v1169 = vadd.f32 %v1168, 1.0
    %v1170 = vrcp.pop %v1169
    %v1171 = vmul.f32 1.0, %v1170
    %v1172 = vtanh.pop %v1165
    %v1174 = vrot.slane %v1073, 6
    %v1176 = vmul.f32 %v1171, %v1174
    %1178 = vrot.lane.b32.xlu0 %v1172, 32
    %v1179 = vpop.permute.xlu0 %1178
    %v1181 = vmul.f32 %v1171, %v1179
    %1183 = vrot.lane.b32.xlu0 %v1181, 32
    %v1184 = vpop.permute.xlu0 %1183
    %v1186 = vadd.f32 %v1176, %v1184
    %v1187 = vtanh.pop %v1186
    %1189 = vrot.lane.b32.xlu0 %v1187, 32
    %v1190 = vpop.permute.xlu0 %1189
    %v1192 = vmul.f32 %v1171, %v1190
    %1194 = vrot.lane.b32.xlu0 %v1192, 64
    %v1195 = vpop.permute.xlu0 %1194
    %1197 = vst.msk [vmem:[#allocation2 + $0x8] sm:$0x30] %vm740, %v1195
    %1198 = vst.msk [vmem:[#allocation2 - $0x2] sm:$0x30] %vm742, %v1195
    %v1199 = vrot.slane %v1192, 4
    %1200 = vrot.lane.b32.xlu0 %v1199, 64
    %v1201 = vpop.permute.xlu0 %1200
    %v1202 = vsel %vm159, %v1201, 0
    %1204 = vmatprep.subr.mxu0 0.0
    %1205 = vmatpush1.msra.mxu0 %v42
    %1206 = vmatprep.subr.mxu0 0.0
    %1207 = vmatpush1.msra.mxu0 %v43
    %1208 = vmatprep.subr.mxu0 0.0
    %1209 = vmatpush1.msra.mxu0 %v44
    %1210 = vmatprep.subr.mxu0 0.0
    %1211 = vmatpush1.msra.mxu0 %v45
    %1212 = vmatprep.subr.mxu0 0.0
    %1213 = vmatpush1.msra.mxu0 0.0
    %1214 = vmatprep.subr.mxu0 0.0
    %1215 = vmatpush1.msra.mxu0 0.0
    %1216 = vmatprep.subr.mxu0 0.0
    %1217 = vmatpush1.msra.mxu0 0.0
    %1218 = vmatprep.subr.mxu0 0.0
    %1219 = vmatpush1.msra.mxu0 0.0
    %1220 = vmatprep.subr.mxu0 0.0
    %1221 = vmatpush1.msra.mxu0 0.0
    %1222 = vmatprep.subr.mxu0 0.0
    %1223 = vmatpush1.msra.mxu0 0.0
    %1224 = vmatprep.subr.mxu0 0.0
    %1225 = vmatpush1.msra.mxu0 0.0
    %1226 = vmatprep.subr.mxu0 0.0
    %1227 = vmatpush1.msra.mxu0 0.0
    %1228 = vmatprep.subr.mxu0 0.0
    %1229 = vmatpush1.msra.mxu0 0.0
    %1230 = vmatprep.subr.mxu0 0.0
    %1231 = vmatpush1.msra.mxu0 0.0
    %1232 = vmatprep.subr.mxu0 0.0
    %1233 = vmatpush1.msra.mxu0 0.0
    %1234 = vmatprep.subr.mxu0 0.0
    %1235 = vmatpush1.msra.mxu0 0.0
    %1236 = vmatprep.subr.mxu0 0.0
    %1237 = vmatpush1.msra.mxu0 0.0
    %1238 = vmatprep.subr.mxu0 0.0
    %1239 = vmatpush1.msra.mxu0 0.0
    %1240 = vmatprep.subr.mxu0 0.0
    %1241 = vmatpush1.msra.mxu0 0.0
    %1242 = vmatprep.subr.mxu0 0.0
    %1243 = vmatpush1.msra.mxu0 0.0
    %1244 = vmatprep.subr.mxu0 0.0
    %1245 = vmatpush1.msra.mxu0 0.0
    %1246 = vmatprep.subr.mxu0 0.0
    %1247 = vmatpush1.msra.mxu0 0.0
    %1248 = vmatprep.subr.mxu0 0.0
    %1249 = vmatpush1.msra.mxu0 0.0
    %1250 = vmatprep.subr.mxu0 0.0
    %1251 = vmatpush1.msra.mxu0 0.0
    %1252 = vmatprep.subr.mxu0 0.0
    %1253 = vmatpush1.msra.mxu0 0.0
    %1254 = vmatprep.subr.mxu0 0.0
    %1255 = vmatpush1.msra.mxu0 0.0
    %1256 = vmatprep.subr.mxu0 0.0
    %1257 = vmatpush1.msra.mxu0 0.0
    %1258 = vmatprep.subr.mxu0 0.0
    %1259 = vmatpush1.msra.mxu0 0.0
    %1260 = vmatprep.subr.mxu0 0.0
    %1261 = vmatpush1.msra.mxu0 0.0
    %1262 = vmatprep.subr.mxu0 0.0
    %1263 = vmatpush1.msra.mxu0 0.0
    %1264 = vmatprep.subr.mxu0 0.0
    %1265 = vmatpush1.msra.mxu0 0.0
    %1266 = vmatprep.subr.mxu0 0.0
    %1267 = vmatpush1.msra.mxu0 0.0
    %1268 = vmatprep.mubr.f32.mxu0 0.0
    %1269 = vmatmul.mubr.f32.gmra.mrb[0].mxu0 %v1202
    %v1270 = vpop.f32.mrb[0].mxu0
    %v1271 = vadd.f32 0.0, %v1270
    %v1272 = vpop.f32.mrb[0].mxu0
    %1273 = vdwg.mxu0
    %v1275 = vrot.slane %v1271, 2
    %v1277 = vadd.f32 %v975, %v1275
    %v1278 = vadd.f32 %v1277, %v480
    %v1279 = vxor.u32 %v1278, 2147483648
    %v1280 = vmul.f32 %v1279, 1.442695
    %v1281 = vpow.pop %v1280
    %v1282 = vadd.f32 %v1281, 1.0
    %v1283 = vrcp.pop %v1282
    %v1284 = vmul.f32 1.0, %v1283
    %v1285 = vtanh.pop %v1278
    %v1287 = vrot.slane %v1186, 6
    %v1289 = vmul.f32 %v1284, %v1287
    %1291 = vrot.lane.b32.xlu0 %v1285, 32
    %v1292 = vpop.permute.xlu0 %1291
    %v1294 = vmul.f32 %v1284, %v1292
    %1296 = vrot.lane.b32.xlu0 %v1294, 32
    %v1297 = vpop.permute.xlu0 %1296
    %v1299 = vadd.f32 %v1289, %v1297
    %v1300 = vtanh.pop %v1299
    %1302 = vrot.lane.b32.xlu0 %v1300, 32
    %v1303 = vpop.permute.xlu0 %1302
    %v1305 = vmul.f32 %v1284, %v1303
    %1307 = vrot.lane.b32.xlu0 %v1305, 64
    %v1308 = vpop.permute.xlu0 %1307
    %1310 = vst.msk [vmem:[#allocation2 + $0x8] sm:$0xc0] %vm855, %v1308
    %1311 = vst.msk [vmem:[#allocation2 - $0x6] sm:$0xc0] %vm857, %v1308
    %v1312 = vld [vmem:[#allocation2] sm:$0xff]
    %v1313 = vld [vmem:[#allocation2 + $0x8] sm:$0xff]
    %v1315 = vsel %vm159, %v1312, 0
    %v1318 = vsel %vm159, %v1313, 0
    %1320 = vmatprep.subr.mxu0 0.0
    %1321 = vmatpush1.msra.mxu0 %v47
    %1322 = vmatprep.subr.mxu0 0.0
    %1323 = vmatpush1.msra.mxu0 %v48
    %1324 = vmatprep.subr.mxu0 0.0
    %1325 = vmatpush1.msra.mxu0 %v49
    %1326 = vmatprep.subr.mxu0 0.0
    %1327 = vmatpush1.msra.mxu0 %v50
    %1328 = vmatprep.subr.mxu0 0.0
    %1329 = vmatpush1.msra.mxu0 0.0
    %1330 = vmatprep.subr.mxu0 0.0
    %1331 = vmatpush1.msra.mxu0 0.0
    %1332 = vmatprep.subr.mxu0 0.0
    %1333 = vmatpush1.msra.mxu0 0.0
    %1334 = vmatprep.subr.mxu0 0.0
    %1335 = vmatpush1.msra.mxu0 0.0
    %1336 = vmatprep.subr.mxu0 0.0
    %1337 = vmatpush1.msra.mxu0 0.0
    %1338 = vmatprep.subr.mxu0 0.0
    %1339 = vmatpush1.msra.mxu0 0.0
    %1340 = vmatprep.subr.mxu0 0.0
    %1341 = vmatpush1.msra.mxu0 0.0
    %1342 = vmatprep.subr.mxu0 0.0
    %1343 = vmatpush1.msra.mxu0 0.0
    %1344 = vmatprep.subr.mxu0 0.0
    %1345 = vmatpush1.msra.mxu0 0.0
    %1346 = vmatprep.subr.mxu0 0.0
    %1347 = vmatpush1.msra.mxu0 0.0
    %1348 = vmatprep.subr.mxu0 0.0
    %1349 = vmatpush1.msra.mxu0 0.0
    %1350 = vmatprep.subr.mxu0 0.0
    %1351 = vmatpush1.msra.mxu0 0.0
    %1352 = vmatprep.subr.mxu0 0.0
    %1353 = vmatpush1.msra.mxu0 0.0
    %1354 = vmatprep.subr.mxu0 0.0
    %1355 = vmatpush1.msra.mxu0 0.0
    %1356 = vmatprep.subr.mxu0 0.0
    %1357 = vmatpush1.msra.mxu0 0.0
    %1358 = vmatprep.subr.mxu0 0.0
    %1359 = vmatpush1.msra.mxu0 0.0
    %1360 = vmatprep.subr.mxu0 0.0
    %1361 = vmatpush1.msra.mxu0 0.0
    %1362 = vmatprep.subr.mxu0 0.0
    %1363 = vmatpush1.msra.mxu0 0.0
    %1364 = vmatprep.subr.mxu0 0.0
    %1365 = vmatpush1.msra.mxu0 0.0
    %1366 = vmatprep.subr.mxu0 0.0
    %1367 = vmatpush1.msra.mxu0 0.0
    %1368 = vmatprep.subr.mxu0 0.0
    %1369 = vmatpush1.msra.mxu0 0.0
    %1370 = vmatprep.subr.mxu0 0.0
    %1371 = vmatpush1.msra.mxu0 0.0
    %1372 = vmatprep.subr.mxu0 0.0
    %1373 = vmatpush1.msra.mxu0 0.0
    %1374 = vmatprep.subr.mxu0 0.0
    %1375 = vmatpush1.msra.mxu0 0.0
    %1376 = vmatprep.subr.mxu0 0.0
    %1377 = vmatpush1.msra.mxu0 0.0
    %1378 = vmatprep.subr.mxu0 0.0
    %1379 = vmatpush1.msra.mxu0 0.0
    %1380 = vmatprep.subr.mxu0 0.0
    %1381 = vmatpush1.msra.mxu0 0.0
    %1382 = vmatprep.subr.mxu0 0.0
    %1383 = vmatpush1.msra.mxu0 0.0
    %1384 = vmatprep.mubr.f32.mxu0 0.0
    %1385 = vmatmul.mubr.f32.gmra.mrb[0].mxu0 %v1315
    %v1386 = vpop.f32.mrb[0].mxu0
    %v1387 = vadd.f32 0.0, %v1386
    %v1388 = vpop.f32.mrb[0].mxu0
    %1389 = vmatprep.mubr.f32.mxu0 0.0
    %1390 = vmatmul.mubr.f32.gmra.mrb[0].mxu0 %v1318
    %v1391 = vpop.f32.mrb[0].mxu0
    %v1392 = vadd.f32 0.0, %v1391
    %v1393 = vpop.f32.mrb[0].mxu0
    %1394 = vdwg.mxu0
    %1395 = vmatprep.subr.mxu0 0.0
    %1396 = vmatpush1.msra.mxu0 %v51
    %1397 = vmatprep.subr.mxu0 0.0
    %1398 = vmatpush1.msra.mxu0 %v52
    %1399 = vmatprep.subr.mxu0 0.0
    %1400 = vmatpush1.msra.mxu0 %v53
    %1401 = vmatprep.subr.mxu0 0.0
    %1402 = vmatpush1.msra.mxu0 %v54
    %1403 = vmatprep.subr.mxu0 0.0
    %1404 = vmatpush1.msra.mxu0 0.0
    %1405 = vmatprep.subr.mxu0 0.0
    %1406 = vmatpush1.msra.mxu0 0.0
    %1407 = vmatprep.subr.mxu0 0.0
    %1408 = vmatpush1.msra.mxu0 0.0
    %1409 = vmatprep.subr.mxu0 0.0
    %1410 = vmatpush1.msra.mxu0 0.0
    %1411 = vmatprep.subr.mxu0 0.0
    %1412 = vmatpush1.msra.mxu0 0.0
    %1413 = vmatprep.subr.mxu0 0.0
    %1414 = vmatpush1.msra.mxu0 0.0
    %1415 = vmatprep.subr.mxu0 0.0
    %1416 = vmatpush1.msra.mxu0 0.0
    %1417 = vmatprep.subr.mxu0 0.0
    %1418 = vmatpush1.msra.mxu0 0.0
    %1419 = vmatprep.subr.mxu0 0.0
    %1420 = vmatpush1.msra.mxu0 0.0
    %1421 = vmatprep.subr.mxu0 0.0
    %1422 = vmatpush1.msra.mxu0 0.0
    %1423 = vmatprep.subr.mxu0 0.0
    %1424 = vmatpush1.msra.mxu0 0.0
    %1425 = vmatprep.subr.mxu0 0.0
    %1426 = vmatpush1.msra.mxu0 0.0
    %1427 = vmatprep.subr.mxu0 0.0
    %1428 = vmatpush1.msra.mxu0 0.0
    %1429 = vmatprep.subr.mxu0 0.0
    %1430 = vmatpush1.msra.mxu0 0.0
    %1431 = vmatprep.subr.mxu0 0.0
    %1432 = vmatpush1.msra.mxu0 0.0
    %1433 = vmatprep.subr.mxu0 0.0
    %1434 = vmatpush1.msra.mxu0 0.0
    %1435 = vmatprep.subr.mxu0 0.0
    %1436 = vmatpush1.msra.mxu0 0.0
    %1437 = vmatprep.subr.mxu0 0.0
    %1438 = vmatpush1.msra.mxu0 0.0
    %1439 = vmatprep.subr.mxu0 0.0
    %1440 = vmatpush1.msra.mxu0 0.0
    %1441 = vmatprep.subr.mxu0 0.0
    %1442 = vmatpush1.msra.mxu0 0.0
    %1443 = vmatprep.subr.mxu0 0.0
    %1444 = vmatpush1.msra.mxu0 0.0
    %1445 = vmatprep.subr.mxu0 0.0
    %1446 = vmatpush1.msra.mxu0 0.0
    %1447 = vmatprep.subr.mxu0 0.0
    %1448 = vmatpush1.msra.mxu0 0.0
    %1449 = vmatprep.subr.mxu0 0.0
    %1450 = vmatpush1.msra.mxu0 0.0
    %1451 = vmatprep.subr.mxu0 0.0
    %1452 = vmatpush1.msra.mxu0 0.0
    %1453 = vmatprep.subr.mxu0 0.0
    %1454 = vmatpush1.msra.mxu0 0.0
    %1455 = vmatprep.subr.mxu0 0.0
    %1456 = vmatpush1.msra.mxu0 0.0
    %1457 = vmatprep.subr.mxu0 0.0
    %1458 = vmatpush1.msra.mxu0 0.0
    %1459 = vmatprep.mubr.f32.mxu0 0.0
    %1460 = vmatmul.mubr.f32.gmra.mrb[0].mxu0 %v1315
    %v1461 = vpop.f32.mrb[0].mxu0
    %v1462 = vadd.f32 0.0, %v1461
    %v1463 = vpop.f32.mrb[0].mxu0
    %1464 = vmatprep.mubr.f32.mxu0 0.0
    %1465 = vmatmul.mubr.f32.gmra.mrb[0].mxu0 %v1318
    %v1466 = vpop.f32.mrb[0].mxu0
    %v1467 = vadd.f32 0.0, %v1466
    %v1468 = vpop.f32.mrb[0].mxu0
    %1469 = vdwg.mxu0
    %v1471 = vrot.slane %v1467, 6
    %v1473 = vadd.f32 %v1387, %v1471
    %1474 = vmatprep.subr.mxu0 0.0
    %1475 = vmatpush1.msra.mxu0 %v55
    %1476 = vmatprep.subr.mxu0 0.0
    %1477 = vmatpush1.msra.mxu0 %v56
    %1478 = vmatprep.subr.mxu0 0.0
    %1479 = vmatpush1.msra.mxu0 %v57
    %1480 = vmatprep.subr.mxu0 0.0
    %1481 = vmatpush1.msra.mxu0 %v58
    %1482 = vmatprep.subr.mxu0 0.0
    %1483 = vmatpush1.msra.mxu0 0.0
    %1484 = vmatprep.subr.mxu0 0.0
    %1485 = vmatpush1.msra.mxu0 0.0
    %1486 = vmatprep.subr.mxu0 0.0
    %1487 = vmatpush1.msra.mxu0 0.0
    %1488 = vmatprep.subr.mxu0 0.0
    %1489 = vmatpush1.msra.mxu0 0.0
    %1490 = vmatprep.subr.mxu0 0.0
    %1491 = vmatpush1.msra.mxu0 0.0
    %1492 = vmatprep.subr.mxu0 0.0
    %1493 = vmatpush1.msra.mxu0 0.0
    %1494 = vmatprep.subr.mxu0 0.0
    %1495 = vmatpush1.msra.mxu0 0.0
    %1496 = vmatprep.subr.mxu0 0.0
    %1497 = vmatpush1.msra.mxu0 0.0
    %1498 = vmatprep.subr.mxu0 0.0
    %1499 = vmatpush1.msra.mxu0 0.0
    %1500 = vmatprep.subr.mxu0 0.0
    %1501 = vmatpush1.msra.mxu0 0.0
    %1502 = vmatprep.subr.mxu0 0.0
    %1503 = vmatpush1.msra.mxu0 0.0
    %1504 = vmatprep.subr.mxu0 0.0
    %1505 = vmatpush1.msra.mxu0 0.0
    %1506 = vmatprep.subr.mxu0 0.0
    %1507 = vmatpush1.msra.mxu0 0.0
    %1508 = vmatprep.subr.mxu0 0.0
    %1509 = vmatpush1.msra.mxu0 0.0
    %1510 = vmatprep.subr.mxu0 0.0
    %1511 = vmatpush1.msra.mxu0 0.0
    %1512 = vmatprep.subr.mxu0 0.0
    %1513 = vmatpush1.msra.mxu0 0.0
    %1514 = vmatprep.subr.mxu0 0.0
    %1515 = vmatpush1.msra.mxu0 0.0
    %1516 = vmatprep.subr.mxu0 0.0
    %1517 = vmatpush1.msra.mxu0 0.0
    %1518 = vmatprep.subr.mxu0 0.0
    %1519 = vmatpush1.msra.mxu0 0.0
    %1520 = vmatprep.subr.mxu0 0.0
    %1521 = vmatpush1.msra.mxu0 0.0
    %1522 = vmatprep.subr.mxu0 0.0
    %1523 = vmatpush1.msra.mxu0 0.0
    %1524 = vmatprep.subr.mxu0 0.0
    %1525 = vmatpush1.msra.mxu0 0.0
    %1526 = vmatprep.subr.mxu0 0.0
    %1527 = vmatpush1.msra.mxu0 0.0
    %1528 = vmatprep.subr.mxu0 0.0
    %1529 = vmatpush1.msra.mxu0 0.0
    %1530 = vmatprep.subr.mxu0 0.0
    %1531 = vmatpush1.msra.mxu0 0.0
    %1532 = vmatprep.subr.mxu0 0.0
    %1533 = vmatpush1.msra.mxu0 0.0
    %1534 = vmatprep.subr.mxu0 0.0
    %1535 = vmatpush1.msra.mxu0 0.0
    %1536 = vmatprep.subr.mxu0 0.0
    %1537 = vmatpush1.msra.mxu0 0.0
    %1538 = vmatprep.mubr.f32.mxu0 0.0
    %1539 = vmatmul.mubr.f32.gmra.mrb[0].mxu0 %v404
    %v1540 = vpop.f32.mrb[0].mxu0
    %v1541 = vadd.f32 0.0, %v1540
    %v1542 = vpop.f32.mrb[0].mxu0
    %1543 = vdwg.mxu0
    %v1544 = vadd.f32 %v1473, %v1541
    %v1545 = vlaneseq
    %v1546 = vshrl.u32 %v1545, 7
    %v1547 = vsub.s32 0, %v1546
    %v1548 = vrot.slane %v59, %v1547
    %v1549 = vadd.f32 %v1544, %v1548
    %v1550 = vxor.u32 %v1549, 2147483648
    %v1551 = vmul.f32 %v1550, 1.442695
    %v1552 = vpow.pop %v1551
    %v1553 = vadd.f32 %v1552, 1.0
    %v1554 = vrcp.pop %v1553
    %v1555 = vmul.f32 1.0, %v1554
    %v1556 = vtanh.pop %v1549
    %v1557 = vmul.f32 %v1555, 0.0
    %1559 = vrot.lane.b32.xlu0 %v1556, 32
    %v1560 = vpop.permute.xlu0 %1559
    %v1562 = vmul.f32 %v1555, %v1560
    %1564 = vrot.lane.b32.xlu0 %v1562, 32
    %v1565 = vpop.permute.xlu0 %1564
    %v1567 = vadd.f32 %v1557, %v1565
    %v1568 = vtanh.pop %v1567
    %1570 = vrot.lane.b32.xlu0 %v1568, 32
    %v1571 = vpop.permute.xlu0 %1570
    %v1573 = vmul.f32 %v1555, %v1571
    %1575 = vrot.lane.b32.xlu0 %v1573, 64
    %v1576 = vpop.permute.xlu0 %1575
    %vm1578 = vcmask 122880
    %1579 = vst.msk [vmem:[#allocation3] sm:$0x1] %vm1578, %v1576
    %vm1580 = vcmask 254080
    %1581 = vst.msk [vmem:[#allocation3 + $0x7] sm:$0x1] %vm1580, %v1576
    %vm1582 = vcmask 123905
    %1583 = vst.msk [vmem:[#allocation3 + $0x7] sm:$0x2] %vm1582, %v1576
    %vm1584 = vcmask 255105
    %1585 = vst.msk [vmem:[#allocation3 + $0xe] sm:$0x2] %vm1584, %v1576
    %v1586 = vrot.slane %v1467, 2
    %v1588 = vadd.f32 %v1387, %v1586
    %v1589 = vsel %vm159, %v1576, 0
    %1591 = vmatprep.subr.mxu0 0.0
    %1592 = vmatpush1.msra.mxu0 %v55
    %1593 = vmatprep.subr.mxu0 0.0
    %1594 = vmatpush1.msra.mxu0 %v56
    %1595 = vmatprep.subr.mxu0 0.0
    %1596 = vmatpush1.msra.mxu0 %v57
    %1597 = vmatprep.subr.mxu0 0.0
    %1598 = vmatpush1.msra.mxu0 %v58
    %1599 = vmatprep.subr.mxu0 0.0
    %1600 = vmatpush1.msra.mxu0 0.0
    %1601 = vmatprep.subr.mxu0 0.0
    %1602 = vmatpush1.msra.mxu0 0.0
    %1603 = vmatprep.subr.mxu0 0.0
    %1604 = vmatpush1.msra.mxu0 0.0
    %1605 = vmatprep.subr.mxu0 0.0
    %1606 = vmatpush1.msra.mxu0 0.0
    %1607 = vmatprep.subr.mxu0 0.0
    %1608 = vmatpush1.msra.mxu0 0.0
    %1609 = vmatprep.subr.mxu0 0.0
    %1610 = vmatpush1.msra.mxu0 0.0
    %1611 = vmatprep.subr.mxu0 0.0
    %1612 = vmatpush1.msra.mxu0 0.0
    %1613 = vmatprep.subr.mxu0 0.0
    %1614 = vmatpush1.msra.mxu0 0.0
    %1615 = vmatprep.subr.mxu0 0.0
    %1616 = vmatpush1.msra.mxu0 0.0
    %1617 = vmatprep.subr.mxu0 0.0
    %1618 = vmatpush1.msra.mxu0 0.0
    %1619 = vmatprep.subr.mxu0 0.0
    %1620 = vmatpush1.msra.mxu0 0.0
    %1621 = vmatprep.subr.mxu0 0.0
    %1622 = vmatpush1.msra.mxu0 0.0
    %1623 = vmatprep.subr.mxu0 0.0
    %1624 = vmatpush1.msra.mxu0 0.0
    %1625 = vmatprep.subr.mxu0 0.0
    %1626 = vmatpush1.msra.mxu0 0.0
    %1627 = vmatprep.subr.mxu0 0.0
    %1628 = vmatpush1.msra.mxu0 0.0
    %1629 = vmatprep.subr.mxu0 0.0
    %1630 = vmatpush1.msra.mxu0 0.0
    %1631 = vmatprep.subr.mxu0 0.0
    %1632 = vmatpush1.msra.mxu0 0.0
    %1633 = vmatprep.subr.mxu0 0.0
    %1634 = vmatpush1.msra.mxu0 0.0
    %1635 = vmatprep.subr.mxu0 0.0
    %1636 = vmatpush1.msra.mxu0 0.0
    %1637 = vmatprep.subr.mxu0 0.0
    %1638 = vmatpush1.msra.mxu0 0.0
    %1639 = vmatprep.subr.mxu0 0.0
    %1640 = vmatpush1.msra.mxu0 0.0
    %1641 = vmatprep.subr.mxu0 0.0
    %1642 = vmatpush1.msra.mxu0 0.0
    %1643 = vmatprep.subr.mxu0 0.0
    %1644 = vmatpush1.msra.mxu0 0.0
    %1645 = vmatprep.subr.mxu0 0.0
    %1646 = vmatpush1.msra.mxu0 0.0
    %1647 = vmatprep.subr.mxu0 0.0
    %1648 = vmatpush1.msra.mxu0 0.0
    %1649 = vmatprep.subr.mxu0 0.0
    %1650 = vmatpush1.msra.mxu0 0.0
    %1651 = vmatprep.subr.mxu0 0.0
    %1652 = vmatpush1.msra.mxu0 0.0
    %1653 = vmatprep.subr.mxu0 0.0
    %1654 = vmatpush1.msra.mxu0 0.0
    %1655 = vmatprep.mubr.f32.mxu0 0.0
    %1656 = vmatmul.mubr.f32.gmra.mrb[0].mxu0 %v1589
    %v1657 = vpop.f32.mrb[0].mxu0
    %v1658 = vadd.f32 0.0, %v1657
    %v1659 = vpop.f32.mrb[0].mxu0
    %1660 = vdwg.mxu0
    %v1662 = vrot.slane %v1658, 6
    %v1664 = vadd.f32 %v1588, %v1662
    %v1665 = vadd.f32 %v1664, %v1548
    %v1666 = vxor.u32 %v1665, 2147483648
    %v1667 = vmul.f32 %v1666, 1.442695
    %v1668 = vpow.pop %v1667
    %v1669 = vadd.f32 %v1668, 1.0
    %v1670 = vrcp.pop %v1669
    %v1671 = vmul.f32 1.0, %v1670
    %v1672 = vtanh.pop %v1665
    %v1674 = vrot.slane %v1567, 6
    %v1676 = vmul.f32 %v1671, %v1674
    %1678 = vrot.lane.b32.xlu0 %v1672, 32
    %v1679 = vpop.permute.xlu0 %1678
    %v1681 = vmul.f32 %v1671, %v1679
    %1683 = vrot.lane.b32.xlu0 %v1681, 32
    %v1684 = vpop.permute.xlu0 %1683
    %v1686 = vadd.f32 %v1676, %v1684
    %v1687 = vtanh.pop %v1686
    %1689 = vrot.lane.b32.xlu0 %v1687, 32
    %v1690 = vpop.permute.xlu0 %1689
    %v1692 = vmul.f32 %v1671, %v1690
    %1694 = vrot.lane.b32.xlu0 %v1692, 64
    %v1695 = vpop.permute.xlu0 %1694
    %vm1697 = vcmask 124930
    %1698 = vst.msk [vmem:[#allocation3 - $0x1] sm:$0x4] %vm1697, %v1695
    %vm1699 = vcmask 256130
    %1700 = vst.msk [vmem:[#allocation3 + $0x4] sm:$0x4] %vm1699, %v1695
    %vm1701 = vcmask 125955
    %1702 = vst.msk [vmem:[#allocation3 + $0x6] sm:$0x8] %vm1701, %v1695
    %vm1703 = vcmask 257155
    %1704 = vst.msk [vmem:[#allocation3 + $0xb] sm:$0x8] %vm1703, %v1695
    %v1705 = vrot.slane %v1692, 2
    %1706 = vrot.lane.b32.xlu0 %v1705, 64
    %v1707 = vpop.permute.xlu0 %1706
    %v1708 = vsel %vm159, %v1707, 0
    %1710 = vmatprep.subr.mxu0 0.0
    %1711 = vmatpush1.msra.mxu0 %v55
    %1712 = vmatprep.subr.mxu0 0.0
    %1713 = vmatpush1.msra.mxu0 %v56
    %1714 = vmatprep.subr.mxu0 0.0
    %1715 = vmatpush1.msra.mxu0 %v57
    %1716 = vmatprep.subr.mxu0 0.0
    %1717 = vmatpush1.msra.mxu0 %v58
    %1718 = vmatprep.subr.mxu0 0.0
    %1719 = vmatpush1.msra.mxu0 0.0
    %1720 = vmatprep.subr.mxu0 0.0
    %1721 = vmatpush1.msra.mxu0 0.0
    %1722 = vmatprep.subr.mxu0 0.0
    %1723 = vmatpush1.msra.mxu0 0.0
    %1724 = vmatprep.subr.mxu0 0.0
    %1725 = vmatpush1.msra.mxu0 0.0
    %1726 = vmatprep.subr.mxu0 0.0
    %1727 = vmatpush1.msra.mxu0 0.0
    %1728 = vmatprep.subr.mxu0 0.0
    %1729 = vmatpush1.msra.mxu0 0.0
    %1730 = vmatprep.subr.mxu0 0.0
    %1731 = vmatpush1.msra.mxu0 0.0
    %1732 = vmatprep.subr.mxu0 0.0
    %1733 = vmatpush1.msra.mxu0 0.0
    %1734 = vmatprep.subr.mxu0 0.0
    %1735 = vmatpush1.msra.mxu0 0.0
    %1736 = vmatprep.subr.mxu0 0.0
    %1737 = vmatpush1.msra.mxu0 0.0
    %1738 = vmatprep.subr.mxu0 0.0
    %1739 = vmatpush1.msra.mxu0 0.0
    %1740 = vmatprep.subr.mxu0 0.0
    %1741 = vmatpush1.msra.mxu0 0.0
    %1742 = vmatprep.subr.mxu0 0.0
    %1743 = vmatpush1.msra.mxu0 0.0
    %1744 = vmatprep.subr.mxu0 0.0
    %1745 = vmatpush1.msra.mxu0 0.0
    %1746 = vmatprep.subr.mxu0 0.0
    %1747 = vmatpush1.msra.mxu0 0.0
    %1748 = vmatprep.subr.mxu0 0.0
    %1749 = vmatpush1.msra.mxu0 0.0
    %1750 = vmatprep.subr.mxu0 0.0
    %1751 = vmatpush1.msra.mxu0 0.0
    %1752 = vmatprep.subr.mxu0 0.0
    %1753 = vmatpush1.msra.mxu0 0.0
    %1754 = vmatprep.subr.mxu0 0.0
    %1755 = vmatpush1.msra.mxu0 0.0
    %1756 = vmatprep.subr.mxu0 0.0
    %1757 = vmatpush1.msra.mxu0 0.0
    %1758 = vmatprep.subr.mxu0 0.0
    %1759 = vmatpush1.msra.mxu0 0.0
    %1760 = vmatprep.subr.mxu0 0.0
    %1761 = vmatpush1.msra.mxu0 0.0
    %1762 = vmatprep.subr.mxu0 0.0
    %1763 = vmatpush1.msra.mxu0 0.0
    %1764 = vmatprep.subr.mxu0 0.0
    %1765 = vmatpush1.msra.mxu0 0.0
    %1766 = vmatprep.subr.mxu0 0.0
    %1767 = vmatpush1.msra.mxu0 0.0
    %1768 = vmatprep.subr.mxu0 0.0
    %1769 = vmatpush1.msra.mxu0 0.0
    %1770 = vmatprep.subr.mxu0 0.0
    %1771 = vmatpush1.msra.mxu0 0.0
    %1772 = vmatprep.subr.mxu0 0.0
    %1773 = vmatpush1.msra.mxu0 0.0
    %1774 = vmatprep.mubr.f32.mxu0 0.0
    %1775 = vmatmul.mubr.f32.gmra.mrb[0].mxu0 %v1708
    %v1776 = vpop.f32.mrb[0].mxu0
    %v1777 = vadd.f32 0.0, %v1776
    %v1778 = vpop.f32.mrb[0].mxu0
    %1779 = vdwg.mxu0
    %v1781 = vrot.slane %v1777, 4
    %v1783 = vadd.f32 %v1473, %v1781
    %v1784 = vadd.f32 %v1783, %v1548
    %v1785 = vxor.u32 %v1784, 2147483648
    %v1786 = vmul.f32 %v1785, 1.442695
    %v1787 = vpow.pop %v1786
    %v1788 = vadd.f32 %v1787, 1.0
    %v1789 = vrcp.pop %v1788
    %v1790 = vmul.f32 1.0, %v1789
    %v1791 = vtanh.pop %v1784
    %v1793 = vrot.slane %v1686, 6
    %v1795 = vmul.f32 %v1790, %v1793
    %1797 = vrot.lane.b32.xlu0 %v1791, 32
    %v1798 = vpop.permute.xlu0 %1797
    %v1800 = vmul.f32 %v1790, %v1798
    %1802 = vrot.lane.b32.xlu0 %v1800, 32
    %v1803 = vpop.permute.xlu0 %1802
    %v1805 = vadd.f32 %v1795, %v1803
    %v1806 = vtanh.pop %v1805
    %1808 = vrot.lane.b32.xlu0 %v1806, 32
    %v1809 = vpop.permute.xlu0 %1808
    %v1811 = vmul.f32 %v1790, %v1809
    %1813 = vrot.lane.b32.xlu0 %v1811, 64
    %v1814 = vpop.permute.xlu0 %1813
    %vm1816 = vcmask 126980
    %1817 = vst.msk [vmem:[#allocation3 - $0x2] sm:$0x10] %vm1816, %v1814
    %vm1818 = vcmask 258180
    %1819 = vst.msk [vmem:[#allocation3 + $0x1] sm:$0x10] %vm1818, %v1814
    %vm1820 = vcmask 128005
    %1821 = vst.msk [vmem:[#allocation3 + $0x5] sm:$0x20] %vm1820, %v1814
    %vm1822 = vcmask 259205
    %1823 = vst.msk [vmem:[#allocation3 + $0x8] sm:$0x20] %vm1822, %v1814
    %v1824 = vrot.slane %v1811, 4
    %1825 = vrot.lane.b32.xlu0 %v1824, 64
    %v1826 = vpop.permute.xlu0 %1825
    %v1827 = vsel %vm159, %v1826, 0
    %1829 = vmatprep.subr.mxu0 0.0
    %1830 = vmatpush1.msra.mxu0 %v55
    %1831 = vmatprep.subr.mxu0 0.0
    %1832 = vmatpush1.msra.mxu0 %v56
    %1833 = vmatprep.subr.mxu0 0.0
    %1834 = vmatpush1.msra.mxu0 %v57
    %1835 = vmatprep.subr.mxu0 0.0
    %1836 = vmatpush1.msra.mxu0 %v58
    %1837 = vmatprep.subr.mxu0 0.0
    %1838 = vmatpush1.msra.mxu0 0.0
    %1839 = vmatprep.subr.mxu0 0.0
    %1840 = vmatpush1.msra.mxu0 0.0
    %1841 = vmatprep.subr.mxu0 0.0
    %1842 = vmatpush1.msra.mxu0 0.0
    %1843 = vmatprep.subr.mxu0 0.0
    %1844 = vmatpush1.msra.mxu0 0.0
    %1845 = vmatprep.subr.mxu0 0.0
    %1846 = vmatpush1.msra.mxu0 0.0
    %1847 = vmatprep.subr.mxu0 0.0
    %1848 = vmatpush1.msra.mxu0 0.0
    %1849 = vmatprep.subr.mxu0 0.0
    %1850 = vmatpush1.msra.mxu0 0.0
    %1851 = vmatprep.subr.mxu0 0.0
    %1852 = vmatpush1.msra.mxu0 0.0
    %1853 = vmatprep.subr.mxu0 0.0
    %1854 = vmatpush1.msra.mxu0 0.0
    %1855 = vmatprep.subr.mxu0 0.0
    %1856 = vmatpush1.msra.mxu0 0.0
    %1857 = vmatprep.subr.mxu0 0.0
    %1858 = vmatpush1.msra.mxu0 0.0
    %1859 = vmatprep.subr.mxu0 0.0
    %1860 = vmatpush1.msra.mxu0 0.0
    %1861 = vmatprep.subr.mxu0 0.0
    %1862 = vmatpush1.msra.mxu0 0.0
    %1863 = vmatprep.subr.mxu0 0.0
    %1864 = vmatpush1.msra.mxu0 0.0
    %1865 = vmatprep.subr.mxu0 0.0
    %1866 = vmatpush1.msra.mxu0 0.0
    %1867 = vmatprep.subr.mxu0 0.0
    %1868 = vmatpush1.msra.mxu0 0.0
    %1869 = vmatprep.subr.mxu0 0.0
    %1870 = vmatpush1.msra.mxu0 0.0
    %1871 = vmatprep.subr.mxu0 0.0
    %1872 = vmatpush1.msra.mxu0 0.0
    %1873 = vmatprep.subr.mxu0 0.0
    %1874 = vmatpush1.msra.mxu0 0.0
    %1875 = vmatprep.subr.mxu0 0.0
    %1876 = vmatpush1.msra.mxu0 0.0
    %1877 = vmatprep.subr.mxu0 0.0
    %1878 = vmatpush1.msra.mxu0 0.0
    %1879 = vmatprep.subr.mxu0 0.0
    %1880 = vmatpush1.msra.mxu0 0.0
    %1881 = vmatprep.subr.mxu0 0.0
    %1882 = vmatpush1.msra.mxu0 0.0
    %1883 = vmatprep.subr.mxu0 0.0
    %1884 = vmatpush1.msra.mxu0 0.0
    %1885 = vmatprep.subr.mxu0 0.0
    %1886 = vmatpush1.msra.mxu0 0.0
    %1887 = vmatprep.subr.mxu0 0.0
    %1888 = vmatpush1.msra.mxu0 0.0
    %1889 = vmatprep.subr.mxu0 0.0
    %1890 = vmatpush1.msra.mxu0 0.0
    %1891 = vmatprep.subr.mxu0 0.0
    %1892 = vmatpush1.msra.mxu0 0.0
    %1893 = vmatprep.mubr.f32.mxu0 0.0
    %1894 = vmatmul.mubr.f32.gmra.mrb[0].mxu0 %v1827
    %v1895 = vpop.f32.mrb[0].mxu0
    %v1896 = vadd.f32 0.0, %v1895
    %v1897 = vpop.f32.mrb[0].mxu0
    %1898 = vdwg.mxu0
    %v1900 = vrot.slane %v1896, 2
    %v1902 = vadd.f32 %v1588, %v1900
    %v1903 = vadd.f32 %v1902, %v1548
    %v1904 = vxor.u32 %v1903, 2147483648
    %v1905 = vmul.f32 %v1904, 1.442695
    %v1906 = vpow.pop %v1905
    %v1907 = vadd.f32 %v1906, 1.0
    %v1908 = vrcp.pop %v1907
    %v1909 = vmul.f32 1.0, %v1908
    %v1910 = vtanh.pop %v1903
    %v1912 = vrot.slane %v1805, 6
    %v1914 = vmul.f32 %v1909, %v1912
    %1916 = vrot.lane.b32.xlu0 %v1910, 32
    %v1917 = vpop.permute.xlu0 %1916
    %v1919 = vmul.f32 %v1909, %v1917
    %1921 = vrot.lane.b32.xlu0 %v1919, 32
    %v1922 = vpop.permute.xlu0 %1921
    %v1924 = vadd.f32 %v1914, %v1922
    %v1925 = vtanh.pop %v1924
    %1927 = vrot.lane.b32.xlu0 %v1925, 32
    %v1928 = vpop.permute.xlu0 %1927
    %v1930 = vmul.f32 %v1909, %v1928
    %1932 = vrot.lane.b32.xlu0 %v1930, 64
    %v1933 = vpop.permute.xlu0 %1932
    %vm1935 = vcmask 129030
    %1936 = vst.msk [vmem:[#allocation3 - $0x3] sm:$0x40] %vm1935, %v1933
    %vm1937 = vcmask 260230
    %1938 = vst.msk [vmem:[#allocation3 - $0x2] sm:$0x40] %vm1937, %v1933
    %vm1939 = vcmask 130055
    %1940 = vst.msk [vmem:[#allocation3 + $0x4] sm:$0x80] %vm1939, %v1933
    %vm1941 = vcmask 261255
    %1942 = vst.msk [vmem:[#allocation3 + $0x5] sm:$0x80] %vm1941, %v1933
    %v1944 = vrot.slane %v1462, 6
    %v1946 = vadd.f32 %v1392, %v1944
    %v1947 = vrot.slane %v1930, 6
    %1948 = vrot.lane.b32.xlu0 %v1947, 64
    %v1949 = vpop.permute.xlu0 %1948
    %v1950 = vsel %vm159, %v1949, 0
    %1952 = vmatprep.subr.mxu0 0.0
    %1953 = vmatpush1.msra.mxu0 %v55
    %1954 = vmatprep.subr.mxu0 0.0
    %1955 = vmatpush1.msra.mxu0 %v56
    %1956 = vmatprep.subr.mxu0 0.0
    %1957 = vmatpush1.msra.mxu0 %v57
    %1958 = vmatprep.subr.mxu0 0.0
    %1959 = vmatpush1.msra.mxu0 %v58
    %1960 = vmatprep.subr.mxu0 0.0
    %1961 = vmatpush1.msra.mxu0 0.0
    %1962 = vmatprep.subr.mxu0 0.0
    %1963 = vmatpush1.msra.mxu0 0.0
    %1964 = vmatprep.subr.mxu0 0.0
    %1965 = vmatpush1.msra.mxu0 0.0
    %1966 = vmatprep.subr.mxu0 0.0
    %1967 = vmatpush1.msra.mxu0 0.0
    %1968 = vmatprep.subr.mxu0 0.0
    %1969 = vmatpush1.msra.mxu0 0.0
    %1970 = vmatprep.subr.mxu0 0.0
    %1971 = vmatpush1.msra.mxu0 0.0
    %1972 = vmatprep.subr.mxu0 0.0
    %1973 = vmatpush1.msra.mxu0 0.0
    %1974 = vmatprep.subr.mxu0 0.0
    %1975 = vmatpush1.msra.mxu0 0.0
    %1976 = vmatprep.subr.mxu0 0.0
    %1977 = vmatpush1.msra.mxu0 0.0
    %1978 = vmatprep.subr.mxu0 0.0
    %1979 = vmatpush1.msra.mxu0 0.0
    %1980 = vmatprep.subr.mxu0 0.0
    %1981 = vmatpush1.msra.mxu0 0.0
    %1982 = vmatprep.subr.mxu0 0.0
    %1983 = vmatpush1.msra.mxu0 0.0
    %1984 = vmatprep.subr.mxu0 0.0
    %1985 = vmatpush1.msra.mxu0 0.0
    %1986 = vmatprep.subr.mxu0 0.0
    %1987 = vmatpush1.msra.mxu0 0.0
    %1988 = vmatprep.subr.mxu0 0.0
    %1989 = vmatpush1.msra.mxu0 0.0
    %1990 = vmatprep.subr.mxu0 0.0
    %1991 = vmatpush1.msra.mxu0 0.0
    %1992 = vmatprep.subr.mxu0 0.0
    %1993 = vmatpush1.msra.mxu0 0.0
    %1994 = vmatprep.subr.mxu0 0.0
    %1995 = vmatpush1.msra.mxu0 0.0
    %1996 = vmatprep.subr.mxu0 0.0
    %1997 = vmatpush1.msra.mxu0 0.0
    %1998 = vmatprep.subr.mxu0 0.0
    %1999 = vmatpush1.msra.mxu0 0.0
    %2000 = vmatprep.subr.mxu0 0.0
    %2001 = vmatpush1.msra.mxu0 0.0
    %2002 = vmatprep.subr.mxu0 0.0
    %2003 = vmatpush1.msra.mxu0 0.0
    %2004 = vmatprep.subr.mxu0 0.0
    %2005 = vmatpush1.msra.mxu0 0.0
    %2006 = vmatprep.subr.mxu0 0.0
    %2007 = vmatpush1.msra.mxu0 0.0
    %2008 = vmatprep.subr.mxu0 0.0
    %2009 = vmatpush1.msra.mxu0 0.0
    %2010 = vmatprep.subr.mxu0 0.0
    %2011 = vmatpush1.msra.mxu0 0.0
    %2012 = vmatprep.subr.mxu0 0.0
    %2013 = vmatpush1.msra.mxu0 0.0
    %2014 = vmatprep.subr.mxu0 0.0
    %2015 = vmatpush1.msra.mxu0 0.0
    %2016 = vmatprep.mubr.f32.mxu0 0.0
    %2017 = vmatmul.mubr.f32.gmra.mrb[0].mxu0 %v1950
    %v2018 = vpop.f32.mrb[0].mxu0
    %v2019 = vadd.f32 0.0, %v2018
    %v2020 = vpop.f32.mrb[0].mxu0
    %2021 = vdwg.mxu0
    %v2022 = vadd.f32 %v1946, %v2019
    %v2023 = vadd.f32 %v2022, %v1548
    %v2024 = vxor.u32 %v2023, 2147483648
    %v2025 = vmul.f32 %v2024, 1.442695
    %v2026 = vpow.pop %v2025
    %v2027 = vadd.f32 %v2026, 1.0
    %v2028 = vrcp.pop %v2027
    %v2029 = vmul.f32 1.0, %v2028
    %v2030 = vtanh.pop %v2023
    %v2032 = vrot.slane %v1924, 6
    %v2034 = vmul.f32 %v2029, %v2032
    %2036 = vrot.lane.b32.xlu0 %v2030, 32
    %v2037 = vpop.permute.xlu0 %2036
    %v2039 = vmul.f32 %v2029, %v2037
    %2041 = vrot.lane.b32.xlu0 %v2039, 32
    %v2042 = vpop.permute.xlu0 %2041
    %v2044 = vadd.f32 %v2034, %v2042
    %v2045 = vtanh.pop %v2044
    %2047 = vrot.lane.b32.xlu0 %v2045, 32
    %v2048 = vpop.permute.xlu0 %2047
    %v2050 = vmul.f32 %v2029, %v2048
    %2052 = vrot.lane.b32.xlu0 %v2050, 64
    %v2053 = vpop.permute.xlu0 %2052
    %2055 = vst.msk [vmem:[#allocation3 + $0x4] sm:$0x1] %vm1578, %v2053
    %2056 = vst.msk [vmem:[#allocation3 + $0x3] sm:$0x1] %vm1580, %v2053
    %2057 = vst.msk [vmem:[#allocation3 + $0xb] sm:$0x2] %vm1582, %v2053
    %2058 = vst.msk [vmem:[#allocation3 + $0xa] sm:$0x2] %vm1584, %v2053
    %v2059 = vrot.slane %v1462, 2
    %v2061 = vadd.f32 %v1392, %v2059
    %v2062 = vsel %vm159, %v2053, 0
    %2064 = vmatprep.subr.mxu0 0.0
    %2065 = vmatpush1.msra.mxu0 %v55
    %2066 = vmatprep.subr.mxu0 0.0
    %2067 = vmatpush1.msra.mxu0 %v56
    %2068 = vmatprep.subr.mxu0 0.0
    %2069 = vmatpush1.msra.mxu0 %v57
    %2070 = vmatprep.subr.mxu0 0.0
    %2071 = vmatpush1.msra.mxu0 %v58
    %2072 = vmatprep.subr.mxu0 0.0
    %2073 = vmatpush1.msra.mxu0 0.0
    %2074 = vmatprep.subr.mxu0 0.0
    %2075 = vmatpush1.msra.mxu0 0.0
    %2076 = vmatprep.subr.mxu0 0.0
    %2077 = vmatpush1.msra.mxu0 0.0
    %2078 = vmatprep.subr.mxu0 0.0
    %2079 = vmatpush1.msra.mxu0 0.0
    %2080 = vmatprep.subr.mxu0 0.0
    %2081 = vmatpush1.msra.mxu0 0.0
    %2082 = vmatprep.subr.mxu0 0.0
    %2083 = vmatpush1.msra.mxu0 0.0
    %2084 = vmatprep.subr.mxu0 0.0
    %2085 = vmatpush1.msra.mxu0 0.0
    %2086 = vmatprep.subr.mxu0 0.0
    %2087 = vmatpush1.msra.mxu0 0.0
    %2088 = vmatprep.subr.mxu0 0.0
    %2089 = vmatpush1.msra.mxu0 0.0
    %2090 = vmatprep.subr.mxu0 0.0
    %2091 = vmatpush1.msra.mxu0 0.0
    %2092 = vmatprep.subr.mxu0 0.0
    %2093 = vmatpush1.msra.mxu0 0.0
    %2094 = vmatprep.subr.mxu0 0.0
    %2095 = vmatpush1.msra.mxu0 0.0
    %2096 = vmatprep.subr.mxu0 0.0
    %2097 = vmatpush1.msra.mxu0 0.0
    %2098 = vmatprep.subr.mxu0 0.0
    %2099 = vmatpush1.msra.mxu0 0.0
    %2100 = vmatprep.subr.mxu0 0.0
    %2101 = vmatpush1.msra.mxu0 0.0
    %2102 = vmatprep.subr.mxu0 0.0
    %2103 = vmatpush1.msra.mxu0 0.0
    %2104 = vmatprep.subr.mxu0 0.0
    %2105 = vmatpush1.msra.mxu0 0.0
    %2106 = vmatprep.subr.mxu0 0.0
    %2107 = vmatpush1.msra.mxu0 0.0
    %2108 = vmatprep.subr.mxu0 0.0
    %2109 = vmatpush1.msra.mxu0 0.0
    %2110 = vmatprep.subr.mxu0 0.0
    %2111 = vmatpush1.msra.mxu0 0.0
    %2112 = vmatprep.subr.mxu0 0.0
    %2113 = vmatpush1.msra.mxu0 0.0
    %2114 = vmatprep.subr.mxu0 0.0
    %2115 = vmatpush1.msra.mxu0 0.0
    %2116 = vmatprep.subr.mxu0 0.0
    %2117 = vmatpush1.msra.mxu0 0.0
    %2118 = vmatprep.subr.mxu0 0.0
    %2119 = vmatpush1.msra.mxu0 0.0
    %2120 = vmatprep.subr.mxu0 0.0
    %2121 = vmatpush1.msra.mxu0 0.0
    %2122 = vmatprep.subr.mxu0 0.0
    %2123 = vmatpush1.msra.mxu0 0.0
    %2124 = vmatprep.subr.mxu0 0.0
    %2125 = vmatpush1.msra.mxu0 0.0
    %2126 = vmatprep.subr.mxu0 0.0
    %2127 = vmatpush1.msra.mxu0 0.0
    %2128 = vmatprep.mubr.f32.mxu0 0.0
    %2129 = vmatmul.mubr.f32.gmra.mrb[0].mxu0 %v2062
    %v2130 = vpop.f32.mrb[0].mxu0
    %v2131 = vadd.f32 0.0, %v2130
    %v2132 = vpop.f32.mrb[0].mxu0
    %2133 = vdwg.mxu0
    %v2135 = vrot.slane %v2131, 6
    %v2137 = vadd.f32 %v2061, %v2135
    %v2138 = vadd.f32 %v2137, %v1548
    %v2139 = vxor.u32 %v2138, 2147483648
    %v2140 = vmul.f32 %v2139, 1.442695
    %v2141 = vpow.pop %v2140
    %v2142 = vadd.f32 %v2141, 1.0
    %v2143 = vrcp.pop %v2142
    %v2144 = vmul.f32 1.0, %v2143
    %v2145 = vtanh.pop %v2138
    %v2147 = vrot.slane %v2044, 6
    %v2149 = vmul.f32 %v2144, %v2147
    %2151 = vrot.lane.b32.xlu0 %v2145, 32
    %v2152 = vpop.permute.xlu0 %2151
    %v2154 = vmul.f32 %v2144, %v2152
    %2156 = vrot.lane.b32.xlu0 %v2154, 32
    %v2157 = vpop.permute.xlu0 %2156
    %v2159 = vadd.f32 %v2149, %v2157
    %v2160 = vtanh.pop %v2159
    %2162 = vrot.lane.b32.xlu0 %v2160, 32
    %v2163 = vpop.permute.xlu0 %2162
    %v2165 = vmul.f32 %v2144, %v2163
    %2167 = vrot.lane.b32.xlu0 %v2165, 64
    %v2168 = vpop.permute.xlu0 %2167
    %2170 = vst.msk [vmem:[#allocation3 + $0x3] sm:$0x4] %vm1697, %v2168
    %2171 = vst.msk [vmem:[#allocation3] sm:$0x4] %vm1699, %v2168
    %2172 = vst.msk [vmem:[#allocation3 + $0xa] sm:$0x8] %vm1701, %v2168
    %2173 = vst.msk [vmem:[#allocation3 + $0x7] sm:$0x8] %vm1703, %v2168
    %v2174 = vrot.slane %v2165, 2
    %2175 = vrot.lane.b32.xlu0 %v2174, 64
    %v2176 = vpop.permute.xlu0 %2175
    %v2177 = vsel %vm159, %v2176, 0
    %2179 = vmatprep.subr.mxu0 0.0
    %2180 = vmatpush1.msra.mxu0 %v55
    %2181 = vmatprep.subr.mxu0 0.0
    %2182 = vmatpush1.msra.mxu0 %v56
    %2183 = vmatprep.subr.mxu0 0.0
    %2184 = vmatpush1.msra.mxu0 %v57
    %2185 = vmatprep.subr.mxu0 0.0
    %2186 = vmatpush1.msra.mxu0 %v58
    %2187 = vmatprep.subr.mxu0 0.0
    %2188 = vmatpush1.msra.mxu0 0.0
    %2189 = vmatprep.subr.mxu0 0.0
    %2190 = vmatpush1.msra.mxu0 0.0
    %2191 = vmatprep.subr.mxu0 0.0
    %2192 = vmatpush1.msra.mxu0 0.0
    %2193 = vmatprep.subr.mxu0 0.0
    %2194 = vmatpush1.msra.mxu0 0.0
    %2195 = vmatprep.subr.mxu0 0.0
    %2196 = vmatpush1.msra.mxu0 0.0
    %2197 = vmatprep.subr.mxu0 0.0
    %2198 = vmatpush1.msra.mxu0 0.0
    %2199 = vmatprep.subr.mxu0 0.0
    %2200 = vmatpush1.msra.mxu0 0.0
    %2201 = vmatprep.subr.mxu0 0.0
    %2202 = vmatpush1.msra.mxu0 0.0
    %2203 = vmatprep.subr.mxu0 0.0
    %2204 = vmatpush1.msra.mxu0 0.0
    %2205 = vmatprep.subr.mxu0 0.0
    %2206 = vmatpush1.msra.mxu0 0.0
    %2207 = vmatprep.subr.mxu0 0.0
    %2208 = vmatpush1.msra.mxu0 0.0
    %2209 = vmatprep.subr.mxu0 0.0
    %2210 = vmatpush1.msra.mxu0 0.0
    %2211 = vmatprep.subr.mxu0 0.0
    %2212 = vmatpush1.msra.mxu0 0.0
    %2213 = vmatprep.subr.mxu0 0.0
    %2214 = vmatpush1.msra.mxu0 0.0
    %2215 = vmatprep.subr.mxu0 0.0
    %2216 = vmatpush1.msra.mxu0 0.0
    %2217 = vmatprep.subr.mxu0 0.0
    %2218 = vmatpush1.msra.mxu0 0.0
    %2219 = vmatprep.subr.mxu0 0.0
    %2220 = vmatpush1.msra.mxu0 0.0
    %2221 = vmatprep.subr.mxu0 0.0
    %2222 = vmatpush1.msra.mxu0 0.0
    %2223 = vmatprep.subr.mxu0 0.0
    %2224 = vmatpush1.msra.mxu0 0.0
    %2225 = vmatprep.subr.mxu0 0.0
    %2226 = vmatpush1.msra.mxu0 0.0
    %2227 = vmatprep.subr.mxu0 0.0
    %2228 = vmatpush1.msra.mxu0 0.0
    %2229 = vmatprep.subr.mxu0 0.0
    %2230 = vmatpush1.msra.mxu0 0.0
    %2231 = vmatprep.subr.mxu0 0.0
    %2232 = vmatpush1.msra.mxu0 0.0
    %2233 = vmatprep.subr.mxu0 0.0
    %2234 = vmatpush1.msra.mxu0 0.0
    %2235 = vmatprep.subr.mxu0 0.0
    %2236 = vmatpush1.msra.mxu0 0.0
    %2237 = vmatprep.subr.mxu0 0.0
    %2238 = vmatpush1.msra.mxu0 0.0
    %2239 = vmatprep.subr.mxu0 0.0
    %2240 = vmatpush1.msra.mxu0 0.0
    %2241 = vmatprep.subr.mxu0 0.0
    %2242 = vmatpush1.msra.mxu0 0.0
    %2243 = vmatprep.mubr.f32.mxu0 0.0
    %2244 = vmatmul.mubr.f32.gmra.mrb[0].mxu0 %v2177
    %v2245 = vpop.f32.mrb[0].mxu0
    %v2246 = vadd.f32 0.0, %v2245
    %v2247 = vpop.f32.mrb[0].mxu0
    %2248 = vdwg.mxu0
    %v2250 = vrot.slane %v2246, 4
    %v2252 = vadd.f32 %v1946, %v2250
    %v2253 = vadd.f32 %v2252, %v1548
    %v2254 = vxor.u32 %v2253, 2147483648
    %v2255 = vmul.f32 %v2254, 1.442695
    %v2256 = vpow.pop %v2255
    %v2257 = vadd.f32 %v2256, 1.0
    %v2258 = vrcp.pop %v2257
    %v2259 = vmul.f32 1.0, %v2258
    %v2260 = vtanh.pop %v2253
    %v2262 = vrot.slane %v2159, 6
    %v2264 = vmul.f32 %v2259, %v2262
    %2266 = vrot.lane.b32.xlu0 %v2260, 32
    %v2267 = vpop.permute.xlu0 %2266
    %v2269 = vmul.f32 %v2259, %v2267
    %2271 = vrot.lane.b32.xlu0 %v2269, 32
    %v2272 = vpop.permute.xlu0 %2271
    %v2274 = vadd.f32 %v2264, %v2272
    %v2275 = vtanh.pop %v2274
    %2277 = vrot.lane.b32.xlu0 %v2275, 32
    %v2278 = vpop.permute.xlu0 %2277
    %v2280 = vmul.f32 %v2259, %v2278
    %2282 = vrot.lane.b32.xlu0 %v2280, 64
    %v2283 = vpop.permute.xlu0 %2282
    %2285 = vst.msk [vmem:[#allocation3 + $0x2] sm:$0x10] %vm1816, %v2283
    %2286 = vst.msk [vmem:[#allocation3 - $0x3] sm:$0x10] %vm1818, %v2283
    %2287 = vst.msk [vmem:[#allocation3 + $0x9] sm:$0x20] %vm1820, %v2283
    %2288 = vst.msk [vmem:[#allocation3 + $0x4] sm:$0x20] %vm1822, %v2283
    %v2289 = vrot.slane %v2280, 4
    %2290 = vrot.lane.b32.xlu0 %v2289, 64
    %v2291 = vpop.permute.xlu0 %2290
    %v2292 = vsel %vm159, %v2291, 0
    %2294 = vmatprep.subr.mxu0 0.0
    %2295 = vmatpush1.msra.mxu0 %v55
    %2296 = vmatprep.subr.mxu0 0.0
    %2297 = vmatpush1.msra.mxu0 %v56
    %2298 = vmatprep.subr.mxu0 0.0
    %2299 = vmatpush1.msra.mxu0 %v57
    %2300 = vmatprep.subr.mxu0 0.0
    %2301 = vmatpush1.msra.mxu0 %v58
    %2302 = vmatprep.subr.mxu0 0.0
    %2303 = vmatpush1.msra.mxu0 0.0
    %2304 = vmatprep.subr.mxu0 0.0
    %2305 = vmatpush1.msra.mxu0 0.0
    %2306 = vmatprep.subr.mxu0 0.0
    %2307 = vmatpush1.msra.mxu0 0.0
    %2308 = vmatprep.subr.mxu0 0.0
    %2309 = vmatpush1.msra.mxu0 0.0
    %2310 = vmatprep.subr.mxu0 0.0
    %2311 = vmatpush1.msra.mxu0 0.0
    %2312 = vmatprep.subr.mxu0 0.0
    %2313 = vmatpush1.msra.mxu0 0.0
    %2314 = vmatprep.subr.mxu0 0.0
    %2315 = vmatpush1.msra.mxu0 0.0
    %2316 = vmatprep.subr.mxu0 0.0
    %2317 = vmatpush1.msra.mxu0 0.0
    %2318 = vmatprep.subr.mxu0 0.0
    %2319 = vmatpush1.msra.mxu0 0.0
    %2320 = vmatprep.subr.mxu0 0.0
    %2321 = vmatpush1.msra.mxu0 0.0
    %2322 = vmatprep.subr.mxu0 0.0
    %2323 = vmatpush1.msra.mxu0 0.0
    %2324 = vmatprep.subr.mxu0 0.0
    %2325 = vmatpush1.msra.mxu0 0.0
    %2326 = vmatprep.subr.mxu0 0.0
    %2327 = vmatpush1.msra.mxu0 0.0
    %2328 = vmatprep.subr.mxu0 0.0
    %2329 = vmatpush1.msra.mxu0 0.0
    %2330 = vmatprep.subr.mxu0 0.0
    %2331 = vmatpush1.msra.mxu0 0.0
    %2332 = vmatprep.subr.mxu0 0.0
    %2333 = vmatpush1.msra.mxu0 0.0
    %2334 = vmatprep.subr.mxu0 0.0
    %2335 = vmatpush1.msra.mxu0 0.0
    %2336 = vmatprep.subr.mxu0 0.0
    %2337 = vmatpush1.msra.mxu0 0.0
    %2338 = vmatprep.subr.mxu0 0.0
    %2339 = vmatpush1.msra.mxu0 0.0
    %2340 = vmatprep.subr.mxu0 0.0
    %2341 = vmatpush1.msra.mxu0 0.0
    %2342 = vmatprep.subr.mxu0 0.0
    %2343 = vmatpush1.msra.mxu0 0.0
    %2344 = vmatprep.subr.mxu0 0.0
    %2345 = vmatpush1.msra.mxu0 0.0
    %2346 = vmatprep.subr.mxu0 0.0
    %2347 = vmatpush1.msra.mxu0 0.0
    %2348 = vmatprep.subr.mxu0 0.0
    %2349 = vmatpush1.msra.mxu0 0.0
    %2350 = vmatprep.subr.mxu0 0.0
    %2351 = vmatpush1.msra.mxu0 0.0
    %2352 = vmatprep.subr.mxu0 0.0
    %2353 = vmatpush1.msra.mxu0 0.0
    %2354 = vmatprep.subr.mxu0 0.0
    %2355 = vmatpush1.msra.mxu0 0.0
    %2356 = vmatprep.subr.mxu0 0.0
    %2357 = vmatpush1.msra.mxu0 0.0
    %2358 = vmatprep.mubr.f32.mxu0 0.0
    %2359 = vmatmul.mubr.f32.gmra.mrb[0].mxu0 %v2292
    %v2360 = vpop.f32.mrb[0].mxu0
    %v2361 = vadd.f32 0.0, %v2360
    %v2362 = vpop.f32.mrb[0].mxu0
    %2363 = vdwg.mxu0
    %v2365 = vrot.slane %v2361, 2
    %v2367 = vadd.f32 %v2061, %v2365
    %v2368 = vadd.f32 %v2367, %v1548
    %v2369 = vxor.u32 %v2368, 2147483648
    %v2370 = vmul.f32 %v2369, 1.442695
    %v2371 = vpow.pop %v2370
    %v2372 = vadd.f32 %v2371, 1.0
    %v2373 = vrcp.pop %v2372
    %v2374 = vmul.f32 1.0, %v2373
    %v2375 = vtanh.pop %v2368
    %v2377 = vrot.slane %v2274, 6
    %v2379 = vmul.f32 %v2374, %v2377
    %2381 = vrot.lane.b32.xlu0 %v2375, 32
    %v2382 = vpop.permute.xlu0 %2381
    %v2384 = vmul.f32 %v2374, %v2382
    %2386 = vrot.lane.b32.xlu0 %v2384, 32
    %v2387 = vpop.permute.xlu0 %2386
    %v2389 = vadd.f32 %v2379, %v2387
    %v2390 = vtanh.pop %v2389
    %2392 = vrot.lane.b32.xlu0 %v2390, 32
    %v2393 = vpop.permute.xlu0 %2392
    %v2395 = vmul.f32 %v2374, %v2393
    %2397 = vrot.lane.b32.xlu0 %v2395, 64
    %v2398 = vpop.permute.xlu0 %2397
    %2400 = vst.msk [vmem:[#allocation3 + $0x1] sm:$0x40] %vm1935, %v2398
    %2401 = vst.msk [vmem:[#allocation3 - $0x6] sm:$0x40] %vm1937, %v2398
    %2402 = vst.msk [vmem:[#allocation3 + $0x8] sm:$0x80] %vm1939, %v2398
    %2403 = vst.msk [vmem:[#allocation3 + $0x1] sm:$0x80] %vm1941, %v2398
    %v2404 = vld [vmem:[#allocation3] sm:$0xff]
    %v2405 = vmul.f32 %v2404, 0.17677669
    %v2407 = vsel %vm159, %v2405, 0
    %v2410 = vsel %vm159, %v2404, 0
    %2412 = vmatprep.subr.mxu0 0.0
    %2413 = vmatpush1.xpose.msra.mxu0 %v2410
    %2414 = vmatprep.subr.mxu0 0.0
    %2415 = vmatpush1.xpose.msra.mxu0 0.0
    %2416 = vmatprep.subr.mxu0 0.0
    %2417 = vmatpush1.xpose.msra.mxu0 0.0
    %2418 = vmatprep.subr.mxu0 0.0
    %2419 = vmatpush1.xpose.msra.mxu0 0.0
    %2420 = vmatprep.subr.mxu0 0.0
    %2421 = vmatpush1.xpose.msra.mxu0 0.0
    %2422 = vmatprep.subr.mxu0 0.0
    %2423 = vmatpush1.xpose.msra.mxu0 0.0
    %2424 = vmatprep.subr.mxu0 0.0
    %2425 = vmatpush1.xpose.msra.mxu0 0.0
    %2426 = vmatprep.subr.mxu0 0.0
    %2427 = vmatpush1.xpose.msra.mxu0 0.0
    %2428 = vmatprep.subr.mxu0 0.0
    %2429 = vmatpush1.xpose.msra.mxu0 0.0
    %2430 = vmatprep.subr.mxu0 0.0
    %2431 = vmatpush1.xpose.msra.mxu0 0.0
    %2432 = vmatprep.subr.mxu0 0.0
    %2433 = vmatpush1.xpose.msra.mxu0 0.0
    %2434 = vmatprep.subr.mxu0 0.0
    %2435 = vmatpush1.xpose.msra.mxu0 0.0
    %2436 = vmatprep.subr.mxu0 0.0
    %2437 = vmatpush1.xpose.msra.mxu0 0.0
    %2438 = vmatprep.subr.mxu0 0.0
    %2439 = vmatpush1.xpose.msra.mxu0 0.0
    %2440 = vmatprep.subr.mxu0 0.0
    %2441 = vmatpush1.xpose.msra.mxu0 0.0
    %2442 = vmatprep.subr.mxu0 0.0
    %2443 = vmatpush1.xpose.msra.mxu0 0.0
    %2444 = vmatprep.subr.mxu0 0.0
    %2445 = vmatpush1.xpose.msra.mxu0 0.0
    %2446 = vmatprep.subr.mxu0 0.0
    %2447 = vmatpush1.xpose.msra.mxu0 0.0
    %2448 = vmatprep.subr.mxu0 0.0
    %2449 = vmatpush1.xpose.msra.mxu0 0.0
    %2450 = vmatprep.subr.mxu0 0.0
    %2451 = vmatpush1.xpose.msra.mxu0 0.0
    %2452 = vmatprep.subr.mxu0 0.0
    %2453 = vmatpush1.xpose.msra.mxu0 0.0
    %2454 = vmatprep.subr.mxu0 0.0
    %2455 = vmatpush1.xpose.msra.mxu0 0.0
    %2456 = vmatprep.subr.mxu0 0.0
    %2457 = vmatpush1.xpose.msra.mxu0 0.0
    %2458 = vmatprep.subr.mxu0 0.0
    %2459 = vmatpush1.xpose.msra.mxu0 0.0
    %2460 = vmatprep.subr.mxu0 0.0
    %2461 = vmatpush1.xpose.msra.mxu0 0.0
    %2462 = vmatprep.subr.mxu0 0.0
    %2463 = vmatpush1.xpose.msra.mxu0 0.0
    %2464 = vmatprep.subr.mxu0 0.0
    %2465 = vmatpush1.xpose.msra.mxu0 0.0
    %2466 = vmatprep.subr.mxu0 0.0
    %2467 = vmatpush1.xpose.msra.mxu0 0.0
    %2468 = vmatprep.subr.mxu0 0.0
    %2469 = vmatpush1.xpose.msra.mxu0 0.0
    %2470 = vmatprep.subr.mxu0 0.0
    %2471 = vmatpush1.xpose.msra.mxu0 0.0
    %2472 = vmatprep.subr.mxu0 0.0
    %2473 = vmatpush1.xpose.msra.mxu0 0.0
    %2474 = vmatprep.subr.mxu0 0.0
    %2475 = vmatpush1.xpose.msra.mxu0 0.0
    %2476 = vmatprep.mubr.f32.mxu0 0.0
    %2477 = vmatmul.mubr.f32.gmra.mrb[0].mxu0 %v2407
    %v2478 = vpop.f32.mrb[0].mxu0
    %v2479 = vadd.f32 0.0, %v2478
    %v2480 = vpop.f32.mrb[0].mxu0
    %2481 = vdwg.mxu0
    %vm2482 = vcmask 64512
    %v2483 = vsel %vm2482, %v2479, -inf
    %2484 = vmax.xlane.f32.xlu0 %v2483
    %v2485 = vpop.xlane.xlu0 %2484
    %v2486 = vsub.f32 %v2479, %v2485
    %v2487 = vmul.f32 %v2486, 1.442695
    %v2488 = vpow.pop %v2487
    %v2489 = vsel %vm2482, %v2488, 0.0
    %2490 = vadd.xlane.f32.xlu0 %v2489
    %v2491 = vpop.xlane.xlu0 %2490
    %v2492 = vrcp.pop %v2491
    %v2493 = vmul.f32 %v2488, %v2492
    %v2495 = vsel %vm2482, %v2493, 0
    %2497 = vmatprep.subr.mxu0 0.0
    %2498 = vmatpush1.msra.mxu0 %v2404
    %2499 = vmatprep.subr.mxu0 0.0
    %2500 = vmatpush1.msra.mxu0 0.0
    %2501 = vmatprep.subr.mxu0 0.0
    %2502 = vmatpush1.msra.mxu0 0.0
    %2503 = vmatprep.subr.mxu0 0.0
    %2504 = vmatpush1.msra.mxu0 0.0
    %2505 = vmatprep.subr.mxu0 0.0
    %2506 = vmatpush1.msra.mxu0 0.0
    %2507 = vmatprep.subr.mxu0 0.0
    %2508 = vmatpush1.msra.mxu0 0.0
    %2509 = vmatprep.subr.mxu0 0.0
    %2510 = vmatpush1.msra.mxu0 0.0
    %2511 = vmatprep.subr.mxu0 0.0
    %2512 = vmatpush1.msra.mxu0 0.0
    %2513 = vmatprep.subr.mxu0 0.0
    %2514 = vmatpush1.msra.mxu0 0.0
    %2515 = vmatprep.subr.mxu0 0.0
    %2516 = vmatpush1.msra.mxu0 0.0
    %2517 = vmatprep.subr.mxu0 0.0
    %2518 = vmatpush1.msra.mxu0 0.0
    %2519 = vmatprep.subr.mxu0 0.0
    %2520 = vmatpush1.msra.mxu0 0.0
    %2521 = vmatprep.subr.mxu0 0.0
    %2522 = vmatpush1.msra.mxu0 0.0
    %2523 = vmatprep.subr.mxu0 0.0
    %2524 = vmatpush1.msra.mxu0 0.0
    %2525 = vmatprep.subr.mxu0 0.0
    %2526 = vmatpush1.msra.mxu0 0.0
    %2527 = vmatprep.subr.mxu0 0.0
    %2528 = vmatpush1.msra.mxu0 0.0
    %2529 = vmatprep.subr.mxu0 0.0
    %2530 = vmatpush1.msra.mxu0 0.0
    %2531 = vmatprep.subr.mxu0 0.0
    %2532 = vmatpush1.msra.mxu0 0.0
    %2533 = vmatprep.subr.mxu0 0.0
    %2534 = vmatpush1.msra.mxu0 0.0
    %2535 = vmatprep.subr.mxu0 0.0
    %2536 = vmatpush1.msra.mxu0 0.0
    %2537 = vmatprep.subr.mxu0 0.0
    %2538 = vmatpush1.msra.mxu0 0.0
    %2539 = vmatprep.subr.mxu0 0.0
    %2540 = vmatpush1.msra.mxu0 0.0
    %2541 = vmatprep.subr.mxu0 0.0
    %2542 = vmatpush1.msra.mxu0 0.0
    %2543 = vmatprep.subr.mxu0 0.0
    %2544 = vmatpush1.msra.mxu0 0.0
    %2545 = vmatprep.subr.mxu0 0.0
    %2546 = vmatpush1.msra.mxu0 0.0
    %2547 = vmatprep.subr.mxu0 0.0
    %2548 = vmatpush1.msra.mxu0 0.0
    %2549 = vmatprep.subr.mxu0 0.0
    %2550 = vmatpush1.msra.mxu0 0.0
    %2551 = vmatprep.subr.mxu0 0.0
    %2552 = vmatpush1.msra.mxu0 0.0
    %2553 = vmatprep.subr.mxu0 0.0
    %2554 = vmatpush1.msra.mxu0 0.0
    %2555 = vmatprep.subr.mxu0 0.0
    %2556 = vmatpush1.msra.mxu0 0.0
    %2557 = vmatprep.subr.mxu0 0.0
    %2558 = vmatpush1.msra.mxu0 0.0
    %2559 = vmatprep.subr.mxu0 0.0
    %2560 = vmatpush1.msra.mxu0 0.0
    %2561 = vmatprep.mubr.f32.mxu0 0.0
    %2562 = vmatmul.mubr.f32.gmra.mrb[0].mxu0 %v2495
    %v2563 = vpop.f32.mrb[0].mxu0
    %v2564 = vadd.f32 0.0, %v2563
    %v2565 = vpop.f32.mrb[0].mxu0
    %2566 = vdwg.mxu0
    %v2567 = vlaneseq
    %v2568 = vshrl.u32 %v2567, 7
    %v2569 = vsub.s32 0, %v2568
    %v2570 = vrot.slane %v64, %v2569
    %v2572 = vsel %vm159, %v2564, 0
    %2574 = vmatprep.subr.mxu0 0.0
    %2575 = vmatpush1.msra.mxu0 %v60
    %2576 = vmatprep.subr.mxu0 0.0
    %2577 = vmatpush1.msra.mxu0 %v61
    %2578 = vmatprep.subr.mxu0 0.0
    %2579 = vmatpush1.msra.mxu0 %v62
    %2580 = vmatprep.subr.mxu0 0.0
    %2581 = vmatpush1.msra.mxu0 %v63
    %2582 = vmatprep.subr.mxu0 0.0
    %2583 = vmatpush1.msra.mxu0 0.0
    %2584 = vmatprep.subr.mxu0 0.0
    %2585 = vmatpush1.msra.mxu0 0.0
    %2586 = vmatprep.subr.mxu0 0.0
    %2587 = vmatpush1.msra.mxu0 0.0
    %2588 = vmatprep.subr.mxu0 0.0
    %2589 = vmatpush1.msra.mxu0 0.0
    %2590 = vmatprep.subr.mxu0 0.0
    %2591 = vmatpush1.msra.mxu0 0.0
    %2592 = vmatprep.subr.mxu0 0.0
    %2593 = vmatpush1.msra.mxu0 0.0
    %2594 = vmatprep.subr.mxu0 0.0
    %2595 = vmatpush1.msra.mxu0 0.0
    %2596 = vmatprep.subr.mxu0 0.0
    %2597 = vmatpush1.msra.mxu0 0.0
    %2598 = vmatprep.subr.mxu0 0.0
    %2599 = vmatpush1.msra.mxu0 0.0
    %2600 = vmatprep.subr.mxu0 0.0
    %2601 = vmatpush1.msra.mxu0 0.0
    %2602 = vmatprep.subr.mxu0 0.0
    %2603 = vmatpush1.msra.mxu0 0.0
    %2604 = vmatprep.subr.mxu0 0.0
    %2605 = vmatpush1.msra.mxu0 0.0
    %2606 = vmatprep.subr.mxu0 0.0
    %2607 = vmatpush1.msra.mxu0 0.0
    %2608 = vmatprep.subr.mxu0 0.0
    %2609 = vmatpush1.msra.mxu0 0.0
    %2610 = vmatprep.subr.mxu0 0.0
    %2611 = vmatpush1.msra.mxu0 0.0
    %2612 = vmatprep.subr.mxu0 0.0
    %2613 = vmatpush1.msra.mxu0 0.0
    %2614 = vmatprep.subr.mxu0 0.0
    %2615 = vmatpush1.msra.mxu0 0.0
    %2616 = vmatprep.subr.mxu0 0.0
    %2617 = vmatpush1.msra.mxu0 0.0
    %2618 = vmatprep.subr.mxu0 0.0
    %2619 = vmatpush1.msra.mxu0 0.0
    %2620 = vmatprep.subr.mxu0 0.0
    %2621 = vmatpush1.msra.mxu0 0.0
    %2622 = vmatprep.subr.mxu0 0.0
    %2623 = vmatpush1.msra.mxu0 0.0
    %2624 = vmatprep.subr.mxu0 0.0
    %2625 = vmatpush1.msra.mxu0 0.0
    %2626 = vmatprep.subr.mxu0 0.0
    %2627 = vmatpush1.msra.mxu0 0.0
    %2628 = vmatprep.subr.mxu0 0.0
    %2629 = vmatpush1.msra.mxu0 0.0
    %2630 = vmatprep.subr.mxu0 0.0
    %2631 = vmatpush1.msra.mxu0 0.0
    %2632 = vmatprep.subr.mxu0 0.0
    %2633 = vmatpush1.msra.mxu0 0.0
    %2634 = vmatprep.subr.mxu0 0.0
    %2635 = vmatpush1.msra.mxu0 0.0
    %2636 = vmatprep.subr.mxu0 0.0
    %2637 = vmatpush1.msra.mxu0 0.0
    %2638 = vmatprep.mubr.f32.mxu0 0.0
    %2639 = vmatmul.mubr.f32.gmra.mrb[0].mxu0 %v2572
    %v2640 = vpop.f32.mrb[0].mxu0
    %v2641 = vadd.f32 %v2570, %v2640
    %v2642 = vpop.f32.mrb[0].mxu0
    %2643 = vdwg.mxu0
    %2644 = vst.msk [vmem:[#allocation7] sm:$0xff] %vm2482, %v2641
    %v2645 = vld [vmem:[#allocation3 + $0x8] sm:$0xff]
    %v2646 = vmul.f32 %v2645, 0.17677669
    %v2648 = vsel %vm159, %v2646, 0
    %v2651 = vsel %vm159, %v2645, 0
    %2653 = vmatprep.subr.mxu0 0.0
    %2654 = vmatpush1.xpose.msra.mxu0 %v2651
    %2655 = vmatprep.subr.mxu0 0.0
    %2656 = vmatpush1.xpose.msra.mxu0 0.0
    %2657 = vmatprep.subr.mxu0 0.0
    %2658 = vmatpush1.xpose.msra.mxu0 0.0
    %2659 = vmatprep.subr.mxu0 0.0
    %2660 = vmatpush1.xpose.msra.mxu0 0.0
    %2661 = vmatprep.subr.mxu0 0.0
    %2662 = vmatpush1.xpose.msra.mxu0 0.0
    %2663 = vmatprep.subr.mxu0 0.0
    %2664 = vmatpush1.xpose.msra.mxu0 0.0
    %2665 = vmatprep.subr.mxu0 0.0
    %2666 = vmatpush1.xpose.msra.mxu0 0.0
    %2667 = vmatprep.subr.mxu0 0.0
    %2668 = vmatpush1.xpose.msra.mxu0 0.0
    %2669 = vmatprep.subr.mxu0 0.0
    %2670 = vmatpush1.xpose.msra.mxu0 0.0
    %2671 = vmatprep.subr.mxu0 0.0
    %2672 = vmatpush1.xpose.msra.mxu0 0.0
    %2673 = vmatprep.subr.mxu0 0.0
    %2674 = vmatpush1.xpose.msra.mxu0 0.0
    %2675 = vmatprep.subr.mxu0 0.0
    %2676 = vmatpush1.xpose.msra.mxu0 0.0
    %2677 = vmatprep.subr.mxu0 0.0
    %2678 = vmatpush1.xpose.msra.mxu0 0.0
    %2679 = vmatprep.subr.mxu0 0.0
    %2680 = vmatpush1.xpose.msra.mxu0 0.0
    %2681 = vmatprep.subr.mxu0 0.0
    %2682 = vmatpush1.xpose.msra.mxu0 0.0
    %2683 = vmatprep.subr.mxu0 0.0
    %2684 = vmatpush1.xpose.msra.mxu0 0.0
    %2685 = vmatprep.subr.mxu0 0.0
    %2686 = vmatpush1.xpose.msra.mxu0 0.0
    %2687 = vmatprep.subr.mxu0 0.0
    %2688 = vmatpush1.xpose.msra.mxu0 0.0
    %2689 = vmatprep.subr.mxu0 0.0
    %2690 = vmatpush1.xpose.msra.mxu0 0.0
    %2691 = vmatprep.subr.mxu0 0.0
    %2692 = vmatpush1.xpose.msra.mxu0 0.0
    %2693 = vmatprep.subr.mxu0 0.0
    %2694 = vmatpush1.xpose.msra.mxu0 0.0
    %2695 = vmatprep.subr.mxu0 0.0
    %2696 = vmatpush1.xpose.msra.mxu0 0.0
    %2697 = vmatprep.subr.mxu0 0.0
    %2698 = vmatpush1.xpose.msra.mxu0 0.0
    %2699 = vmatprep.subr.mxu0 0.0
    %2700 = vmatpush1.xpose.msra.mxu0 0.0
    %2701 = vmatprep.subr.mxu0 0.0
    %2702 = vmatpush1.xpose.msra.mxu0 0.0
    %2703 = vmatprep.subr.mxu0 0.0
    %2704 = vmatpush1.xpose.msra.mxu0 0.0
    %2705 = vmatprep.subr.mxu0 0.0
    %2706 = vmatpush1.xpose.msra.mxu0 0.0
    %2707 = vmatprep.subr.mxu0 0.0
    %2708 = vmatpush1.xpose.msra.mxu0 0.0
    %2709 = vmatprep.subr.mxu0 0.0
    %2710 = vmatpush1.xpose.msra.mxu0 0.0
    %2711 = vmatprep.subr.mxu0 0.0
    %2712 = vmatpush1.xpose.msra.mxu0 0.0
    %2713 = vmatprep.subr.mxu0 0.0
    %2714 = vmatpush1.xpose.msra.mxu0 0.0
    %2715 = vmatprep.subr.mxu0 0.0
    %2716 = vmatpush1.xpose.msra.mxu0 0.0
    %2717 = vmatprep.mubr.f32.mxu0 0.0
    %2718 = vmatmul.mubr.f32.gmra.mrb[0].mxu0 %v2648
    %v2719 = vpop.f32.mrb[0].mxu0
    %v2720 = vadd.f32 0.0, %v2719
    %v2721 = vpop.f32.mrb[0].mxu0
    %2722 = vdwg.mxu0
    %v2723 = vsel %vm2482, %v2720, -inf
    %2724 = vmax.xlane.f32.xlu0 %v2723
    %v2725 = vpop.xlane.xlu0 %2724
    %v2726 = vsub.f32 %v2720, %v2725
    %v2727 = vmul.f32 %v2726, 1.442695
    %v2728 = vpow.pop %v2727
    %v2729 = vsel %vm2482, %v2728, 0.0
    %2730 = vadd.xlane.f32.xlu0 %v2729
    %v2731 = vpop.xlane.xlu0 %2730
    %v2732 = vrcp.pop %v2731
    %v2733 = vmul.f32 %v2728, %v2732
    %v2735 = vsel %vm2482, %v2733, 0
    %2737 = vmatprep.subr.mxu0 0.0
    %2738 = vmatpush1.msra.mxu0 %v2645
    %2739 = vmatprep.subr.mxu0 0.0
    %2740 = vmatpush1.msra.mxu0 0.0
    %2741 = vmatprep.subr.mxu0 0.0
    %2742 = vmatpush1.msra.mxu0 0.0
    %2743 = vmatprep.subr.mxu0 0.0
    %2744 = vmatpush1.msra.mxu0 0.0
    %2745 = vmatprep.subr.mxu0 0.0
    %2746 = vmatpush1.msra.mxu0 0.0
    %2747 = vmatprep.subr.mxu0 0.0
    %2748 = vmatpush1.msra.mxu0 0.0
    %2749 = vmatprep.subr.mxu0 0.0
    %2750 = vmatpush1.msra.mxu0 0.0
    %2751 = vmatprep.subr.mxu0 0.0
    %2752 = vmatpush1.msra.mxu0 0.0
    %2753 = vmatprep.subr.mxu0 0.0
    %2754 = vmatpush1.msra.mxu0 0.0
    %2755 = vmatprep.subr.mxu0 0.0
    %2756 = vmatpush1.msra.mxu0 0.0
    %2757 = vmatprep.subr.mxu0 0.0
    %2758 = vmatpush1.msra.mxu0 0.0
    %2759 = vmatprep.subr.mxu0 0.0
    %2760 = vmatpush1.msra.mxu0 0.0
    %2761 = vmatprep.subr.mxu0 0.0
    %2762 = vmatpush1.msra.mxu0 0.0
    %2763 = vmatprep.subr.mxu0 0.0
    %2764 = vmatpush1.msra.mxu0 0.0
    %2765 = vmatprep.subr.mxu0 0.0
    %2766 = vmatpush1.msra.mxu0 0.0
    %2767 = vmatprep.subr.mxu0 0.0
    %2768 = vmatpush1.msra.mxu0 0.0
    %2769 = vmatprep.subr.mxu0 0.0
    %2770 = vmatpush1.msra.mxu0 0.0
    %2771 = vmatprep.subr.mxu0 0.0
    %2772 = vmatpush1.msra.mxu0 0.0
    %2773 = vmatprep.subr.mxu0 0.0
    %2774 = vmatpush1.msra.mxu0 0.0
    %2775 = vmatprep.subr.mxu0 0.0
    %2776 = vmatpush1.msra.mxu0 0.0
    %2777 = vmatprep.subr.mxu0 0.0
    %2778 = vmatpush1.msra.mxu0 0.0
    %2779 = vmatprep.subr.mxu0 0.0
    %2780 = vmatpush1.msra.mxu0 0.0
    %2781 = vmatprep.subr.mxu0 0.0
    %2782 = vmatpush1.msra.mxu0 0.0
    %2783 = vmatprep.subr.mxu0 0.0
    %2784 = vmatpush1.msra.mxu0 0.0
    %2785 = vmatprep.subr.mxu0 0.0
    %2786 = vmatpush1.msra.mxu0 0.0
    %2787 = vmatprep.subr.mxu0 0.0
    %2788 = vmatpush1.msra.mxu0 0.0
    %2789 = vmatprep.subr.mxu0 0.0
    %2790 = vmatpush1.msra.mxu0 0.0
    %2791 = vmatprep.subr.mxu0 0.0
    %2792 = vmatpush1.msra.mxu0 0.0
    %2793 = vmatprep.subr.mxu0 0.0
    %2794 = vmatpush1.msra.mxu0 0.0
    %2795 = vmatprep.subr.mxu0 0.0
    %2796 = vmatpush1.msra.mxu0 0.0
    %2797 = vmatprep.subr.mxu0 0.0
    %2798 = vmatpush1.msra.mxu0 0.0
    %2799 = vmatprep.subr.mxu0 0.0
    %2800 = vmatpush1.msra.mxu0 0.0
    %2801 = vmatprep.mubr.f32.mxu0 0.0
    %2802 = vmatmul.mubr.f32.gmra.mrb[0].mxu0 %v2735
    %v2803 = vpop.f32.mrb[0].mxu0
    %v2804 = vadd.f32 0.0, %v2803
    %v2805 = vpop.f32.mrb[0].mxu0
    %2806 = vdwg.mxu0
    %v2808 = vsel %vm159, %v2804, 0
    %2810 = vmatprep.subr.mxu0 0.0
    %2811 = vmatpush1.msra.mxu0 %v60
    %2812 = vmatprep.subr.mxu0 0.0
    %2813 = vmatpush1.msra.mxu0 %v61
    %2814 = vmatprep.subr.mxu0 0.0
    %2815 = vmatpush1.msra.mxu0 %v62
    %2816 = vmatprep.subr.mxu0 0.0
    %2817 = vmatpush1.msra.mxu0 %v63
    %2818 = vmatprep.subr.mxu0 0.0
    %2819 = vmatpush1.msra.mxu0 0.0
    %2820 = vmatprep.subr.mxu0 0.0
    %2821 = vmatpush1.msra.mxu0 0.0
    %2822 = vmatprep.subr.mxu0 0.0
    %2823 = vmatpush1.msra.mxu0 0.0
    %2824 = vmatprep.subr.mxu0 0.0
    %2825 = vmatpush1.msra.mxu0 0.0
    %2826 = vmatprep.subr.mxu0 0.0
    %2827 = vmatpush1.msra.mxu0 0.0
    %2828 = vmatprep.subr.mxu0 0.0
    %2829 = vmatpush1.msra.mxu0 0.0
    %2830 = vmatprep.subr.mxu0 0.0
    %2831 = vmatpush1.msra.mxu0 0.0
    %2832 = vmatprep.subr.mxu0 0.0
    %2833 = vmatpush1.msra.mxu0 0.0
    %2834 = vmatprep.subr.mxu0 0.0
    %2835 = vmatpush1.msra.mxu0 0.0
    %2836 = vmatprep.subr.mxu0 0.0
    %2837 = vmatpush1.msra.mxu0 0.0
    %2838 = vmatprep.subr.mxu0 0.0
    %2839 = vmatpush1.msra.mxu0 0.0
    %2840 = vmatprep.subr.mxu0 0.0
    %2841 = vmatpush1.msra.mxu0 0.0
    %2842 = vmatprep.subr.mxu0 0.0
    %2843 = vmatpush1.msra.mxu0 0.0
    %2844 = vmatprep.subr.mxu0 0.0
    %2845 = vmatpush1.msra.mxu0 0.0
    %2846 = vmatprep.subr.mxu0 0.0
    %2847 = vmatpush1.msra.mxu0 0.0
    %2848 = vmatprep.subr.mxu0 0.0
    %2849 = vmatpush1.msra.mxu0 0.0
    %2850 = vmatprep.subr.mxu0 0.0
    %2851 = vmatpush1.msra.mxu0 0.0
    %2852 = vmatprep.subr.mxu0 0.0
    %2853 = vmatpush1.msra.mxu0 0.0
    %2854 = vmatprep.subr.mxu0 0.0
    %2855 = vmatpush1.msra.mxu0 0.0
    %2856 = vmatprep.subr.mxu0 0.0
    %2857 = vmatpush1.msra.mxu0 0.0
    %2858 = vmatprep.subr.mxu0 0.0
    %2859 = vmatpush1.msra.mxu0 0.0
    %2860 = vmatprep.subr.mxu0 0.0
    %2861 = vmatpush1.msra.mxu0 0.0
    %2862 = vmatprep.subr.mxu0 0.0
    %2863 = vmatpush1.msra.mxu0 0.0
    %2864 = vmatprep.subr.mxu0 0.0
    %2865 = vmatpush1.msra.mxu0 0.0
    %2866 = vmatprep.subr.mxu0 0.0
    %2867 = vmatpush1.msra.mxu0 0.0
    %2868 = vmatprep.subr.mxu0 0.0
    %2869 = vmatpush1.msra.mxu0 0.0
    %2870 = vmatprep.subr.mxu0 0.0
    %2871 = vmatpush1.msra.mxu0 0.0
    %2872 = vmatprep.subr.mxu0 0.0
    %2873 = vmatpush1.msra.mxu0 0.0
    %2874 = vmatprep.mubr.f32.mxu0 0.0
    %2875 = vmatmul.mubr.f32.gmra.mrb[0].mxu0 %v2808
    %v2876 = vpop.f32.mrb[0].mxu0
    %v2877 = vadd.f32 %v2570, %v2876
    %v2878 = vpop.f32.mrb[0].mxu0
    %2879 = vdwg.mxu0
    %s2880 = scalar_lea.vmem [#allocation7], 8
    %2881 = vst.msk [vmem:[%s2880] sm:$0xff] %vm2482, %v2877
    // Predicated region
    $region14: #{_lambda_.1} parent=1 // pred_check
      _
    $region15: #{_lambda_.1} parent=1 // pred_check_branch
      %2883 = sbr.rel (0) target = $region17
    $region16: #{_lambda_.1} parent=1 // pred_region
      %s2885 = ssub.s32 256, 256
      %2886 = vsyncadd [#allocation6], %s2885
      %s2887 = sshll.u32 [#allocation7], 4
      %s2888 = int_to_ptr.vmem [resolvable:$true] %s2887
      %2893 = dma.vmem_to_hbm [thread:$0]  %s2888, 256, %s2, [#allocation6], 128, 128, 8
    $region17: #{_lambda_.1} parent=1 // pred_fallthru
      _
    // Predicated region
    $region18: #{_lambda_.1} parent=1 // pred_check
      _
    $region19: #{_lambda_.1} parent=1 // pred_check_branch
      %2895 = sbr.rel (0) target = $region21
    $region20: #{_lambda_.1} parent=1 // pred_region
      %2896 = dma.done [#allocation6], 256
    $region21: #{_lambda_.1} parent=1 // pred_fallthru
      _
    %2897 = vsyncpa [#allocation5], 1
    %2898 = vsyncpa [#allocation6], 1

</llo_original>
